<compile_context>
chip_gen: v7x
topology: tpu7x:2x2x1
jax: 0.10.0
libtpu: 0.0.40
codegen_flags: <defaults>
</compile_context>

<pallas_src>
import functools

import jax
import jax.numpy as jnp
from jax.experimental import pallas as pl
from jax.experimental.pallas import tpu as pltpu


_VMEM_LIMIT = 32 * 1024 * 1024   # fits v7x (64 MiB physical) and v5e/v6e (128 MiB)


def _pick_tm(M, tm_max):
    """Row-tile size: <= tm_max, a multiple of 8, and <= ceil(M/2) so the
    'parallel' grid axis has at least two steps (lets v7x shard across its
    two TensorCores); tiny M falls back to the full extent."""
    if M <= 16:
        return M                       # full extent (allowed: equals array dim)
    half = -(-M // 2)                  # ceil(M/2)
    half = -(-half // 8) * 8           # round up to sublane multiple of 8
    return min(half, tm_max)


# ---------------------------------------------------------------------------
# Fused matmul + bias + LeakyReLU kernel (conv1 / conv2 / conv3).
# ---------------------------------------------------------------------------
def _matmul_bias_act_kernel(x_ref, w_ref, b_ref, o_ref, *, act):
    acc = jnp.dot(x_ref[...], w_ref[...],
                  preferred_element_type=jnp.float32)      # bf16 MXU, f32 acc
    acc = acc + b_ref[...]                                  # (1, N) f32 broadcast
    if act == "leaky_relu":
        acc = jnp.maximum(acc, 0.2 * acc)
    o_ref[...] = acc.astype(o_ref.dtype)


def matmul_bias_act(x, w, b, *, act="none", out_dtype=jnp.bfloat16, tm_max=2048):
    """x: [M, K] bf16, w: [K, N] bf16, b: [N] f32 -> [M, N] out_dtype."""
    M, K = x.shape
    K2, N = w.shape
    assert K == K2
    tm = _pick_tm(M, tm_max)
    kernel = functools.partial(_matmul_bias_act_kernel, act=act)
    return pl.pallas_call(
        kernel,
        out_shape=jax.ShapeDtypeStruct((M, N), out_dtype),
        grid=(pl.cdiv(M, tm),),
        in_specs=[
            pl.BlockSpec((tm, K), lambda i: (i, 0)),
            pl.BlockSpec((K, N), lambda i: (0, 0)),
            pl.BlockSpec((1, N), lambda i: (0, 0)),
        ],
        out_specs=pl.BlockSpec((tm, N), lambda i: (i, 0)),
        compiler_params=pltpu.CompilerParams(
            dimension_semantics=("parallel",),
            vmem_limit_bytes=_VMEM_LIMIT,
        ),
    )(x, w, b.reshape(1, N))


# ---------------------------------------------------------------------------
# Fused tail: conv4 (3x3 -> 1x1) + LeakyReLU + folded Linear(256->16->1)
#             + Sigmoid, all in one kernel (intermediates stay in vregs/VMEM).
# ---------------------------------------------------------------------------
def _tail_kernel(x_ref, w4_ref, b4_ref, wfc_ref, bfc_ref, o_ref):
    # conv4 over the single 3x3 output position == [tn,1152] @ [1152,256]
    h = jnp.dot(x_ref[...], w4_ref[...], preferred_element_type=jnp.float32)
    h = h + b4_ref[...]
    h = jnp.maximum(h, 0.2 * h)                              # LeakyReLU, [tn,256] f32
    # Folded Linear(256->16)->Linear(16->1): one 256-wide weighted reduce.
    logit = jnp.sum(h * wfc_ref[...], axis=1, keepdims=True) + bfc_ref[...]
    o_ref[...] = jax.nn.sigmoid(logit).astype(o_ref.dtype)


def tail_fused(x, w4, b4, wfc, bfc, *, tm_max=512):
    Nb, K = x.shape                       # K = 3*3*128 = 1152
    tn = _pick_tm(Nb, tm_max)
    return pl.pallas_call(
        _tail_kernel,
        out_shape=jax.ShapeDtypeStruct((Nb, 1), jnp.float32),
        grid=(pl.cdiv(Nb, tn),),
        in_specs=[
            pl.BlockSpec((tn, K), lambda i: (i, 0)),
            pl.BlockSpec((K, 256), lambda i: (0, 0)),
            pl.BlockSpec((1, 256), lambda i: (0, 0)),
            pl.BlockSpec((1, 256), lambda i: (0, 0)),
            pl.BlockSpec((1, 1), lambda i: (0, 0)),
        ],
        out_specs=pl.BlockSpec((tn, 1), lambda i: (i, 0)),
        compiler_params=pltpu.CompilerParams(
            dimension_semantics=("parallel",),
            vmem_limit_bytes=_VMEM_LIMIT,
        ),
    )(x, w4, b4.reshape(1, 256), wfc, bfc)


# ---------------------------------------------------------------------------
# NHWC im2col (XLA side).  Patch flatten order is (kh, kw, c), matching the
# weight layout produced by _prep_conv.
# ---------------------------------------------------------------------------
def _im2col_nhwc(x, KH, KW, stride, pad):
    N, H, W, C = x.shape
    Hout = (H + 2 * pad - KH) // stride + 1
    Wout = (W + 2 * pad - KW) // stride + 1
    xp = jnp.pad(x, ((0, 0), (pad, pad), (pad, pad), (0, 0)))
    patches = []
    for i in range(KH):
        for j in range(KW):
            patches.append(
                xp[:, i:i + stride * (Hout - 1) + 1:stride,
                      j:j + stride * (Wout - 1) + 1:stride, :])
    cols = jnp.stack(patches, axis=3)                 # [N, Hout, Wout, KH*KW, C]
    cols = cols.reshape(N * Hout * Wout, KH * KW * C)
    return cols, Hout, Wout


# ---------------------------------------------------------------------------
# Parameter init (PyTorch-style uniform +-1/sqrt(fan_in)) + one-time repack:
# conv weights -> [KH*KW*IC, OC(_pad)] bf16; fc1*fc2 folded to [1,256] + [1,1].
# ---------------------------------------------------------------------------
def _prep_conv(w, b, *, oc_pad=None):
    OC, IC, KH, KW = w.shape
    wk = jnp.transpose(w, (2, 3, 1, 0)).reshape(KH * KW * IC, OC)   # rows (kh,kw,ic)
    if oc_pad is not None and oc_pad > OC:
        wk = jnp.pad(wk, ((0, 0), (0, oc_pad - OC)))
        b = jnp.pad(b, (0, oc_pad - OC))
    return wk.astype(jnp.bfloat16), b.astype(jnp.float32)


def init_params(key):
    def conv_init(k, oc, ic, kh, kw):
        k1, k2 = jax.random.split(k)
        bound = 1.0 / (ic * kh * kw) ** 0.5
        w = jax.random.uniform(k1, (oc, ic, kh, kw), jnp.float32, -bound, bound)
        b = jax.random.uniform(k2, (oc,), jnp.float32, -bound, bound)
        return w, b

    def lin_init(k, in_f, out_f):
        k1, k2 = jax.random.split(k)
        bound = 1.0 / in_f ** 0.5
        w = jax.random.uniform(k1, (out_f, in_f), jnp.float32, -bound, bound)
        b = jax.random.uniform(k2, (out_f,), jnp.float32, -bound, bound)
        return w, b

    keys = jax.random.split(key, 6)
    w1, b1 = conv_init(keys[0], 32, 1, 4, 4)
    w2, b2 = conv_init(keys[1], 64, 32, 4, 4)
    w3, b3 = conv_init(keys[2], 128, 64, 4, 4)
    w4, b4 = conv_init(keys[3], 256, 128, 3, 3)
    wf1, bf1 = lin_init(keys[4], 256, 16)            # torch Linear(256,16): [16,256]
    wf2, bf2 = lin_init(keys[5], 16, 1)               # torch Linear(16,1):  [1,16]

    # Exact fold of the two back-to-back Linear layers (no activation between):
    # y = (h @ wf1.T + bf1) @ wf2.T + bf2 = h @ (wf1.T @ wf2.T) + (bf1 @ wf2.T + bf2)
    w_fc = (wf1.T @ wf2.T).reshape(1, 256).astype(jnp.float32)      # [1, 256]
    b_fc = (bf1 @ wf2.T + bf2).reshape(1, 1).astype(jnp.float32)    # [1, 1]

    return {
        "conv1": _prep_conv(w1, b1, oc_pad=128),   # K=16,   OC 32 ->128 (lane-dense store)
        "conv2": _prep_conv(w2, b2, oc_pad=128),   # K=512,  OC 64 ->128
        "conv3": _prep_conv(w3, b3),               # K=1024, OC=128
        "conv4": _prep_conv(w4, b4),               # K=1152, OC=256 (tail)
        "fc": (w_fc, b_fc),
    }


# ---------------------------------------------------------------------------
# Forward pass (matches Distinguish_Model.forward at inference).
# ---------------------------------------------------------------------------
def distinguish_forward(params, x):
    x = x.reshape(-1, 1, 28, 28)
    x = jnp.transpose(x, (0, 2, 3, 1)).astype(jnp.bfloat16)      # NHWC [N,28,28,1]
    Nb = x.shape[0]

    # Conv(1->32, k4,s2,p1) + LeakyReLU(0.2)   -> [N,14,14,128] (ch 32..127 == 0)
    cols, Ho, Wo = _im2col_nhwc(x, 4, 4, 2, 1)                   # [N*196, 16]
    w, b = params["conv1"]
    x = matmul_bias_act(cols, w, b, act="leaky_relu",
                        tm_max=4096).reshape(Nb, Ho, Wo, 128)
    # TODO(synk): Dropout2d(0.2) is identity at inference; training-mode channel
    # dropout not implemented.

    # Conv(32->64, k4,s2,p1) + LeakyReLU(0.2)  -> [N,7,7,128] (ch 64..127 == 0)
    cols, Ho, Wo = _im2col_nhwc(x[..., :32], 4, 4, 2, 1)         # [N*49, 512] real chans
    w, b = params["conv2"]
    x = matmul_bias_act(cols, w, b, act="leaky_relu",
                        tm_max=2048).reshape(Nb, Ho, Wo, 128)

    # Conv(64->128, k4,s2,p1) + LeakyReLU(0.2) -> [N,3,3,128]
    cols, Ho, Wo = _im2col_nhwc(x[..., :64], 4, 4, 2, 1)         # [N*9, 1024] real chans
    w, b = params["conv3"]
    x = matmul_bias_act(cols, w, b, act="leaky_relu",
                        tm_max=1024).reshape(Nb, Ho, Wo, 128)

    # Fused tail: Conv(128->256,k3,s1,p0)+LeakyReLU -> Flatten
    #             -> folded Linear(256->16)->Linear(16->1) -> Sigmoid
    x = x.reshape(Nb, 3 * 3 * 128)                               # conv4 im2col == flatten
    w4, b4 = params["conv4"]
    wfc, bfc = params["fc"]
    return tail_fused(x, w4, b4, wfc, bfc, tm_max=512)           # [N,1] f32


if __name__ == "__main__":
    key = jax.random.PRNGKey(0)
    pkey, xkey = jax.random.split(key)
    params = init_params(pkey)
    x = jax.random.normal(xkey, (2, 1, 28, 28), jnp.float32)

    out = jax.jit(distinguish_forward)(params, x)
    out = jax.block_until_ready(out)

    assert out.shape == (2, 1), out.shape
    assert bool(jnp.all(jnp.isfinite(out))), "non-finite output"
    assert bool(jnp.all((out >= 0.0) & (out <= 1.0))), "sigmoid output out of range"
    print("KERNEL_OK")
</pallas_src>

<mosaic_0001>
module attributes {stable_mosaic.version = 11 : i64} {
  func.func @_matmul_bias_act_kernel(%arg0: i32, %arg1: memref<200x16xbf16, #tpu.memory_space<vmem>>, %arg2: memref<16x128xbf16, #tpu.memory_space<vmem>>, %arg3: memref<1x128xf32, #tpu.memory_space<vmem>>, %arg4: memref<200x128xbf16, #tpu.memory_space<vmem>>) attributes {dimension_semantics = [#tpu.dimension_semantics<parallel>], iteration_bounds = array<i64: 2>, scalar_prefetch = 0 : i64, scratch_operands = 0 : i64, tpu.core_type = #tpu.core_type<tc>, window_params = [{transform_indices = @transform_0, window_bounds = array<i64: 200, 16>}, {pipeline_mode = #tpu.pipeline_mode<synchronous>, transform_indices = @transform_1, window_bounds = array<i64: 16, 128>}, {pipeline_mode = #tpu.pipeline_mode<synchronous>, transform_indices = @transform_2, window_bounds = array<i64: 1, 128>}, {transform_indices = @transform_3, window_bounds = array<i64: 200, 128>}]} {
    %c0 = arith.constant 0 : index
    %c0_0 = arith.constant 0 : index
    %0 = vector.load %arg1[%c0, %c0_0] : memref<200x16xbf16, #tpu.memory_space<vmem>>, vector<200x16xbf16>
    %c0_1 = arith.constant 0 : index
    %c0_2 = arith.constant 0 : index
    %1 = vector.load %arg2[%c0_1, %c0_2] : memref<16x128xbf16, #tpu.memory_space<vmem>>, vector<16x128xbf16>
    %cst = arith.constant dense<0.000000e+00> : vector<200x128xf32>
    %2 = tpu.matmul %0, %1, %cst {dimension_numbers = #tpu.dot_dimension_numbers<[1], [0], [0], [1], [0, 0, 1, 1], [], []>} : vector<200x16xbf16>, vector<16x128xbf16>, vector<200x128xf32> -> vector<200x128xf32>
    %c0_3 = arith.constant 0 : index
    %c0_4 = arith.constant 0 : index
    %3 = vector.load %arg3[%c0_3, %c0_4] : memref<1x128xf32, #tpu.memory_space<vmem>>, vector<1x128xf32>
    %4 = vector.broadcast %3 : vector<1x128xf32> to vector<200x128xf32>
    %5 = arith.addf %2, %4 : vector<200x128xf32>
    %cst_5 = arith.constant 2.000000e-01 : f32
    %6 = vector.broadcast %cst_5 : f32 to vector<200x128xf32>
    %7 = arith.mulf %6, %5 : vector<200x128xf32>
    %8 = arith.maximumf %5, %7 : vector<200x128xf32>
    %9 = arith.truncf %8 : vector<200x128xf32> to vector<200x128xbf16>
    %c0_6 = arith.constant 0 : index
    %c0_7 = arith.constant 0 : index
    %10 = vector.load %arg4[%c0_6, %c0_7] : memref<200x128xbf16, #tpu.memory_space<vmem>>, vector<200x128xbf16>
    tpu.vector_store %arg4[%c0_6, %c0_7], %9 {strides = array<i32>} : memref<200x128xbf16, #tpu.memory_space<vmem>>, vector<200x128xbf16>,
    return
  }
  func.func @transform_0(%arg0: i32) -> (i32, i32) {
    %c0_i32 = arith.constant 0 : i32
    %c0_i32_0 = arith.constant 0 : i32
    return %arg0, %c0_i32 : i32, i32
  }
  func.func @transform_1(%arg0: i32) -> (i32, i32) {
    %c0_i32 = arith.constant 0 : i32
    %c0_i32_0 = arith.constant 0 : i32
    %c0_i32_1 = arith.constant 0 : i32
    return %c0_i32, %c0_i32_0 : i32, i32
  }
  func.func @transform_2(%arg0: i32) -> (i32, i32) {
    %c0_i32 = arith.constant 0 : i32
    %c0_i32_0 = arith.constant 0 : i32
    %c0_i32_1 = arith.constant 0 : i32
    return %c0_i32, %c0_i32_0 : i32, i32
  }
  func.func @transform_3(%arg0: i32) -> (i32, i32) {
    %c0_i32 = arith.constant 0 : i32
    %c0_i32_0 = arith.constant 0 : i32
    return %arg0, %c0_i32 : i32, i32
  }
}

module attributes {stable_mosaic.version = 11 : i64} {
  func.func @_matmul_bias_act_kernel(%arg0: i32, %arg1: memref<56x512xbf16, #tpu.memory_space<vmem>>, %arg2: memref<512x128xbf16, #tpu.memory_space<vmem>>, %arg3: memref<1x128xf32, #tpu.memory_space<vmem>>, %arg4: memref<56x128xbf16, #tpu.memory_space<vmem>>) attributes {dimension_semantics = [#tpu.dimension_semantics<parallel>], iteration_bounds = array<i64: 2>, scalar_prefetch = 0 : i64, scratch_operands = 0 : i64, tpu.core_type = #tpu.core_type<tc>, window_params = [{transform_indices = @transform_0, window_bounds = array<i64: 56, 512>}, {pipeline_mode = #tpu.pipeline_mode<synchronous>, transform_indices = @transform_1, window_bounds = array<i64: 512, 128>}, {pipeline_mode = #tpu.pipeline_mode<synchronous>, transform_indices = @transform_2, window_bounds = array<i64: 1, 128>}, {transform_indices = @transform_3, window_bounds = array<i64: 56, 128>}]} {
    %c0 = arith.constant 0 : index
    %c0_0 = arith.constant 0 : index
    %0 = vector.load %arg1[%c0, %c0_0] : memref<56x512xbf16, #tpu.memory_space<vmem>>, vector<56x512xbf16>
    %c0_1 = arith.constant 0 : index
    %c0_2 = arith.constant 0 : index
    %1 = vector.load %arg2[%c0_1, %c0_2] : memref<512x128xbf16, #tpu.memory_space<vmem>>, vector<512x128xbf16>
    %cst = arith.constant dense<0.000000e+00> : vector<56x128xf32>
    %2 = tpu.matmul %0, %1, %cst {dimension_numbers = #tpu.dot_dimension_numbers<[1], [0], [0], [1], [0, 0, 1, 1], [], []>} : vector<56x512xbf16>, vector<512x128xbf16>, vector<56x128xf32> -> vector<56x128xf32>
    %c0_3 = arith.constant 0 : index
    %c0_4 = arith.constant 0 : index
    %3 = vector.load %arg3[%c0_3, %c0_4] : memref<1x128xf32, #tpu.memory_space<vmem>>, vector<1x128xf32>
    %4 = vector.broadcast %3 : vector<1x128xf32> to vector<56x128xf32>
    %5 = arith.addf %2, %4 : vector<56x128xf32>
    %cst_5 = arith.constant 2.000000e-01 : f32
    %6 = vector.broadcast %cst_5 : f32 to vector<56x128xf32>
    %7 = arith.mulf %6, %5 : vector<56x128xf32>
    %8 = arith.maximumf %5, %7 : vector<56x128xf32>
    %9 = arith.truncf %8 : vector<56x128xf32> to vector<56x128xbf16>
    %c0_6 = arith.constant 0 : index
    %c0_7 = arith.constant 0 : index
    %10 = vector.load %arg4[%c0_6, %c0_7] : memref<56x128xbf16, #tpu.memory_space<vmem>>, vector<56x128xbf16>
    tpu.vector_store %arg4[%c0_6, %c0_7], %9 {strides = array<i32>} : memref<56x128xbf16, #tpu.memory_space<vmem>>, vector<56x128xbf16>,
    return
  }
  func.func @transform_0(%arg0: i32) -> (i32, i32) {
    %c0_i32 = arith.constant 0 : i32
    %c0_i32_0 = arith.constant 0 : i32
    return %arg0, %c0_i32 : i32, i32
  }
  func.func @transform_1(%arg0: i32) -> (i32, i32) {
    %c0_i32 = arith.constant 0 : i32
    %c0_i32_0 = arith.constant 0 : i32
    %c0_i32_1 = arith.constant 0 : i32
    return %c0_i32, %c0_i32_0 : i32, i32
  }
  func.func @transform_2(%arg0: i32) -> (i32, i32) {
    %c0_i32 = arith.constant 0 : i32
    %c0_i32_0 = arith.constant 0 : i32
    %c0_i32_1 = arith.constant 0 : i32
    return %c0_i32, %c0_i32_0 : i32, i32
  }
  func.func @transform_3(%arg0: i32) -> (i32, i32) {
    %c0_i32 = arith.constant 0 : i32
    %c0_i32_0 = arith.constant 0 : i32
    return %arg0, %c0_i32 : i32, i32
  }
}

module attributes {stable_mosaic.version = 11 : i64} {
  func.func @_matmul_bias_act_kernel(%arg0: i32, %arg1: memref<16x1024xbf16, #tpu.memory_space<vmem>>, %arg2: memref<1024x128xbf16, #tpu.memory_space<vmem>>, %arg3: memref<1x128xf32, #tpu.memory_space<vmem>>, %arg4: memref<16x128xbf16, #tpu.memory_space<vmem>>) attributes {dimension_semantics = [#tpu.dimension_semantics<parallel>], iteration_bounds = array<i64: 2>, scalar_prefetch = 0 : i64, scratch_operands = 0 : i64, tpu.core_type = #tpu.core_type<tc>, window_params = [{transform_indices = @transform_0, window_bounds = array<i64: 16, 1024>}, {pipeline_mode = #tpu.pipeline_mode<synchronous>, transform_indices = @transform_1, window_bounds = array<i64: 1024, 128>}, {pipeline_mode = #tpu.pipeline_mode<synchronous>, transform_indices = @transform_2, window_bounds = array<i64: 1, 128>}, {transform_indices = @transform_3, window_bounds = array<i64: 16, 128>}]} {
    %c0 = arith.constant 0 : index
    %c0_0 = arith.constant 0 : index
    %0 = vector.load %arg1[%c0, %c0_0] : memref<16x1024xbf16, #tpu.memory_space<vmem>>, vector<16x1024xbf16>
    %c0_1 = arith.constant 0 : index
    %c0_2 = arith.constant 0 : index
    %1 = vector.load %arg2[%c0_1, %c0_2] : memref<1024x128xbf16, #tpu.memory_space<vmem>>, vector<1024x128xbf16>
    %cst = arith.constant dense<0.000000e+00> : vector<16x128xf32>
    %2 = tpu.matmul %0, %1, %cst {dimension_numbers = #tpu.dot_dimension_numbers<[1], [0], [0], [1], [0, 0, 1, 1], [], []>} : vector<16x1024xbf16>, vector<1024x128xbf16>, vector<16x128xf32> -> vector<16x128xf32>
    %c0_3 = arith.constant 0 : index
    %c0_4 = arith.constant 0 : index
    %3 = vector.load %arg3[%c0_3, %c0_4] : memref<1x128xf32, #tpu.memory_space<vmem>>, vector<1x128xf32>
    %4 = vector.broadcast %3 : vector<1x128xf32> to vector<16x128xf32>
    %5 = arith.addf %2, %4 : vector<16x128xf32>
    %cst_5 = arith.constant 2.000000e-01 : f32
    %6 = vector.broadcast %cst_5 : f32 to vector<16x128xf32>
    %7 = arith.mulf %6, %5 : vector<16x128xf32>
    %8 = arith.maximumf %5, %7 : vector<16x128xf32>
    %9 = arith.truncf %8 : vector<16x128xf32> to vector<16x128xbf16>
    %c0_6 = arith.constant 0 : index
    %c0_7 = arith.constant 0 : index
    %10 = vector.load %arg4[%c0_6, %c0_7] : memref<16x128xbf16, #tpu.memory_space<vmem>>, vector<16x128xbf16>
    tpu.vector_store %arg4[%c0_6, %c0_7], %9 {strides = array<i32>} : memref<16x128xbf16, #tpu.memory_space<vmem>>, vector<16x128xbf16>,
    return
  }
  func.func @transform_0(%arg0: i32) -> (i32, i32) {
    %c0_i32 = arith.constant 0 : i32
    %c0_i32_0 = arith.constant 0 : i32
    return %arg0, %c0_i32 : i32, i32
  }
  func.func @transform_1(%arg0: i32) -> (i32, i32) {
    %c0_i32 = arith.constant 0 : i32
    %c0_i32_0 = arith.constant 0 : i32
    %c0_i32_1 = arith.constant 0 : i32
    return %c0_i32, %c0_i32_0 : i32, i32
  }
  func.func @transform_2(%arg0: i32) -> (i32, i32) {
    %c0_i32 = arith.constant 0 : i32
    %c0_i32_0 = arith.constant 0 : i32
    %c0_i32_1 = arith.constant 0 : i32
    return %c0_i32, %c0_i32_0 : i32, i32
  }
  func.func @transform_3(%arg0: i32) -> (i32, i32) {
    %c0_i32 = arith.constant 0 : i32
    %c0_i32_0 = arith.constant 0 : i32
    return %arg0, %c0_i32 : i32, i32
  }
}

module attributes {stable_mosaic.version = 11 : i64} {
  func.func @_tail_kernel(%arg0: i32, %arg1: memref<2x1152xbf16, #tpu.memory_space<vmem>>, %arg2: memref<1152x256xbf16, #tpu.memory_space<vmem>>, %arg3: memref<1x256xf32, #tpu.memory_space<vmem>>, %arg4: memref<1x256xf32, #tpu.memory_space<vmem>>, %arg5: memref<1x1xf32, #tpu.memory_space<vmem>>, %arg6: memref<2x1xf32, #tpu.memory_space<vmem>>) attributes {dimension_semantics = [#tpu.dimension_semantics<parallel>], iteration_bounds = array<i64: 1>, scalar_prefetch = 0 : i64, scratch_operands = 0 : i64, tpu.core_type = #tpu.core_type<tc>, window_params = [{transform_indices = @transform_0, window_bounds = array<i64: 2, 1152>}, {pipeline_mode = #tpu.pipeline_mode<synchronous>, transform_indices = @transform_1, window_bounds = array<i64: 1152, 256>}, {pipeline_mode = #tpu.pipeline_mode<synchronous>, transform_indices = @transform_2, window_bounds = array<i64: 1, 256>}, {pipeline_mode = #tpu.pipeline_mode<synchronous>, transform_indices = @transform_3, window_bounds = array<i64: 1, 256>}, {pipeline_mode = #tpu.pipeline_mode<synchronous>, transform_indices = @transform_4, window_bounds = array<i64: 1, 1>}, {transform_indices = @transform_5, window_bounds = array<i64: 2, 1>}]} {
    %c0 = arith.constant 0 : index
    %c0_0 = arith.constant 0 : index
    %0 = vector.load %arg1[%c0, %c0_0] : memref<2x1152xbf16, #tpu.memory_space<vmem>>, vector<2x1152xbf16>
    %c0_1 = arith.constant 0 : index
    %c0_2 = arith.constant 0 : index
    %1 = vector.load %arg2[%c0_1, %c0_2] : memref<1152x256xbf16, #tpu.memory_space<vmem>>, vector<1152x256xbf16>
    %cst = arith.constant dense<0.000000e+00> : vector<2x256xf32>
    %2 = tpu.matmul %0, %1, %cst {dimension_numbers = #tpu.dot_dimension_numbers<[1], [0], [0], [1], [0, 0, 1, 1], [], []>} : vector<2x1152xbf16>, vector<1152x256xbf16>, vector<2x256xf32> -> vector<2x256xf32>
    %c0_3 = arith.constant 0 : index
    %c0_4 = arith.constant 0 : index
    %3 = vector.load %arg3[%c0_3, %c0_4] : memref<1x256xf32, #tpu.memory_space<vmem>>, vector<1x256xf32>
    %4 = vector.broadcast %3 : vector<1x256xf32> to vector<2x256xf32>
    %5 = arith.addf %2, %4 : vector<2x256xf32>
    %cst_5 = arith.constant 2.000000e-01 : f32
    %6 = vector.broadcast %cst_5 : f32 to vector<2x256xf32>
    %7 = arith.mulf %6, %5 : vector<2x256xf32>
    %8 = arith.maximumf %5, %7 : vector<2x256xf32>
    %c0_6 = arith.constant 0 : index
    %c0_7 = arith.constant 0 : index
    %9 = vector.load %arg4[%c0_6, %c0_7] : memref<1x256xf32, #tpu.memory_space<vmem>>, vector<1x256xf32>
    %10 = vector.broadcast %9 : vector<1x256xf32> to vector<2x256xf32>
    %11 = arith.mulf %8, %10 : vector<2x256xf32>
    %cst_8 = arith.constant dense<0.000000e+00> : vector<2xf32>
    %12 = vector.multi_reduction <add>, %11, %cst_8 [1] : vector<2x256xf32> to vector<2xf32>
    %13 = vector.shape_cast %12 : vector<2xf32> to vector<2x1xf32>
    %c0_9 = arith.constant 0 : index
    %c0_10 = arith.constant 0 : index
    %14 = vector.load %arg5[%c0_9, %c0_10] : memref<1x1xf32, #tpu.memory_space<vmem>>, vector<1x1xf32>
    %15 = vector.broadcast %14 : vector<1x1xf32> to vector<2x1xf32>
    %16 = arith.addf %13, %15 : vector<2x1xf32>
    %17 = arith.negf %16 : vector<2x1xf32>
    %18 = math.exp %17 : vector<2x1xf32>
    %cst_11 = arith.constant 1.000000e+00 : f32
    %19 = vector.broadcast %cst_11 : f32 to vector<2x1xf32>
    %20 = arith.addf %19, %18 : vector<2x1xf32>
    %21 = arith.divf %19, %20 : vector<2x1xf32>
    %c0_12 = arith.constant 0 : index
    %c0_13 = arith.constant 0 : index
    %22 = vector.load %arg6[%c0_12, %c0_13] : memref<2x1xf32, #tpu.memory_space<vmem>>, vector<2x1xf32>
    tpu.vector_store %arg6[%c0_12, %c0_13], %21 {strides = array<i32>} : memref<2x1xf32, #tpu.memory_space<vmem>>, vector<2x1xf32>,
    return
  }
  func.func @transform_0(%arg0: i32) -> (i32, i32) {
    %c0_i32 = arith.constant 0 : i32
    %c0_i32_0 = arith.constant 0 : i32
    return %arg0, %c0_i32 : i32, i32
  }
  func.func @transform_1(%arg0: i32) -> (i32, i32) {
    %c0_i32 = arith.constant 0 : i32
    %c0_i32_0 = arith.constant 0 : i32
    %c0_i32_1 = arith.constant 0 : i32
    return %c0_i32, %c0_i32_0 : i32, i32
  }
  func.func @transform_2(%arg0: i32) -> (i32, i32) {
    %c0_i32 = arith.constant 0 : i32
    %c0_i32_0 = arith.constant 0 : i32
    %c0_i32_1 = arith.constant 0 : i32
    return %c0_i32, %c0_i32_0 : i32, i32
  }
  func.func @transform_3(%arg0: i32) -> (i32, i32) {
    %c0_i32 = arith.constant 0 : i32
    %c0_i32_0 = arith.constant 0 : i32
    %c0_i32_1 = arith.constant 0 : i32
    return %c0_i32, %c0_i32_0 : i32, i32
  }
  func.func @transform_4(%arg0: i32) -> (i32, i32) {
    %c0_i32 = arith.constant 0 : i32
    %c0_i32_0 = arith.constant 0 : i32
    %c0_i32_1 = arith.constant 0 : i32
    return %c0_i32, %c0_i32_0 : i32, i32
  }
  func.func @transform_5(%arg0: i32) -> (i32, i32) {
    %c0_i32 = arith.constant 0 : i32
    %c0_i32_0 = arith.constant 0 : i32
    return %arg0, %c0_i32 : i32, i32
  }
}

</mosaic_0001>

<llo_original>
// kernel: distinguish_forward.4
$region0: #{distinguish_forward.4}
  #allocation0 [shape = 'u32[]', space=smem, size = 0x4, offset = 0x4, fixed_abs, tag = 'smem constant byte address 0x4 - core index']
  #allocation1 [shape = 'u32[144,128]{1,0:T(1,128)}', space=vmem, size = 0x12000, scoped, tag = 'internal scratch']
  %s0 = inlined_call_operand.vmem [shape: bf16[392,16], index: 0, kind: input, shape index: {}]
  %s1 = inlined_call_operand.vmem [shape: bf16[16,128], index: 1, kind: input, shape index: {}]
  %s2 = inlined_call_operand.vmem [shape: f32[1,128], index: 2, kind: input, shape index: {}]
  %s3 = inlined_call_operand.vmem [shape: bf16[392,128], index: 3, kind: output, shape index: {}]
  %s4 = sld [smem:[#allocation0]]
  $region89: #{distinguish_forward.4} parent=0
    _
  %s6 = ssub.s32 1, %s4
  %s7 = scalar_select 0, %s6, %s4
  $region1: #{distinguish_forward.4} parent=0
    #allocation2 [shape = 'u8[102400]{0}', space=vmem, size = 0x19000, scoped, tag = 'output window, operand 0']
    loop: start=0, step=1, limit=4
    $region2: #{distinguish_forward.4} parent=1 // loop_pre_header
      _
    $region3: #{distinguish_forward.4} parent=1 // loop_header
      %s9 = sphi 0, %s13
      %p10 = scmp.ge.s32.totalorder %s9, 4
      %s19 = sphi 0, %s21
      %s22 = sphi 0, %s19
      %s23 = sphi 0, %s22
      %s39 = sphi 0, %s23
      %s43 = sphi 0, %s43
      %s45 = sphi 0, %s43
      %s46 = sphi 0, %s45
      %s60 = sphi 0, %s46
      %s64 = sphi 0, %s64
      %s66 = sphi 0, %s64
      %s67 = sphi 0, %s66
      %s81 = sphi 0, %s67
      %s87 = sphi 0, %s89
      %s90 = sphi 0, %s87
      %s91 = sphi 0, %s90
      %s107 = sphi 0, %s91
    $region4: #{distinguish_forward.4} parent=1 // loop_header_branch
      %12 = sbr.rel (%p10) target = $region8
    $region5: #{distinguish_forward.4} parent=1 // loop_body
      %s14 = ssub.s32 %s9, 1
      %s15 = ssub.s32 %s9, 2
      %s16 = sadd.s32 %s9, 1
      %s17 = ssub.s32 %s9, %s16
      %p18 = scmp.eq.s32.totalorder %s17, 0
      %s20 = sadd.s32 %s19, 1
      %s21 = scalar_select %p18, %s19, %s20
      %p24 = pneg %p18
      %p25 = scmp.eq.s32.totalorder %s9, 1
      %p26 = por %p24, %p25
      %p27 = scmp.ne.s32.totalorder %s19, %s22
      %p28 = scmp.eq.s32.totalorder %s9, 0
      %p29 = por %p27, %p28
      %p30 = scmp.ne.s32.totalorder %s19, %s22
      %p31 = scmp.eq.s32.totalorder %s14, 1
      %p32 = por %p30, %p31
      %p33 = scmp.ne.s32.totalorder %s22, %s23
      %p34 = scmp.eq.s32.totalorder %s14, 0
      %p35 = por %p33, %p34
      %p36 = scmp.ne.s32.totalorder %s22, %s23
      %p37 = scmp.eq.s32.totalorder %s15, 1
      %p38 = por %p36, %p37
      %p40 = scmp.ne.s32.totalorder %s23, %s39
      %p41 = scmp.eq.s32.totalorder %s15, 0
      %p42 = por %p40, %p41
      %s44 = sadd.s32 %s43, 1
      %p47 = scmp.eq.s32.totalorder %s9, 1
      %p48 = scmp.ne.s32.totalorder %s43, %s45
      %p49 = scmp.eq.s32.totalorder %s9, 0
      %p50 = por %p48, %p49
      %p51 = scmp.ne.s32.totalorder %s43, %s45
      %p52 = scmp.eq.s32.totalorder %s14, 1
      %p53 = por %p51, %p52
      %p54 = scmp.ne.s32.totalorder %s45, %s46
      %p55 = scmp.eq.s32.totalorder %s14, 0
      %p56 = por %p54, %p55
      %p57 = scmp.ne.s32.totalorder %s45, %s46
      %p58 = scmp.eq.s32.totalorder %s15, 1
      %p59 = por %p57, %p58
      %p61 = scmp.ne.s32.totalorder %s46, %s60
      %p62 = scmp.eq.s32.totalorder %s15, 0
      %p63 = por %p61, %p62
      %s65 = sadd.s32 %s64, 1
      %p68 = scmp.eq.s32.totalorder %s9, 1
      %p69 = scmp.ne.s32.totalorder %s64, %s66
      %p70 = scmp.eq.s32.totalorder %s9, 0
      %p71 = por %p69, %p70
      %p72 = scmp.ne.s32.totalorder %s64, %s66
      %p73 = scmp.eq.s32.totalorder %s14, 1
      %p74 = por %p72, %p73
      %p75 = scmp.ne.s32.totalorder %s66, %s67
      %p76 = scmp.eq.s32.totalorder %s14, 0
      %p77 = por %p75, %p76
      %p78 = scmp.ne.s32.totalorder %s66, %s67
      %p79 = scmp.eq.s32.totalorder %s15, 1
      %p80 = por %p78, %p79
      %p82 = scmp.ne.s32.totalorder %s67, %s81
      %p83 = scmp.eq.s32.totalorder %s15, 0
      %p84 = por %p82, %p83
      %s85 = ssub.s32 %s9, %s16
      %p86 = scmp.eq.s32.totalorder %s85, 0
      %s88 = sadd.s32 %s87, 1
      %s89 = scalar_select %p86, %s87, %s88
      %p92 = pneg %p86
      %p93 = scmp.eq.s32.totalorder %s9, 1
      %p94 = por %p92, %p93
      %p95 = scmp.ne.s32.totalorder %s87, %s90
      %p96 = scmp.eq.s32.totalorder %s9, 0
      %p97 = por %p95, %p96
      %p98 = scmp.ne.s32.totalorder %s87, %s90
      %p99 = scmp.eq.s32.totalorder %s14, 1
      %p100 = por %p98, %p99
      %p101 = scmp.ne.s32.totalorder %s90, %s91
      %p102 = scmp.eq.s32.totalorder %s14, 0
      %p103 = por %p101, %p102
      %p104 = scmp.ne.s32.totalorder %s90, %s91
      %p105 = scmp.eq.s32.totalorder %s15, 1
      %p106 = por %p104, %p105
      %p108 = scmp.ne.s32.totalorder %s91, %s107
      %p109 = scmp.eq.s32.totalorder %s15, 0
      %p110 = por %p108, %p109
      %p111 = scmp.le.s32.totalorder 1, %s9
      %p112 = scmp.lt.s32.totalorder %s9, 3
      %p113 = pnand %p111, %p112
      %p114 = pneg %p113
      // Predicated region
      $region9: #{distinguish_forward.4} parent=5 // pred_check
        _
      $region10: #{distinguish_forward.4} parent=5 // pred_check_branch
        %116 = sbr.rel (%p113) target = $region12
      $region11: #{distinguish_forward.4} parent=5 // pred_region
        %s117 = ssub.s32 %s9, 1
        // Predicated region
        $region13: #{distinguish_forward.4} parent=11 // pred_check
          %p118 = pneg %p56
        $region14: #{distinguish_forward.4} parent=11 // pred_check_branch
          %120 = sbr.rel (%p118) target = $region16
        $region15: #{distinguish_forward.4} parent=11 // pred_region
          _
        $region16: #{distinguish_forward.4} parent=11 // pred_fallthru
          _
        // Predicated region
        $region17: #{distinguish_forward.4} parent=11 // pred_check
          %p121 = pneg %p77
        $region18: #{distinguish_forward.4} parent=11 // pred_check_branch
          %123 = sbr.rel (%p121) target = $region20
        $region19: #{distinguish_forward.4} parent=11 // pred_region
          _
        $region20: #{distinguish_forward.4} parent=11 // pred_fallthru
          _
      $region12: #{distinguish_forward.4} parent=5 // pred_fallthru
        _
      %p124 = scmp.lt.s32.totalorder %s9, 2
      // Predicated region
      $region21: #{distinguish_forward.4} parent=5 // pred_check
        %p125 = pneg %p124
      $region22: #{distinguish_forward.4} parent=5 // pred_check_branch
        %127 = sbr.rel (%p125) target = $region24
      $region23: #{distinguish_forward.4} parent=5 // pred_region
        // Predicated region
        $region25: #{distinguish_forward.4} parent=23 // pred_check
          %p128 = pneg %p29
        $region26: #{distinguish_forward.4} parent=23 // pred_check_branch
          %130 = sbr.rel (%p128) target = $region28
        $region27: #{distinguish_forward.4} parent=23 // pred_region
          %s131 = smul.u32 25, %s9
          %s132 = ssub.s32 49, %s131
          %p133 = scmp.lt.s32.totalorder %s132, 25
          %s134 = scalar_select %p133, %s132, 25
          %s135 = smul.u32 64, %s134
          %p136 = scmp.lt.s32.totalorder %s131, 48
          %s137 = scalar_select %p136, %s131, 48
          %s138 = smul.addr %s137, 4
          %s139 = scalar_lea.vmem %s0, %s138
          %s140 = smul.u32 25, %s9
          %s141 = ssub.s32 49, %s140
          %p142 = scmp.lt.s32.totalorder %s141, 25
          %s143 = scalar_select %p142, %s141, 25
          %s144 = smul.u32 64, %s143
        $region28: #{distinguish_forward.4} parent=23 // pred_fallthru
          _
      $region24: #{distinguish_forward.4} parent=5 // pred_fallthru
        _
      %p145 = scmp.le.s32.totalorder 1, %s9
      %p146 = scmp.lt.s32.totalorder %s9, 3
      %p147 = pnand %p145, %p146
      %p148 = pneg %p147
      // Predicated region
      $region29: #{distinguish_forward.4} parent=5 // pred_check
        _
      $region30: #{distinguish_forward.4} parent=5 // pred_check_branch
        %150 = sbr.rel (%p147) target = $region32
      $region31: #{distinguish_forward.4} parent=5 // pred_region
        %s151 = ssub.s32 %s9, 1
        %s152 = smul.u32 25, %s14
        %s153 = ssub.s32 49, %s152
        %p154 = scmp.lt.s32.totalorder %s153, 25
        %s155 = scalar_select %p154, %s153, 25
        %s156 = smul.u32 64, %s155
        %p157 = scmp.lt.s32.totalorder %s152, 48
        %s158 = scalar_select %p157, %s152, 48
        %s159 = smul.addr %s158, 4
        %s160 = scalar_lea.vmem %s0, %s159
        %p161 = pneg %p35
        %p162 = pneg %p32
        %p163 = pneg %p56
        %p164 = pneg %p53
        %p165 = pneg %p77
        %p166 = pneg %p74
        %p167 = pneg %p103
        %p168 = pneg %p100
        %s169 = sand.u32 %s90, 1
        %s170 = sand.u32 %s90, 1
        %s171 = smul.addr %s170, 100
        %s172 = scalar_lea.vmem [#allocation2], %s171
        %s173 = smul.u32 25, %s14
        %s174 = ssub.s32 49, %s173
        %p175 = scmp.lt.s32.totalorder %s174, 25
        %s176 = scalar_select %p175, %s174, 25
        %s177 = smul.u32 64, %s176
        %p178 = scmp.lt.s32.totalorder %s173, 48
        %s179 = scalar_select %p178, %s173, 48
        %s180 = smul.addr %s179, 4
        %s181 = scalar_lea.vmem %s0, %s180
        %s182 = smul.u32 25, %s14
        %s183 = ssub.s32 49, %s182
        %p184 = scmp.lt.s32.totalorder %s183, 25
        %s185 = scalar_select %p184, %s183, 25
        %s186 = smul.u32 64, %s185
        %s187 = smul.u32 25, %s14
        %s188 = ssub.s32 49, %s187
        %p189 = scmp.lt.s32.totalorder %s188, 25
        %s190 = scalar_select %p189, %s188, 25
        %s191 = smul.u32 64, %s190
        %v193 = vld [vmem:[%s181] sm:$0xf]
        %v194 = vld [vmem:[%s181 + $0x4] sm:$0xf]
        %v195 = vld [vmem:[%s181 + $0x8] sm:$0xf]
        %v196 = vld [vmem:[%s181 + $0xc] sm:$0xf]
        %v197 = vld [vmem:[%s181 + $0x10] sm:$0xf]
        %v198 = vld [vmem:[%s181 + $0x14] sm:$0xf]
        %v199 = vld [vmem:[%s181 + $0x18] sm:$0xf]
        %v200 = vld [vmem:[%s181 + $0x1c] sm:$0xf]
        %v201 = vld [vmem:[%s181 + $0x20] sm:$0xf]
        %v202 = vld [vmem:[%s181 + $0x24] sm:$0xf]
        %v203 = vld [vmem:[%s181 + $0x28] sm:$0xf]
        %v204 = vld [vmem:[%s181 + $0x2c] sm:$0xf]
        %v205 = vld [vmem:[%s181 + $0x30] sm:$0xf]
        %v206 = vld [vmem:[%s181 + $0x34] sm:$0xf]
        %v207 = vld [vmem:[%s181 + $0x38] sm:$0xf]
        %v208 = vld [vmem:[%s181 + $0x3c] sm:$0xf]
        %v209 = vld [vmem:[%s181 + $0x40] sm:$0xf]
        %v210 = vld [vmem:[%s181 + $0x44] sm:$0xf]
        %v211 = vld [vmem:[%s181 + $0x48] sm:$0xf]
        %v212 = vld [vmem:[%s181 + $0x4c] sm:$0xf]
        %v213 = vld [vmem:[%s181 + $0x50] sm:$0xf]
        %v214 = vld [vmem:[%s181 + $0x54] sm:$0xf]
        %v215 = vld [vmem:[%s181 + $0x58] sm:$0xf]
        %v216 = vld [vmem:[%s181 + $0x5c] sm:$0xf]
        %v217 = vld [vmem:[%s181 + $0x60] sm:$0xf]
        %v218 = vld [vmem:[%s1] sm:$0xf]
        %v219 = vld [vmem:[%s1 + $0x4] sm:$0xf]
        %v220 = vld [vmem:[%s2] sm:$0x1]
        %v222 = vlaneseq
        %v223 = vshrl.u32 %v222, 7
        %v224 = vsub.s32 0, %v223
        %v225 = vrot.slane %v220, %v224
        %v252 = vunpack.c.l.b16 %v193
        %v253 = vunpack.c.l.b16 %v194
        %v254 = vunpack.c.l.b16 %v195
        %v255 = vunpack.c.l.b16 %v196
        %v256 = vunpack.c.l.b16 %v197
        %v257 = vunpack.c.l.b16 %v198
        %v258 = vunpack.c.l.b16 %v199
        %v259 = vunpack.c.l.b16 %v200
        %v260 = vunpack.c.l.b16 %v201
        %v261 = vunpack.c.l.b16 %v202
        %v262 = vunpack.c.l.b16 %v203
        %v263 = vunpack.c.l.b16 %v204
        %v264 = vunpack.c.l.b16 %v205
        %v265 = vunpack.c.l.b16 %v206
        %v266 = vunpack.c.l.b16 %v207
        %v267 = vunpack.c.l.b16 %v208
        %v268 = vunpack.c.l.b16 %v209
        %v269 = vunpack.c.l.b16 %v210
        %v270 = vunpack.c.l.b16 %v211
        %v271 = vunpack.c.l.b16 %v212
        %v272 = vunpack.c.l.b16 %v213
        %v273 = vunpack.c.l.b16 %v214
        %v274 = vunpack.c.l.b16 %v215
        %v275 = vunpack.c.l.b16 %v216
        %v276 = vunpack.c.l.b16 %v217
        %v277 = vpack.c.b16 %v253, %v252
        %v278 = vpack.c.b16 %v255, %v254
        %v279 = vpack.c.b16 %v257, %v256
        %v280 = vpack.c.b16 %v259, %v258
        %v281 = vpack.c.b16 %v261, %v260
        %v282 = vpack.c.b16 %v263, %v262
        %v283 = vpack.c.b16 %v265, %v264
        %v284 = vpack.c.b16 %v267, %v266
        %v285 = vpack.c.b16 %v269, %v268
        %v286 = vpack.c.b16 %v271, %v270
        %v287 = vpack.c.b16 %v273, %v272
        %v288 = vpack.c.b16 %v275, %v274
        %v289 = vpack.c.b16 %v276, %v276
        %v292 = vunpack.c.l.b16 %v218
        %v293 = vunpack.c.l.b16 %v219
        %v294 = vpack.c.b16 %v293, %v292
        %vm296 = vcmask 130048
        %v298 = vsel %vm296, %v277, 0
        %v301 = vsel %vm296, %v278, 0
        %v304 = vsel %vm296, %v279, 0
        %v307 = vsel %vm296, %v280, 0
        %v310 = vsel %vm296, %v281, 0
        %v313 = vsel %vm296, %v282, 0
        %v316 = vsel %vm296, %v283, 0
        %v319 = vsel %vm296, %v284, 0
        %v322 = vsel %vm296, %v285, 0
        %v325 = vsel %vm296, %v286, 0
        %v328 = vsel %vm296, %v287, 0
        %v331 = vsel %vm296, %v288, 0
        %v334 = vsel %vm296, %v289, 0
        %336 = vmatprep.subr.bf16.mxu0 0
        %337 = vmatpush1.bf16.msra.mxu0 %v294
        %338 = vmatprep.subr.bf16.mxu0 0
        %339 = vmatpush1.bf16.msra.mxu0 0
        %340 = vmatprep.subr.bf16.mxu0 0
        %341 = vmatpush1.bf16.msra.mxu0 0
        %342 = vmatprep.subr.bf16.mxu0 0
        %343 = vmatpush1.bf16.msra.mxu0 0
        %344 = vmatprep.subr.bf16.mxu0 0
        %345 = vmatpush1.bf16.msra.mxu0 0
        %346 = vmatprep.subr.bf16.mxu0 0
        %347 = vmatpush1.bf16.msra.mxu0 0
        %348 = vmatprep.subr.bf16.mxu0 0
        %349 = vmatpush1.bf16.msra.mxu0 0
        %350 = vmatprep.subr.bf16.mxu0 0
        %351 = vmatpush1.bf16.msra.mxu0 0
        %352 = vmatprep.subr.bf16.mxu0 0
        %353 = vmatpush1.bf16.msra.mxu0 0
        %354 = vmatprep.subr.bf16.mxu0 0
        %355 = vmatpush1.bf16.msra.mxu0 0
        %356 = vmatprep.subr.bf16.mxu0 0
        %357 = vmatpush1.bf16.msra.mxu0 0
        %358 = vmatprep.subr.bf16.mxu0 0
        %359 = vmatpush1.bf16.msra.mxu0 0
        %360 = vmatprep.subr.bf16.mxu0 0
        %361 = vmatpush1.bf16.msra.mxu0 0
        %362 = vmatprep.subr.bf16.mxu0 0
        %363 = vmatpush1.bf16.msra.mxu0 0
        %364 = vmatprep.subr.bf16.mxu0 0
        %365 = vmatpush1.bf16.msra.mxu0 0
        %366 = vmatprep.subr.bf16.mxu0 0
        %367 = vmatpush1.bf16.msra.mxu0 0
        %368 = vmatprep.mubr.bf16.mxu0 0
        %369 = vmatmul.mubr.bf16.gmra.mrb[0].mxu0 %v298
        %v370 = vpop.f32.mrb[0].mxu0
        %v371 = vadd.f32 %v225, %v370
        %v372 = vpop.f32.mrb[0].mxu0
        %v373 = vpop.f32.mrb[0].mxu0
        %v374 = vadd.f32 %v225, %v373
        %v375 = vpop.f32.mrb[0].mxu0
        %376 = vmatprep.mubr.bf16.mxu0 0
        %377 = vmatmul.mubr.bf16.gmra.mrb[0].mxu0 %v301
        %v378 = vpop.f32.mrb[0].mxu0
        %v379 = vadd.f32 %v225, %v378
        %v380 = vpop.f32.mrb[0].mxu0
        %v381 = vpop.f32.mrb[0].mxu0
        %v382 = vadd.f32 %v225, %v381
        %v383 = vpop.f32.mrb[0].mxu0
        %384 = vmatprep.mubr.bf16.mxu0 0
        %385 = vmatmul.mubr.bf16.gmra.mrb[0].mxu0 %v304
        %v386 = vpop.f32.mrb[0].mxu0
        %v387 = vadd.f32 %v225, %v386
        %v388 = vpop.f32.mrb[0].mxu0
        %v389 = vpop.f32.mrb[0].mxu0
        %v390 = vadd.f32 %v225, %v389
        %v391 = vpop.f32.mrb[0].mxu0
        %392 = vmatprep.mubr.bf16.mxu0 0
        %393 = vmatmul.mubr.bf16.gmra.mrb[0].mxu0 %v307
        %v394 = vpop.f32.mrb[0].mxu0
        %v395 = vadd.f32 %v225, %v394
        %v396 = vpop.f32.mrb[0].mxu0
        %v397 = vpop.f32.mrb[0].mxu0
        %v398 = vadd.f32 %v225, %v397
        %v399 = vpop.f32.mrb[0].mxu0
        %400 = vmatprep.mubr.bf16.mxu0 0
        %401 = vmatmul.mubr.bf16.gmra.mrb[0].mxu0 %v310
        %v402 = vpop.f32.mrb[0].mxu0
        %v403 = vadd.f32 %v225, %v402
        %v404 = vpop.f32.mrb[0].mxu0
        %v405 = vpop.f32.mrb[0].mxu0
        %v406 = vadd.f32 %v225, %v405
        %v407 = vpop.f32.mrb[0].mxu0
        %408 = vmatprep.mubr.bf16.mxu0 0
        %409 = vmatmul.mubr.bf16.gmra.mrb[0].mxu0 %v313
        %v410 = vpop.f32.mrb[0].mxu0
        %v411 = vadd.f32 %v225, %v410
        %v412 = vpop.f32.mrb[0].mxu0
        %v413 = vpop.f32.mrb[0].mxu0
        %v414 = vadd.f32 %v225, %v413
        %v415 = vpop.f32.mrb[0].mxu0
        %416 = vmatprep.mubr.bf16.mxu0 0
        %417 = vmatmul.mubr.bf16.gmra.mrb[0].mxu0 %v316
        %v418 = vpop.f32.mrb[0].mxu0
        %v419 = vadd.f32 %v225, %v418
        %v420 = vpop.f32.mrb[0].mxu0
        %v421 = vpop.f32.mrb[0].mxu0
        %v422 = vadd.f32 %v225, %v421
        %v423 = vpop.f32.mrb[0].mxu0
        %424 = vmatprep.mubr.bf16.mxu0 0
        %425 = vmatmul.mubr.bf16.gmra.mrb[0].mxu0 %v319
        %v426 = vpop.f32.mrb[0].mxu0
        %v427 = vadd.f32 %v225, %v426
        %v428 = vpop.f32.mrb[0].mxu0
        %v429 = vpop.f32.mrb[0].mxu0
        %v430 = vadd.f32 %v225, %v429
        %v431 = vpop.f32.mrb[0].mxu0
        %432 = vmatprep.mubr.bf16.mxu0 0
        %433 = vmatmul.mubr.bf16.gmra.mrb[0].mxu0 %v322
        %v434 = vpop.f32.mrb[0].mxu0
        %v435 = vadd.f32 %v225, %v434
        %v436 = vpop.f32.mrb[0].mxu0
        %v437 = vpop.f32.mrb[0].mxu0
        %v438 = vadd.f32 %v225, %v437
        %v439 = vpop.f32.mrb[0].mxu0
        %440 = vmatprep.mubr.bf16.mxu0 0
        %441 = vmatmul.mubr.bf16.gmra.mrb[0].mxu0 %v325
        %v442 = vpop.f32.mrb[0].mxu0
        %v443 = vadd.f32 %v225, %v442
        %v444 = vpop.f32.mrb[0].mxu0
        %v445 = vpop.f32.mrb[0].mxu0
        %v446 = vadd.f32 %v225, %v445
        %v447 = vpop.f32.mrb[0].mxu0
        %448 = vmatprep.mubr.bf16.mxu0 0
        %449 = vmatmul.mubr.bf16.gmra.mrb[0].mxu0 %v328
        %v450 = vpop.f32.mrb[0].mxu0
        %v451 = vadd.f32 %v225, %v450
        %v452 = vpop.f32.mrb[0].mxu0
        %v453 = vpop.f32.mrb[0].mxu0
        %v454 = vadd.f32 %v225, %v453
        %v455 = vpop.f32.mrb[0].mxu0
        %456 = vmatprep.mubr.bf16.mxu0 0
        %457 = vmatmul.mubr.bf16.gmra.mrb[0].mxu0 %v331
        %v458 = vpop.f32.mrb[0].mxu0
        %v459 = vadd.f32 %v225, %v458
        %v460 = vpop.f32.mrb[0].mxu0
        %v461 = vpop.f32.mrb[0].mxu0
        %v462 = vadd.f32 %v225, %v461
        %v463 = vpop.f32.mrb[0].mxu0
        %464 = vmatprep.mubr.bf16.mxu0 0
        %465 = vmatmul.mubr.bf16.gmra.mrb[0].mxu0 %v334
        %v466 = vpop.f32.mrb[0].mxu0
        %v467 = vadd.f32 %v225, %v466
        %v468 = vpop.f32.mrb[0].mxu0
        %v469 = vpop.f32.mrb[0].mxu0
        %v470 = vpop.f32.mrb[0].mxu0
        %471 = vdwg.mxu0
        %v472 = vmul.f32 %v371, 0.2
        %v473 = vmul.f32 %v374, 0.2
        %v474 = vmul.f32 %v379, 0.2
        %v475 = vmul.f32 %v382, 0.2
        %v476 = vmul.f32 %v387, 0.2
        %v477 = vmul.f32 %v390, 0.2
        %v478 = vmul.f32 %v395, 0.2
        %v479 = vmul.f32 %v398, 0.2
        %v480 = vmul.f32 %v403, 0.2
        %v481 = vmul.f32 %v406, 0.2
        %v482 = vmul.f32 %v411, 0.2
        %v483 = vmul.f32 %v414, 0.2
        %v484 = vmul.f32 %v419, 0.2
        %v485 = vmul.f32 %v422, 0.2
        %v486 = vmul.f32 %v427, 0.2
        %v487 = vmul.f32 %v430, 0.2
        %v488 = vmul.f32 %v435, 0.2
        %v489 = vmul.f32 %v438, 0.2
        %v490 = vmul.f32 %v443, 0.2
        %v491 = vmul.f32 %v446, 0.2
        %v492 = vmul.f32 %v451, 0.2
        %v493 = vmul.f32 %v454, 0.2
        %v494 = vmul.f32 %v459, 0.2
        %v495 = vmul.f32 %v462, 0.2
        %v496 = vmul.f32 %v467, 0.2
        %v497 = vmax.f32 %v371, %v472
        %v498 = vmax.f32 %v374, %v473
        %v499 = vmax.f32 %v379, %v474
        %v500 = vmax.f32 %v382, %v475
        %v501 = vmax.f32 %v387, %v476
        %v502 = vmax.f32 %v390, %v477
        %v503 = vmax.f32 %v395, %v478
        %v504 = vmax.f32 %v398, %v479
        %v505 = vmax.f32 %v403, %v480
        %v506 = vmax.f32 %v406, %v481
        %v507 = vmax.f32 %v411, %v482
        %v508 = vmax.f32 %v414, %v483
        %v509 = vmax.f32 %v419, %v484
        %v510 = vmax.f32 %v422, %v485
        %v511 = vmax.f32 %v427, %v486
        %v512 = vmax.f32 %v430, %v487
        %v513 = vmax.f32 %v435, %v488
        %v514 = vmax.f32 %v438, %v489
        %v515 = vmax.f32 %v443, %v490
        %v516 = vmax.f32 %v446, %v491
        %v517 = vmax.f32 %v451, %v492
        %v518 = vmax.f32 %v454, %v493
        %v519 = vmax.f32 %v459, %v494
        %v520 = vmax.f32 %v462, %v495
        %v521 = vmax.f32 %v467, %v496
        %v522 = vpack.c.bf16 %v498, %v497
        %v523 = vpack.c.bf16 %v500, %v499
        %v524 = vpack.c.bf16 %v502, %v501
        %v525 = vpack.c.bf16 %v504, %v503
        %v526 = vpack.c.bf16 %v506, %v505
        %v527 = vpack.c.bf16 %v508, %v507
        %v528 = vpack.c.bf16 %v510, %v509
        %v529 = vpack.c.bf16 %v512, %v511
        %v530 = vpack.c.bf16 %v514, %v513
        %v531 = vpack.c.bf16 %v516, %v515
        %v532 = vpack.c.bf16 %v518, %v517
        %v533 = vpack.c.bf16 %v520, %v519
        %v534 = vpack.c.bf16 %v521, %v521
        %v548 = vunpack.c.l.b16 %v522
        %v549 = vunpack.c.h.b16 %v522
        %v550 = vunpack.c.l.b16 %v523
        %v551 = vunpack.c.h.b16 %v523
        %v552 = vunpack.c.l.b16 %v524
        %v553 = vunpack.c.h.b16 %v524
        %v554 = vunpack.c.l.b16 %v525
        %v555 = vunpack.c.h.b16 %v525
        %v556 = vunpack.c.l.b16 %v526
        %v557 = vunpack.c.h.b16 %v526
        %v558 = vunpack.c.l.b16 %v527
        %v559 = vunpack.c.h.b16 %v527
        %v560 = vunpack.c.l.b16 %v528
        %v561 = vunpack.c.h.b16 %v528
        %v562 = vunpack.c.l.b16 %v529
        %v563 = vunpack.c.h.b16 %v529
        %v564 = vunpack.c.l.b16 %v530
        %v565 = vunpack.c.h.b16 %v530
        %v566 = vunpack.c.l.b16 %v531
        %v567 = vunpack.c.h.b16 %v531
        %v568 = vunpack.c.l.b16 %v532
        %v569 = vunpack.c.h.b16 %v532
        %v570 = vunpack.c.l.b16 %v533
        %v571 = vunpack.c.h.b16 %v533
        %v572 = vunpack.c.l.b16 %v534
        %v573 = vpack.c.b16 %v548, %v548
        %v574 = vpack.c.b16 %v549, %v549
        %v575 = vpack.c.b16 %v550, %v550
        %v576 = vpack.c.b16 %v551, %v551
        %v577 = vpack.c.b16 %v552, %v552
        %v578 = vpack.c.b16 %v553, %v553
        %v579 = vpack.c.b16 %v554, %v554
        %v580 = vpack.c.b16 %v555, %v555
        %v581 = vpack.c.b16 %v556, %v556
        %v582 = vpack.c.b16 %v557, %v557
        %v583 = vpack.c.b16 %v558, %v558
        %v584 = vpack.c.b16 %v559, %v559
        %v585 = vpack.c.b16 %v560, %v560
        %v586 = vpack.c.b16 %v561, %v561
        %v587 = vpack.c.b16 %v562, %v562
        %v588 = vpack.c.b16 %v563, %v563
        %v589 = vpack.c.b16 %v564, %v564
        %v590 = vpack.c.b16 %v565, %v565
        %v591 = vpack.c.b16 %v566, %v566
        %v592 = vpack.c.b16 %v567, %v567
        %v593 = vpack.c.b16 %v568, %v568
        %v594 = vpack.c.b16 %v569, %v569
        %v595 = vpack.c.b16 %v570, %v570
        %v596 = vpack.c.b16 %v571, %v571
        %v597 = vpack.c.b16 %v572, %v572
        %623 = vst [vmem:[%s172] sm:$0xf] %v573
        %624 = vst [vmem:[%s172 + $0x4] sm:$0xf] %v574
        %625 = vst [vmem:[%s172 + $0x8] sm:$0xf] %v575
        %626 = vst [vmem:[%s172 + $0xc] sm:$0xf] %v576
        %627 = vst [vmem:[%s172 + $0x10] sm:$0xf] %v577
        %628 = vst [vmem:[%s172 + $0x14] sm:$0xf] %v578
        %629 = vst [vmem:[%s172 + $0x18] sm:$0xf] %v579
        %630 = vst [vmem:[%s172 + $0x1c] sm:$0xf] %v580
        %631 = vst [vmem:[%s172 + $0x20] sm:$0xf] %v581
        %632 = vst [vmem:[%s172 + $0x24] sm:$0xf] %v582
        %633 = vst [vmem:[%s172 + $0x28] sm:$0xf] %v583
        %634 = vst [vmem:[%s172 + $0x2c] sm:$0xf] %v584
        %635 = vst [vmem:[%s172 + $0x30] sm:$0xf] %v585
        %636 = vst [vmem:[%s172 + $0x34] sm:$0xf] %v586
        %637 = vst [vmem:[%s172 + $0x38] sm:$0xf] %v587
        %638 = vst [vmem:[%s172 + $0x3c] sm:$0xf] %v588
        %639 = vst [vmem:[%s172 + $0x40] sm:$0xf] %v589
        %640 = vst [vmem:[%s172 + $0x44] sm:$0xf] %v590
        %641 = vst [vmem:[%s172 + $0x48] sm:$0xf] %v591
        %642 = vst [vmem:[%s172 + $0x4c] sm:$0xf] %v592
        %643 = vst [vmem:[%s172 + $0x50] sm:$0xf] %v593
        %644 = vst [vmem:[%s172 + $0x54] sm:$0xf] %v594
        %645 = vst [vmem:[%s172 + $0x58] sm:$0xf] %v595
        %646 = vst [vmem:[%s172 + $0x5c] sm:$0xf] %v596
        %647 = vst [vmem:[%s172 + $0x60] sm:$0xf] %v597
        %s648 = sand.u32 %s90, 1
        %s649 = sand.u32 %s90, 1
        %s650 = smul.addr %s649, 100
        %s651 = scalar_lea.vmem [#allocation2], %s650
        // Predicated region
        $region33: #{distinguish_forward.4} parent=31 // pred_check
          %p652 = pneg %p100
        $region34: #{distinguish_forward.4} parent=31 // pred_check_branch
          %654 = sbr.rel (%p652) target = $region36
        $region35: #{distinguish_forward.4} parent=31 // pred_region
          %s655 = smul.u32 25, %s14
          %s656 = ssub.s32 49, %s655
          %p657 = scmp.lt.s32.totalorder %s656, 25
          %s658 = scalar_select %p657, %s656, 25
          %s659 = smul.u32 64, %s658
          %p660 = scmp.ne.s32.totalorder 0, %s659
          %s661 = smul.addr %s655, 4
          %s662 = scalar_lea.vmem %s3, %s661
          // Predicated region
          $region37: #{distinguish_forward.4} parent=35 // pred_check
            %p663 = pneg %p660
          $region38: #{distinguish_forward.4} parent=35 // pred_check_branch
            %665 = sbr.rel (%p663) target = $region40
          $region39: #{distinguish_forward.4} parent=35 // pred_region
            // Predicated region
            $region41: #{distinguish_forward.4} parent=39 // pred_check
              _
            $region42: #{distinguish_forward.4} parent=39 // pred_check_branch
              %667 = sbr.rel target = $region44
            $region43: #{distinguish_forward.4} parent=39 // pred_region
              // Predicated region
              $region63: #{distinguish_forward.4} parent=43 // pred_check
                _
              $region64: #{distinguish_forward.4} parent=43 // pred_check_branch
                %765 = sbr.rel (0) target = $region66
              $region65: #{distinguish_forward.4} parent=43 // pred_region
                %s767 = sdiv.u32.pop %s658, 25
                %s768 = srem.u32.pop %s658, 25
                // While loop
                $region67: #{distinguish_forward.4} parent=65 // loop_pre_header
                  _
                $region68: #{distinguish_forward.4} parent=65 // loop_header
                  %s770 = sphi 0, %s772
                  %p771 = scmp.ge.s32.totalorder %s770, %s767
                  %s775 = sphi 0, %s830
                  %s776 = sphi %s651, %s833
                  %s777 = sphi %s662, %s834
                $region69: #{distinguish_forward.4} parent=65 // loop_header_branch
                  %774 = sbr.rel (%p771) target = $region73
                $region70: #{distinguish_forward.4} parent=65 // loop_body
                  %v778 = vld [vmem:[%s776] sm:$0xf]
                  %779 = vst [vmem:[%s777] sm:$0xf] %v778
                  %v780 = vld [vmem:[%s776 + $0x4] sm:$0xf]
                  %781 = vst [vmem:[%s777 + $0x4] sm:$0xf] %v780
                  %v782 = vld [vmem:[%s776 + $0x8] sm:$0xf]
                  %783 = vst [vmem:[%s777 + $0x8] sm:$0xf] %v782
                  %v784 = vld [vmem:[%s776 + $0xc] sm:$0xf]
                  %785 = vst [vmem:[%s777 + $0xc] sm:$0xf] %v784
                  %v786 = vld [vmem:[%s776 + $0x10] sm:$0xf]
                  %787 = vst [vmem:[%s777 + $0x10] sm:$0xf] %v786
                  %v788 = vld [vmem:[%s776 + $0x14] sm:$0xf]
                  %789 = vst [vmem:[%s777 + $0x14] sm:$0xf] %v788
                  %v790 = vld [vmem:[%s776 + $0x18] sm:$0xf]
                  %791 = vst [vmem:[%s777 + $0x18] sm:$0xf] %v790
                  %v792 = vld [vmem:[%s776 + $0x1c] sm:$0xf]
                  %793 = vst [vmem:[%s777 + $0x1c] sm:$0xf] %v792
                  %v794 = vld [vmem:[%s776 + $0x20] sm:$0xf]
                  %795 = vst [vmem:[%s777 + $0x20] sm:$0xf] %v794
                  %v796 = vld [vmem:[%s776 + $0x24] sm:$0xf]
                  %797 = vst [vmem:[%s777 + $0x24] sm:$0xf] %v796
                  %v798 = vld [vmem:[%s776 + $0x28] sm:$0xf]
                  %799 = vst [vmem:[%s777 + $0x28] sm:$0xf] %v798
                  %v800 = vld [vmem:[%s776 + $0x2c] sm:$0xf]
                  %801 = vst [vmem:[%s777 + $0x2c] sm:$0xf] %v800
                  %v802 = vld [vmem:[%s776 + $0x30] sm:$0xf]
                  %803 = vst [vmem:[%s777 + $0x30] sm:$0xf] %v802
                  %v804 = vld [vmem:[%s776 + $0x34] sm:$0xf]
                  %805 = vst [vmem:[%s777 + $0x34] sm:$0xf] %v804
                  %v806 = vld [vmem:[%s776 + $0x38] sm:$0xf]
                  %807 = vst [vmem:[%s777 + $0x38] sm:$0xf] %v806
                  %v808 = vld [vmem:[%s776 + $0x3c] sm:$0xf]
                  %809 = vst [vmem:[%s777 + $0x3c] sm:$0xf] %v808
                  %v810 = vld [vmem:[%s776 + $0x40] sm:$0xf]
                  %811 = vst [vmem:[%s777 + $0x40] sm:$0xf] %v810
                  %v812 = vld [vmem:[%s776 + $0x44] sm:$0xf]
                  %813 = vst [vmem:[%s777 + $0x44] sm:$0xf] %v812
                  %v814 = vld [vmem:[%s776 + $0x48] sm:$0xf]
                  %815 = vst [vmem:[%s777 + $0x48] sm:$0xf] %v814
                  %v816 = vld [vmem:[%s776 + $0x4c] sm:$0xf]
                  %817 = vst [vmem:[%s777 + $0x4c] sm:$0xf] %v816
                  %v818 = vld [vmem:[%s776 + $0x50] sm:$0xf]
                  %819 = vst [vmem:[%s777 + $0x50] sm:$0xf] %v818
                  %v820 = vld [vmem:[%s776 + $0x54] sm:$0xf]
                  %821 = vst [vmem:[%s777 + $0x54] sm:$0xf] %v820
                  %v822 = vld [vmem:[%s776 + $0x58] sm:$0xf]
                  %823 = vst [vmem:[%s777 + $0x58] sm:$0xf] %v822
                  %v824 = vld [vmem:[%s776 + $0x5c] sm:$0xf]
                  %825 = vst [vmem:[%s777 + $0x5c] sm:$0xf] %v824
                  %v826 = vld [vmem:[%s776 + $0x60] sm:$0xf]
                  %827 = vst [vmem:[%s777 + $0x60] sm:$0xf] %v826
                  %s828 = sadd.s32 1, %s775
                  %p829 = scmp.ge.s32.totalorder %s828, %s767
                  %s830 = scalar_select %p829, 0, %s828
                  %s831 = smul.u32 %s830, 100
                  %s832 = smul.u32 %s830, 100
                  %s833 = scalar_lea.vmem %s651, %s831 [#allocation2]
                  %s834 = scalar_lea.vmem %s662, %s832
                $region71: #{distinguish_forward.4} parent=65 // loop_footer
                  %s772 = sadd.s32 %s770, 1
                $region72: #{distinguish_forward.4} parent=65 // loop_footer_branch
                  %769 = sbr.rel target = $region68
                $region73: #{distinguish_forward.4} parent=65 // loop_exit
                  _
                %s835 = sdiv.u32.pop %s658, 25
                %s836 = srem.u32.pop %s658, 25
                %s837 = smul.u32 %s835, 25
                %s838 = smul.u32 4, %s837
                %s839 = scalar_lea.vmem %s651, %s838 [#allocation2]
                %s840 = smul.u32 4, %s837
                %s841 = scalar_lea.vmem %s662, %s840
                // While loop
                $region74: #{distinguish_forward.4} parent=65 // loop_pre_header
                  _
                $region75: #{distinguish_forward.4} parent=65 // loop_header
                  %s843 = sphi 0, %s845
                  %p844 = scmp.ge.s32.totalorder %s843, %s836
                  %s848 = sphi 0, %s855
                  %s849 = sphi %s839, %s858
                  %s850 = sphi %s841, %s859
                $region76: #{distinguish_forward.4} parent=65 // loop_header_branch
                  %847 = sbr.rel (%p844) target = $region80
                $region77: #{distinguish_forward.4} parent=65 // loop_body
                  %v851 = vld [vmem:[%s849] sm:$0xf]
                  %852 = vst [vmem:[%s850] sm:$0xf] %v851
                  %s853 = sadd.s32 1, %s848
                  %p854 = scmp.ge.s32.totalorder %s853, %s836
                  %s855 = scalar_select %p854, 0, %s853
                  %s856 = smul.u32 %s855, 4
                  %s857 = smul.u32 %s855, 4
                  %s858 = scalar_lea.vmem %s839, %s856 [#allocation2]
                  %s859 = scalar_lea.vmem %s841, %s857
                $region78: #{distinguish_forward.4} parent=65 // loop_footer
                  %s845 = sadd.s32 %s843, 1
                $region79: #{distinguish_forward.4} parent=65 // loop_footer_branch
                  %842 = sbr.rel target = $region75
                $region80: #{distinguish_forward.4} parent=65 // loop_exit
                  _
              $region66: #{distinguish_forward.4} parent=43 // pred_fallthru
                _
            $region44: #{distinguish_forward.4} parent=39 // pred_fallthru
              _
            // Predicated region
            $region45: #{distinguish_forward.4} parent=39 // pred_check
              _
            $region46: #{distinguish_forward.4} parent=39 // pred_check_branch
              %669 = sbr.rel (0) target = $region48
            $region47: #{distinguish_forward.4} parent=39 // pred_region
              %s671 = sdiv.u32.pop %s658, 25
              %s672 = srem.u32.pop %s658, 25
              // While loop
              $region49: #{distinguish_forward.4} parent=47 // loop_pre_header
                _
              $region50: #{distinguish_forward.4} parent=47 // loop_header
                %s674 = sphi 0, %s676
                %p675 = scmp.ge.s32.totalorder %s674, %s671
                %s679 = sphi 0, %s734
                %s680 = sphi %s651, %s737
                %s681 = sphi %s662, %s738
              $region51: #{distinguish_forward.4} parent=47 // loop_header_branch
                %678 = sbr.rel (%p675) target = $region55
              $region52: #{distinguish_forward.4} parent=47 // loop_body
                %v682 = vld [vmem:[%s680] sm:$0xf]
                %683 = vst [vmem:[%s681] sm:$0xf] %v682
                %v684 = vld [vmem:[%s680 + $0x4] sm:$0xf]
                %685 = vst [vmem:[%s681 + $0x4] sm:$0xf] %v684
                %v686 = vld [vmem:[%s680 + $0x8] sm:$0xf]
                %687 = vst [vmem:[%s681 + $0x8] sm:$0xf] %v686
                %v688 = vld [vmem:[%s680 + $0xc] sm:$0xf]
                %689 = vst [vmem:[%s681 + $0xc] sm:$0xf] %v688
                %v690 = vld [vmem:[%s680 + $0x10] sm:$0xf]
                %691 = vst [vmem:[%s681 + $0x10] sm:$0xf] %v690
                %v692 = vld [vmem:[%s680 + $0x14] sm:$0xf]
                %693 = vst [vmem:[%s681 + $0x14] sm:$0xf] %v692
                %v694 = vld [vmem:[%s680 + $0x18] sm:$0xf]
                %695 = vst [vmem:[%s681 + $0x18] sm:$0xf] %v694
                %v696 = vld [vmem:[%s680 + $0x1c] sm:$0xf]
                %697 = vst [vmem:[%s681 + $0x1c] sm:$0xf] %v696
                %v698 = vld [vmem:[%s680 + $0x20] sm:$0xf]
                %699 = vst [vmem:[%s681 + $0x20] sm:$0xf] %v698
                %v700 = vld [vmem:[%s680 + $0x24] sm:$0xf]
                %701 = vst [vmem:[%s681 + $0x24] sm:$0xf] %v700
                %v702 = vld [vmem:[%s680 + $0x28] sm:$0xf]
                %703 = vst [vmem:[%s681 + $0x28] sm:$0xf] %v702
                %v704 = vld [vmem:[%s680 + $0x2c] sm:$0xf]
                %705 = vst [vmem:[%s681 + $0x2c] sm:$0xf] %v704
                %v706 = vld [vmem:[%s680 + $0x30] sm:$0xf]
                %707 = vst [vmem:[%s681 + $0x30] sm:$0xf] %v706
                %v708 = vld [vmem:[%s680 + $0x34] sm:$0xf]
                %709 = vst [vmem:[%s681 + $0x34] sm:$0xf] %v708
                %v710 = vld [vmem:[%s680 + $0x38] sm:$0xf]
                %711 = vst [vmem:[%s681 + $0x38] sm:$0xf] %v710
                %v712 = vld [vmem:[%s680 + $0x3c] sm:$0xf]
                %713 = vst [vmem:[%s681 + $0x3c] sm:$0xf] %v712
                %v714 = vld [vmem:[%s680 + $0x40] sm:$0xf]
                %715 = vst [vmem:[%s681 + $0x40] sm:$0xf] %v714
                %v716 = vld [vmem:[%s680 + $0x44] sm:$0xf]
                %717 = vst [vmem:[%s681 + $0x44] sm:$0xf] %v716
                %v718 = vld [vmem:[%s680 + $0x48] sm:$0xf]
                %719 = vst [vmem:[%s681 + $0x48] sm:$0xf] %v718
                %v720 = vld [vmem:[%s680 + $0x4c] sm:$0xf]
                %721 = vst [vmem:[%s681 + $0x4c] sm:$0xf] %v720
                %v722 = vld [vmem:[%s680 + $0x50] sm:$0xf]
                %723 = vst [vmem:[%s681 + $0x50] sm:$0xf] %v722
                %v724 = vld [vmem:[%s680 + $0x54] sm:$0xf]
                %725 = vst [vmem:[%s681 + $0x54] sm:$0xf] %v724
                %v726 = vld [vmem:[%s680 + $0x58] sm:$0xf]
                %727 = vst [vmem:[%s681 + $0x58] sm:$0xf] %v726
                %v728 = vld [vmem:[%s680 + $0x5c] sm:$0xf]
                %729 = vst [vmem:[%s681 + $0x5c] sm:$0xf] %v728
                %v730 = vld [vmem:[%s680 + $0x60] sm:$0xf]
                %731 = vst [vmem:[%s681 + $0x60] sm:$0xf] %v730
                %s732 = sadd.s32 1, %s679
                %p733 = scmp.ge.s32.totalorder %s732, %s671
                %s734 = scalar_select %p733, 0, %s732
                %s735 = smul.u32 %s734, 100
                %s736 = smul.u32 %s734, 100
                %s737 = scalar_lea.vmem %s651, %s735 [#allocation2]
                %s738 = scalar_lea.vmem %s662, %s736
              $region53: #{distinguish_forward.4} parent=47 // loop_footer
                %s676 = sadd.s32 %s674, 1
              $region54: #{distinguish_forward.4} parent=47 // loop_footer_branch
                %673 = sbr.rel target = $region50
              $region55: #{distinguish_forward.4} parent=47 // loop_exit
                _
              %s739 = sdiv.u32.pop %s658, 25
              %s740 = srem.u32.pop %s658, 25
              %s741 = smul.u32 %s739, 25
              %s742 = smul.u32 4, %s741
              %s743 = scalar_lea.vmem %s651, %s742 [#allocation2]
              %s744 = smul.u32 4, %s741
              %s745 = scalar_lea.vmem %s662, %s744
              // While loop
              $region56: #{distinguish_forward.4} parent=47 // loop_pre_header
                _
              $region57: #{distinguish_forward.4} parent=47 // loop_header
                %s747 = sphi 0, %s749
                %p748 = scmp.ge.s32.totalorder %s747, %s740
                %s752 = sphi 0, %s759
                %s753 = sphi %s743, %s762
                %s754 = sphi %s745, %s763
              $region58: #{distinguish_forward.4} parent=47 // loop_header_branch
                %751 = sbr.rel (%p748) target = $region62
              $region59: #{distinguish_forward.4} parent=47 // loop_body
                %v755 = vld [vmem:[%s753] sm:$0xf]
                %756 = vst [vmem:[%s754] sm:$0xf] %v755
                %s757 = sadd.s32 1, %s752
                %p758 = scmp.ge.s32.totalorder %s757, %s740
                %s759 = scalar_select %p758, 0, %s757
                %s760 = smul.u32 %s759, 4
                %s761 = smul.u32 %s759, 4
                %s762 = scalar_lea.vmem %s743, %s760 [#allocation2]
                %s763 = scalar_lea.vmem %s745, %s761
              $region60: #{distinguish_forward.4} parent=47 // loop_footer
                %s749 = sadd.s32 %s747, 1
              $region61: #{distinguish_forward.4} parent=47 // loop_footer_branch
                %746 = sbr.rel target = $region57
              $region62: #{distinguish_forward.4} parent=47 // loop_exit
                _
            $region48: #{distinguish_forward.4} parent=39 // pred_fallthru
              _
          $region40: #{distinguish_forward.4} parent=35 // pred_fallthru
            _
          %860 = vnop
        $region36: #{distinguish_forward.4} parent=31 // pred_fallthru
          _
      $region32: #{distinguish_forward.4} parent=5 // pred_fallthru
        _
      %p861 = scmp.le.s32.totalorder 2, %s9
      // Predicated region
      $region81: #{distinguish_forward.4} parent=5 // pred_check
        %p862 = pneg %p861
      $region82: #{distinguish_forward.4} parent=5 // pred_check_branch
        %864 = sbr.rel (%p862) target = $region84
      $region83: #{distinguish_forward.4} parent=5 // pred_region
        %s865 = ssub.s32 %s9, 2
        // Predicated region
        $region85: #{distinguish_forward.4} parent=83 // pred_check
          %p866 = pneg %p106
        $region86: #{distinguish_forward.4} parent=83 // pred_check_branch
          %868 = sbr.rel (%p866) target = $region88
        $region87: #{distinguish_forward.4} parent=83 // pred_region
          %s869 = sand.u32 %s91, 1
          %s870 = sand.u32 %s91, 1
          %s871 = smul.addr %s870, 100
          %s872 = scalar_lea.vmem [#allocation2], %s871
        $region88: #{distinguish_forward.4} parent=83 // pred_fallthru
          _
      $region84: #{distinguish_forward.4} parent=5 // pred_fallthru
        _
    $region6: #{distinguish_forward.4} parent=1 // loop_footer
      %s13 = sadd.s32 1, %s9
    $region7: #{distinguish_forward.4} parent=1 // loop_footer_branch
      %8 = sbr.rel target = $region3
    $region8: #{distinguish_forward.4} parent=1 // loop_exit
      _

// kernel: distinguish_forward.5
$region0: #{distinguish_forward.5}
  #allocation0 [shape = 'u32[]', space=smem, size = 0x4, offset = 0x4, fixed_abs, tag = 'smem constant byte address 0x4 - core index']
  #allocation1 [shape = 'u32[144,128]{1,0:T(1,128)}', space=vmem, size = 0x12000, scoped, tag = 'internal scratch']
  %s0 = inlined_call_operand.vmem [shape: bf16[98,512], index: 0, kind: input, shape index: {}]
  %s1 = inlined_call_operand.vmem [shape: bf16[512,128], index: 1, kind: input, shape index: {}]
  %s2 = inlined_call_operand.vmem [shape: f32[1,128], index: 2, kind: input, shape index: {}]
  %s3 = inlined_call_operand.vmem [shape: bf16[98,128], index: 3, kind: output, shape index: {}]
  %s4 = sld [smem:[#allocation0]]
  $region89: #{distinguish_forward.5} parent=0
    _
  %s6 = ssub.s32 1, %s4
  %s7 = scalar_select 0, %s6, %s4
  $region1: #{distinguish_forward.5} parent=0
    #allocation2 [shape = 'u8[28672]{0}', space=vmem, size = 0x7000, scoped, tag = 'output window, operand 0']
    loop: start=0, step=1, limit=4
    $region2: #{distinguish_forward.5} parent=1 // loop_pre_header
      _
    $region3: #{distinguish_forward.5} parent=1 // loop_header
      %s9 = sphi 0, %s13
      %p10 = scmp.ge.s32.totalorder %s9, 4
      %s19 = sphi 0, %s21
      %s22 = sphi 0, %s19
      %s23 = sphi 0, %s22
      %s39 = sphi 0, %s23
      %s43 = sphi 0, %s43
      %s45 = sphi 0, %s43
      %s46 = sphi 0, %s45
      %s60 = sphi 0, %s46
      %s64 = sphi 0, %s64
      %s66 = sphi 0, %s64
      %s67 = sphi 0, %s66
      %s81 = sphi 0, %s67
      %s87 = sphi 0, %s89
      %s90 = sphi 0, %s87
      %s91 = sphi 0, %s90
      %s107 = sphi 0, %s91
    $region4: #{distinguish_forward.5} parent=1 // loop_header_branch
      %12 = sbr.rel (%p10) target = $region8
    $region5: #{distinguish_forward.5} parent=1 // loop_body
      %s14 = ssub.s32 %s9, 1
      %s15 = ssub.s32 %s9, 2
      %s16 = sadd.s32 %s9, 1
      %s17 = ssub.s32 %s9, %s16
      %p18 = scmp.eq.s32.totalorder %s17, 0
      %s20 = sadd.s32 %s19, 1
      %s21 = scalar_select %p18, %s19, %s20
      %p24 = pneg %p18
      %p25 = scmp.eq.s32.totalorder %s9, 1
      %p26 = por %p24, %p25
      %p27 = scmp.ne.s32.totalorder %s19, %s22
      %p28 = scmp.eq.s32.totalorder %s9, 0
      %p29 = por %p27, %p28
      %p30 = scmp.ne.s32.totalorder %s19, %s22
      %p31 = scmp.eq.s32.totalorder %s14, 1
      %p32 = por %p30, %p31
      %p33 = scmp.ne.s32.totalorder %s22, %s23
      %p34 = scmp.eq.s32.totalorder %s14, 0
      %p35 = por %p33, %p34
      %p36 = scmp.ne.s32.totalorder %s22, %s23
      %p37 = scmp.eq.s32.totalorder %s15, 1
      %p38 = por %p36, %p37
      %p40 = scmp.ne.s32.totalorder %s23, %s39
      %p41 = scmp.eq.s32.totalorder %s15, 0
      %p42 = por %p40, %p41
      %s44 = sadd.s32 %s43, 1
      %p47 = scmp.eq.s32.totalorder %s9, 1
      %p48 = scmp.ne.s32.totalorder %s43, %s45
      %p49 = scmp.eq.s32.totalorder %s9, 0
      %p50 = por %p48, %p49
      %p51 = scmp.ne.s32.totalorder %s43, %s45
      %p52 = scmp.eq.s32.totalorder %s14, 1
      %p53 = por %p51, %p52
      %p54 = scmp.ne.s32.totalorder %s45, %s46
      %p55 = scmp.eq.s32.totalorder %s14, 0
      %p56 = por %p54, %p55
      %p57 = scmp.ne.s32.totalorder %s45, %s46
      %p58 = scmp.eq.s32.totalorder %s15, 1
      %p59 = por %p57, %p58
      %p61 = scmp.ne.s32.totalorder %s46, %s60
      %p62 = scmp.eq.s32.totalorder %s15, 0
      %p63 = por %p61, %p62
      %s65 = sadd.s32 %s64, 1
      %p68 = scmp.eq.s32.totalorder %s9, 1
      %p69 = scmp.ne.s32.totalorder %s64, %s66
      %p70 = scmp.eq.s32.totalorder %s9, 0
      %p71 = por %p69, %p70
      %p72 = scmp.ne.s32.totalorder %s64, %s66
      %p73 = scmp.eq.s32.totalorder %s14, 1
      %p74 = por %p72, %p73
      %p75 = scmp.ne.s32.totalorder %s66, %s67
      %p76 = scmp.eq.s32.totalorder %s14, 0
      %p77 = por %p75, %p76
      %p78 = scmp.ne.s32.totalorder %s66, %s67
      %p79 = scmp.eq.s32.totalorder %s15, 1
      %p80 = por %p78, %p79
      %p82 = scmp.ne.s32.totalorder %s67, %s81
      %p83 = scmp.eq.s32.totalorder %s15, 0
      %p84 = por %p82, %p83
      %s85 = ssub.s32 %s9, %s16
      %p86 = scmp.eq.s32.totalorder %s85, 0
      %s88 = sadd.s32 %s87, 1
      %s89 = scalar_select %p86, %s87, %s88
      %p92 = pneg %p86
      %p93 = scmp.eq.s32.totalorder %s9, 1
      %p94 = por %p92, %p93
      %p95 = scmp.ne.s32.totalorder %s87, %s90
      %p96 = scmp.eq.s32.totalorder %s9, 0
      %p97 = por %p95, %p96
      %p98 = scmp.ne.s32.totalorder %s87, %s90
      %p99 = scmp.eq.s32.totalorder %s14, 1
      %p100 = por %p98, %p99
      %p101 = scmp.ne.s32.totalorder %s90, %s91
      %p102 = scmp.eq.s32.totalorder %s14, 0
      %p103 = por %p101, %p102
      %p104 = scmp.ne.s32.totalorder %s90, %s91
      %p105 = scmp.eq.s32.totalorder %s15, 1
      %p106 = por %p104, %p105
      %p108 = scmp.ne.s32.totalorder %s91, %s107
      %p109 = scmp.eq.s32.totalorder %s15, 0
      %p110 = por %p108, %p109
      %p111 = scmp.le.s32.totalorder 1, %s9
      %p112 = scmp.lt.s32.totalorder %s9, 3
      %p113 = pnand %p111, %p112
      %p114 = pneg %p113
      // Predicated region
      $region9: #{distinguish_forward.5} parent=5 // pred_check
        _
      $region10: #{distinguish_forward.5} parent=5 // pred_check_branch
        %116 = sbr.rel (%p113) target = $region12
      $region11: #{distinguish_forward.5} parent=5 // pred_region
        %s117 = ssub.s32 %s9, 1
        // Predicated region
        $region13: #{distinguish_forward.5} parent=11 // pred_check
          %p118 = pneg %p56
        $region14: #{distinguish_forward.5} parent=11 // pred_check_branch
          %120 = sbr.rel (%p118) target = $region16
        $region15: #{distinguish_forward.5} parent=11 // pred_region
          _
        $region16: #{distinguish_forward.5} parent=11 // pred_fallthru
          _
        // Predicated region
        $region17: #{distinguish_forward.5} parent=11 // pred_check
          %p121 = pneg %p77
        $region18: #{distinguish_forward.5} parent=11 // pred_check_branch
          %123 = sbr.rel (%p121) target = $region20
        $region19: #{distinguish_forward.5} parent=11 // pred_region
          _
        $region20: #{distinguish_forward.5} parent=11 // pred_fallthru
          _
      $region12: #{distinguish_forward.5} parent=5 // pred_fallthru
        _
      %p124 = scmp.lt.s32.totalorder %s9, 2
      // Predicated region
      $region21: #{distinguish_forward.5} parent=5 // pred_check
        %p125 = pneg %p124
      $region22: #{distinguish_forward.5} parent=5 // pred_check_branch
        %127 = sbr.rel (%p125) target = $region24
      $region23: #{distinguish_forward.5} parent=5 // pred_region
        // Predicated region
        $region25: #{distinguish_forward.5} parent=23 // pred_check
          %p128 = pneg %p29
        $region26: #{distinguish_forward.5} parent=23 // pred_check_branch
          %130 = sbr.rel (%p128) target = $region28
        $region27: #{distinguish_forward.5} parent=23 // pred_region
          %s131 = smul.u32 7, %s9
          %s132 = ssub.s32 13, %s131
          %p133 = scmp.lt.s32.totalorder %s132, 7
          %s134 = scalar_select %p133, %s132, 7
          %s135 = smul.u32 64, %s134
          %s136 = smul.u32 %s135, 4
          %p137 = scmp.lt.s32.totalorder %s131, 12
          %s138 = scalar_select %p137, %s131, 12
          %s139 = smul.addr %s138, 4
          %s140 = smul.addr %s139, 4
          %s141 = scalar_lea.vmem %s0, %s140
          %s142 = smul.u32 7, %s9
          %s143 = ssub.s32 13, %s142
          %p144 = scmp.lt.s32.totalorder %s143, 7
          %s145 = scalar_select %p144, %s143, 7
          %s146 = smul.u32 64, %s145
          %s147 = smul.u32 %s146, 4
        $region28: #{distinguish_forward.5} parent=23 // pred_fallthru
          _
      $region24: #{distinguish_forward.5} parent=5 // pred_fallthru
        _
      %p148 = scmp.le.s32.totalorder 1, %s9
      %p149 = scmp.lt.s32.totalorder %s9, 3
      %p150 = pnand %p148, %p149
      %p151 = pneg %p150
      // Predicated region
      $region29: #{distinguish_forward.5} parent=5 // pred_check
        _
      $region30: #{distinguish_forward.5} parent=5 // pred_check_branch
        %153 = sbr.rel (%p150) target = $region32
      $region31: #{distinguish_forward.5} parent=5 // pred_region
        %s154 = ssub.s32 %s9, 1
        %s155 = smul.u32 7, %s14
        %s156 = ssub.s32 13, %s155
        %p157 = scmp.lt.s32.totalorder %s156, 7
        %s158 = scalar_select %p157, %s156, 7
        %s159 = smul.u32 64, %s158
        %s160 = smul.u32 %s159, 4
        %p161 = scmp.lt.s32.totalorder %s155, 12
        %s162 = scalar_select %p161, %s155, 12
        %s163 = smul.addr %s162, 4
        %s164 = smul.addr %s163, 4
        %s165 = scalar_lea.vmem %s0, %s164
        %p166 = pneg %p35
        %p167 = pneg %p32
        %p168 = pneg %p56
        %p169 = pneg %p53
        %p170 = pneg %p77
        %p171 = pneg %p74
        %p172 = pneg %p103
        %p173 = pneg %p100
        %s174 = sand.u32 %s90, 1
        %s175 = sand.u32 %s90, 1
        %s176 = smul.addr %s175, 28
        %s177 = scalar_lea.vmem [#allocation2], %s176
        %s178 = smul.u32 7, %s14
        %s179 = ssub.s32 13, %s178
        %p180 = scmp.lt.s32.totalorder %s179, 7
        %s181 = scalar_select %p180, %s179, 7
        %s182 = smul.u32 64, %s181
        %s183 = smul.u32 %s182, 4
        %p184 = scmp.lt.s32.totalorder %s178, 12
        %s185 = scalar_select %p184, %s178, 12
        %s186 = smul.addr %s185, 4
        %s187 = smul.addr %s186, 4
        %s188 = scalar_lea.vmem %s0, %s187
        %s189 = smul.u32 7, %s14
        %s190 = ssub.s32 13, %s189
        %p191 = scmp.lt.s32.totalorder %s190, 7
        %s192 = scalar_select %p191, %s190, 7
        %s193 = smul.u32 64, %s192
        %s194 = smul.u32 %s193, 4
        %s195 = smul.u32 7, %s14
        %s196 = ssub.s32 13, %s195
        %p197 = scmp.lt.s32.totalorder %s196, 7
        %s198 = scalar_select %p197, %s196, 7
        %s199 = smul.u32 64, %s198
        %v201 = vld [vmem:[%s188] sm:$0xff]
        %v202 = vld [vmem:[%s188 + $0x8] sm:$0xff]
        %v203 = vld [vmem:[%s188 + $0x10] sm:$0xff]
        %v204 = vld [vmem:[%s188 + $0x18] sm:$0xff]
        %v205 = vld [vmem:[%s188 + $0x20] sm:$0xff]
        %v206 = vld [vmem:[%s188 + $0x28] sm:$0xff]
        %v207 = vld [vmem:[%s188 + $0x30] sm:$0xff]
        %v208 = vld [vmem:[%s188 + $0x38] sm:$0xff]
        %v209 = vld [vmem:[%s188 + $0x40] sm:$0xff]
        %v210 = vld [vmem:[%s188 + $0x48] sm:$0xff]
        %v211 = vld [vmem:[%s188 + $0x50] sm:$0xff]
        %v212 = vld [vmem:[%s188 + $0x58] sm:$0xff]
        %v213 = vld [vmem:[%s188 + $0x60] sm:$0xff]
        %v214 = vld [vmem:[%s188 + $0x68] sm:$0xff]
        %v215 = vld [vmem:[%s1] sm:$0xf]
        %v216 = vld [vmem:[%s1 + $0x4] sm:$0xf]
        %v217 = vld [vmem:[%s1 + $0x8] sm:$0xf]
        %v218 = vld [vmem:[%s1 + $0xc] sm:$0xf]
        %v219 = vld [vmem:[%s1 + $0x10] sm:$0xf]
        %v220 = vld [vmem:[%s1 + $0x14] sm:$0xf]
        %v221 = vld [vmem:[%s1 + $0x18] sm:$0xf]
        %v222 = vld [vmem:[%s1 + $0x1c] sm:$0xf]
        %v223 = vld [vmem:[%s1 + $0x20] sm:$0xf]
        %v224 = vld [vmem:[%s1 + $0x24] sm:$0xf]
        %v225 = vld [vmem:[%s1 + $0x28] sm:$0xf]
        %v226 = vld [vmem:[%s1 + $0x2c] sm:$0xf]
        %v227 = vld [vmem:[%s1 + $0x30] sm:$0xf]
        %v228 = vld [vmem:[%s1 + $0x34] sm:$0xf]
        %v229 = vld [vmem:[%s1 + $0x38] sm:$0xf]
        %v230 = vld [vmem:[%s1 + $0x3c] sm:$0xf]
        %v231 = vld [vmem:[%s1 + $0x40] sm:$0xf]
        %v232 = vld [vmem:[%s1 + $0x44] sm:$0xf]
        %v233 = vld [vmem:[%s1 + $0x48] sm:$0xf]
        %v234 = vld [vmem:[%s1 + $0x4c] sm:$0xf]
        %v235 = vld [vmem:[%s1 + $0x50] sm:$0xf]
        %v236 = vld [vmem:[%s1 + $0x54] sm:$0xf]
        %v237 = vld [vmem:[%s1 + $0x58] sm:$0xf]
        %v238 = vld [vmem:[%s1 + $0x5c] sm:$0xf]
        %v239 = vld [vmem:[%s1 + $0x60] sm:$0xf]
        %v240 = vld [vmem:[%s1 + $0x64] sm:$0xf]
        %v241 = vld [vmem:[%s1 + $0x68] sm:$0xf]
        %v242 = vld [vmem:[%s1 + $0x6c] sm:$0xf]
        %v243 = vld [vmem:[%s1 + $0x70] sm:$0xf]
        %v244 = vld [vmem:[%s1 + $0x74] sm:$0xf]
        %v245 = vld [vmem:[%s1 + $0x78] sm:$0xf]
        %v246 = vld [vmem:[%s1 + $0x7c] sm:$0xf]
        %v247 = vld [vmem:[%s1 + $0x80] sm:$0xf]
        %v248 = vld [vmem:[%s1 + $0x84] sm:$0xf]
        %v249 = vld [vmem:[%s1 + $0x88] sm:$0xf]
        %v250 = vld [vmem:[%s1 + $0x8c] sm:$0xf]
        %v251 = vld [vmem:[%s1 + $0x90] sm:$0xf]
        %v252 = vld [vmem:[%s1 + $0x94] sm:$0xf]
        %v253 = vld [vmem:[%s1 + $0x98] sm:$0xf]
        %v254 = vld [vmem:[%s1 + $0x9c] sm:$0xf]
        %v255 = vld [vmem:[%s1 + $0xa0] sm:$0xf]
        %v256 = vld [vmem:[%s1 + $0xa4] sm:$0xf]
        %v257 = vld [vmem:[%s1 + $0xa8] sm:$0xf]
        %v258 = vld [vmem:[%s1 + $0xac] sm:$0xf]
        %v259 = vld [vmem:[%s1 + $0xb0] sm:$0xf]
        %v260 = vld [vmem:[%s1 + $0xb4] sm:$0xf]
        %v261 = vld [vmem:[%s1 + $0xb8] sm:$0xf]
        %v262 = vld [vmem:[%s1 + $0xbc] sm:$0xf]
        %v263 = vld [vmem:[%s1 + $0xc0] sm:$0xf]
        %v264 = vld [vmem:[%s1 + $0xc4] sm:$0xf]
        %v265 = vld [vmem:[%s1 + $0xc8] sm:$0xf]
        %v266 = vld [vmem:[%s1 + $0xcc] sm:$0xf]
        %v267 = vld [vmem:[%s1 + $0xd0] sm:$0xf]
        %v268 = vld [vmem:[%s1 + $0xd4] sm:$0xf]
        %v269 = vld [vmem:[%s1 + $0xd8] sm:$0xf]
        %v270 = vld [vmem:[%s1 + $0xdc] sm:$0xf]
        %v271 = vld [vmem:[%s1 + $0xe0] sm:$0xf]
        %v272 = vld [vmem:[%s1 + $0xe4] sm:$0xf]
        %v273 = vld [vmem:[%s1 + $0xe8] sm:$0xf]
        %v274 = vld [vmem:[%s1 + $0xec] sm:$0xf]
        %v275 = vld [vmem:[%s1 + $0xf0] sm:$0xf]
        %v276 = vld [vmem:[%s1 + $0xf4] sm:$0xf]
        %v277 = vld [vmem:[%s1 + $0xf8] sm:$0xf]
        %v278 = vld [vmem:[%s1 + $0xfc] sm:$0xf]
        %v279 = vld [vmem:[%s2] sm:$0x1]
        %v281 = vlaneseq
        %v282 = vshrl.u32 %v281, 7
        %v283 = vsub.s32 0, %v282
        %v284 = vrot.slane %v279, %v283
        %v300 = vunpack.c.l.b16 %v201
        %v301 = vunpack.c.h.b16 %v201
        %v302 = vunpack.c.l.b16 %v202
        %v303 = vunpack.c.h.b16 %v202
        %v304 = vunpack.c.l.b16 %v203
        %v305 = vunpack.c.h.b16 %v203
        %v306 = vunpack.c.l.b16 %v204
        %v307 = vunpack.c.h.b16 %v204
        %v308 = vunpack.c.l.b16 %v205
        %v309 = vunpack.c.h.b16 %v205
        %v310 = vunpack.c.l.b16 %v206
        %v311 = vunpack.c.h.b16 %v206
        %v312 = vunpack.c.l.b16 %v207
        %v313 = vunpack.c.h.b16 %v207
        %v314 = vunpack.c.l.b16 %v208
        %v315 = vunpack.c.h.b16 %v208
        %v316 = vunpack.c.l.b16 %v209
        %v317 = vunpack.c.h.b16 %v209
        %v318 = vunpack.c.l.b16 %v210
        %v319 = vunpack.c.h.b16 %v210
        %v320 = vunpack.c.l.b16 %v211
        %v321 = vunpack.c.h.b16 %v211
        %v322 = vunpack.c.l.b16 %v212
        %v323 = vunpack.c.h.b16 %v212
        %v324 = vunpack.c.l.b16 %v213
        %v325 = vunpack.c.h.b16 %v213
        %v326 = vunpack.c.l.b16 %v214
        %v327 = vunpack.c.h.b16 %v214
        %v328 = vpack.c.b16 %v304, %v300
        %v329 = vpack.c.b16 %v305, %v301
        %v330 = vpack.c.b16 %v306, %v302
        %v331 = vpack.c.b16 %v307, %v303
        %v332 = vpack.c.b16 %v312, %v308
        %v333 = vpack.c.b16 %v313, %v309
        %v334 = vpack.c.b16 %v314, %v310
        %v335 = vpack.c.b16 %v315, %v311
        %v336 = vpack.c.b16 %v320, %v316
        %v337 = vpack.c.b16 %v321, %v317
        %v338 = vpack.c.b16 %v322, %v318
        %v339 = vpack.c.b16 %v323, %v319
        %v340 = vpack.c.b16 %v324, %v324
        %v341 = vpack.c.b16 %v325, %v325
        %v342 = vpack.c.b16 %v326, %v326
        %v343 = vpack.c.b16 %v327, %v327
        %v424 = vunpack.c.l.b16 %v215
        %v425 = vunpack.c.l.b16 %v216
        %v426 = vunpack.c.l.b16 %v217
        %v427 = vunpack.c.l.b16 %v218
        %v428 = vunpack.c.l.b16 %v219
        %v429 = vunpack.c.l.b16 %v220
        %v430 = vunpack.c.l.b16 %v221
        %v431 = vunpack.c.l.b16 %v222
        %v432 = vunpack.c.l.b16 %v223
        %v433 = vunpack.c.l.b16 %v224
        %v434 = vunpack.c.l.b16 %v225
        %v435 = vunpack.c.l.b16 %v226
        %v436 = vunpack.c.l.b16 %v227
        %v437 = vunpack.c.l.b16 %v228
        %v438 = vunpack.c.l.b16 %v229
        %v439 = vunpack.c.l.b16 %v230
        %v440 = vunpack.c.l.b16 %v231
        %v441 = vunpack.c.l.b16 %v232
        %v442 = vunpack.c.l.b16 %v233
        %v443 = vunpack.c.l.b16 %v234
        %v444 = vunpack.c.l.b16 %v235
        %v445 = vunpack.c.l.b16 %v236
        %v446 = vunpack.c.l.b16 %v237
        %v447 = vunpack.c.l.b16 %v238
        %v448 = vunpack.c.l.b16 %v239
        %v449 = vunpack.c.l.b16 %v240
        %v450 = vunpack.c.l.b16 %v241
        %v451 = vunpack.c.l.b16 %v242
        %v452 = vunpack.c.l.b16 %v243
        %v453 = vunpack.c.l.b16 %v244
        %v454 = vunpack.c.l.b16 %v245
        %v455 = vunpack.c.l.b16 %v246
        %v456 = vunpack.c.l.b16 %v247
        %v457 = vunpack.c.l.b16 %v248
        %v458 = vunpack.c.l.b16 %v249
        %v459 = vunpack.c.l.b16 %v250
        %v460 = vunpack.c.l.b16 %v251
        %v461 = vunpack.c.l.b16 %v252
        %v462 = vunpack.c.l.b16 %v253
        %v463 = vunpack.c.l.b16 %v254
        %v464 = vunpack.c.l.b16 %v255
        %v465 = vunpack.c.l.b16 %v256
        %v466 = vunpack.c.l.b16 %v257
        %v467 = vunpack.c.l.b16 %v258
        %v468 = vunpack.c.l.b16 %v259
        %v469 = vunpack.c.l.b16 %v260
        %v470 = vunpack.c.l.b16 %v261
        %v471 = vunpack.c.l.b16 %v262
        %v472 = vunpack.c.l.b16 %v263
        %v473 = vunpack.c.l.b16 %v264
        %v474 = vunpack.c.l.b16 %v265
        %v475 = vunpack.c.l.b16 %v266
        %v476 = vunpack.c.l.b16 %v267
        %v477 = vunpack.c.l.b16 %v268
        %v478 = vunpack.c.l.b16 %v269
        %v479 = vunpack.c.l.b16 %v270
        %v480 = vunpack.c.l.b16 %v271
        %v481 = vunpack.c.l.b16 %v272
        %v482 = vunpack.c.l.b16 %v273
        %v483 = vunpack.c.l.b16 %v274
        %v484 = vunpack.c.l.b16 %v275
        %v485 = vunpack.c.l.b16 %v276
        %v486 = vunpack.c.l.b16 %v277
        %v487 = vunpack.c.l.b16 %v278
        %v488 = vpack.c.b16 %v425, %v424
        %v489 = vpack.c.b16 %v427, %v426
        %v490 = vpack.c.b16 %v429, %v428
        %v491 = vpack.c.b16 %v431, %v430
        %v492 = vpack.c.b16 %v433, %v432
        %v493 = vpack.c.b16 %v435, %v434
        %v494 = vpack.c.b16 %v437, %v436
        %v495 = vpack.c.b16 %v439, %v438
        %v496 = vpack.c.b16 %v441, %v440
        %v497 = vpack.c.b16 %v443, %v442
        %v498 = vpack.c.b16 %v445, %v444
        %v499 = vpack.c.b16 %v447, %v446
        %v500 = vpack.c.b16 %v449, %v448
        %v501 = vpack.c.b16 %v451, %v450
        %v502 = vpack.c.b16 %v453, %v452
        %v503 = vpack.c.b16 %v455, %v454
        %v504 = vpack.c.b16 %v457, %v456
        %v505 = vpack.c.b16 %v459, %v458
        %v506 = vpack.c.b16 %v461, %v460
        %v507 = vpack.c.b16 %v463, %v462
        %v508 = vpack.c.b16 %v465, %v464
        %v509 = vpack.c.b16 %v467, %v466
        %v510 = vpack.c.b16 %v469, %v468
        %v511 = vpack.c.b16 %v471, %v470
        %v512 = vpack.c.b16 %v473, %v472
        %v513 = vpack.c.b16 %v475, %v474
        %v514 = vpack.c.b16 %v477, %v476
        %v515 = vpack.c.b16 %v479, %v478
        %v516 = vpack.c.b16 %v481, %v480
        %v517 = vpack.c.b16 %v483, %v482
        %v518 = vpack.c.b16 %v485, %v484
        %v519 = vpack.c.b16 %v487, %v486
        %552 = vmatprep.subr.bf16.mxu0 0
        %553 = vmatpush1.bf16.msra.mxu0 %v488
        %554 = vmatprep.subr.bf16.mxu0 0
        %555 = vmatpush1.bf16.msra.mxu0 %v489
        %556 = vmatprep.subr.bf16.mxu0 0
        %557 = vmatpush1.bf16.msra.mxu0 %v490
        %558 = vmatprep.subr.bf16.mxu0 0
        %559 = vmatpush1.bf16.msra.mxu0 %v491
        %560 = vmatprep.subr.bf16.mxu0 0
        %561 = vmatpush1.bf16.msra.mxu0 %v492
        %562 = vmatprep.subr.bf16.mxu0 0
        %563 = vmatpush1.bf16.msra.mxu0 %v493
        %564 = vmatprep.subr.bf16.mxu0 0
        %565 = vmatpush1.bf16.msra.mxu0 %v494
        %566 = vmatprep.subr.bf16.mxu0 0
        %567 = vmatpush1.bf16.msra.mxu0 %v495
        %568 = vmatprep.subr.bf16.mxu0 0
        %569 = vmatpush1.bf16.msra.mxu0 %v496
        %570 = vmatprep.subr.bf16.mxu0 0
        %571 = vmatpush1.bf16.msra.mxu0 %v497
        %572 = vmatprep.subr.bf16.mxu0 0
        %573 = vmatpush1.bf16.msra.mxu0 %v498
        %574 = vmatprep.subr.bf16.mxu0 0
        %575 = vmatpush1.bf16.msra.mxu0 %v499
        %576 = vmatprep.subr.bf16.mxu0 0
        %577 = vmatpush1.bf16.msra.mxu0 %v500
        %578 = vmatprep.subr.bf16.mxu0 0
        %579 = vmatpush1.bf16.msra.mxu0 %v501
        %580 = vmatprep.subr.bf16.mxu0 0
        %581 = vmatpush1.bf16.msra.mxu0 %v502
        %582 = vmatprep.subr.bf16.mxu0 0
        %583 = vmatpush1.bf16.msra.mxu0 %v503
        %584 = vmatprep.mubr.bf16.mxu0 %v329
        %585 = vmatmul.mubr.bf16.gmra.mrb[0].mxu0 %v328
        %v586 = vpop.f32.mrb[0].mxu0
        %v587 = vadd.f32 %v284, %v586
        %v588 = vpop.f32.mrb[0].mxu0
        %v589 = vpop.f32.mrb[0].mxu0
        %v590 = vadd.f32 %v284, %v589
        %v591 = vpop.f32.mrb[0].mxu0
        %592 = vmatprep.mubr.bf16.mxu0 %v333
        %593 = vmatmul.mubr.bf16.gmra.mrb[0].mxu0 %v332
        %v594 = vpop.f32.mrb[0].mxu0
        %v595 = vadd.f32 %v284, %v594
        %v596 = vpop.f32.mrb[0].mxu0
        %v597 = vpop.f32.mrb[0].mxu0
        %v598 = vadd.f32 %v284, %v597
        %v599 = vpop.f32.mrb[0].mxu0
        %600 = vmatprep.mubr.bf16.mxu0 %v337
        %601 = vmatmul.mubr.bf16.gmra.mrb[0].mxu0 %v336
        %v602 = vpop.f32.mrb[0].mxu0
        %v603 = vadd.f32 %v284, %v602
        %v604 = vpop.f32.mrb[0].mxu0
        %v605 = vpop.f32.mrb[0].mxu0
        %v606 = vadd.f32 %v284, %v605
        %v607 = vpop.f32.mrb[0].mxu0
        %608 = vmatprep.mubr.bf16.mxu0 %v341
        %609 = vmatmul.mubr.bf16.gmra.mrb[0].mxu0 %v340
        %v610 = vpop.f32.mrb[0].mxu0
        %v611 = vadd.f32 %v284, %v610
        %v612 = vpop.f32.mrb[0].mxu0
        %v613 = vpop.f32.mrb[0].mxu0
        %v614 = vpop.f32.mrb[0].mxu0
        %615 = vdwg.mxu0
        %616 = vmatprep.subr.bf16.mxu0 0
        %617 = vmatpush1.bf16.msra.mxu0 %v504
        %618 = vmatprep.subr.bf16.mxu0 0
        %619 = vmatpush1.bf16.msra.mxu0 %v505
        %620 = vmatprep.subr.bf16.mxu0 0
        %621 = vmatpush1.bf16.msra.mxu0 %v506
        %622 = vmatprep.subr.bf16.mxu0 0
        %623 = vmatpush1.bf16.msra.mxu0 %v507
        %624 = vmatprep.subr.bf16.mxu0 0
        %625 = vmatpush1.bf16.msra.mxu0 %v508
        %626 = vmatprep.subr.bf16.mxu0 0
        %627 = vmatpush1.bf16.msra.mxu0 %v509
        %628 = vmatprep.subr.bf16.mxu0 0
        %629 = vmatpush1.bf16.msra.mxu0 %v510
        %630 = vmatprep.subr.bf16.mxu0 0
        %631 = vmatpush1.bf16.msra.mxu0 %v511
        %632 = vmatprep.subr.bf16.mxu0 0
        %633 = vmatpush1.bf16.msra.mxu0 %v512
        %634 = vmatprep.subr.bf16.mxu0 0
        %635 = vmatpush1.bf16.msra.mxu0 %v513
        %636 = vmatprep.subr.bf16.mxu0 0
        %637 = vmatpush1.bf16.msra.mxu0 %v514
        %638 = vmatprep.subr.bf16.mxu0 0
        %639 = vmatpush1.bf16.msra.mxu0 %v515
        %640 = vmatprep.subr.bf16.mxu0 0
        %641 = vmatpush1.bf16.msra.mxu0 %v516
        %642 = vmatprep.subr.bf16.mxu0 0
        %643 = vmatpush1.bf16.msra.mxu0 %v517
        %644 = vmatprep.subr.bf16.mxu0 0
        %645 = vmatpush1.bf16.msra.mxu0 %v518
        %646 = vmatprep.subr.bf16.mxu0 0
        %647 = vmatpush1.bf16.msra.mxu0 %v519
        %648 = vmatprep.mubr.bf16.mxu0 %v331
        %649 = vmatmul.mubr.bf16.gmra.mrb[0].mxu0 %v330
        %v650 = vpop.f32.mrb[0].mxu0
        %v651 = vadd.f32 %v587, %v650
        %v652 = vpop.f32.mrb[0].mxu0
        %v653 = vpop.f32.mrb[0].mxu0
        %v654 = vadd.f32 %v590, %v653
        %v655 = vpop.f32.mrb[0].mxu0
        %656 = vmatprep.mubr.bf16.mxu0 %v335
        %657 = vmatmul.mubr.bf16.gmra.mrb[0].mxu0 %v334
        %v658 = vpop.f32.mrb[0].mxu0
        %v659 = vadd.f32 %v595, %v658
        %v660 = vpop.f32.mrb[0].mxu0
        %v661 = vpop.f32.mrb[0].mxu0
        %v662 = vadd.f32 %v598, %v661
        %v663 = vpop.f32.mrb[0].mxu0
        %664 = vmatprep.mubr.bf16.mxu0 %v339
        %665 = vmatmul.mubr.bf16.gmra.mrb[0].mxu0 %v338
        %v666 = vpop.f32.mrb[0].mxu0
        %v667 = vadd.f32 %v603, %v666
        %v668 = vpop.f32.mrb[0].mxu0
        %v669 = vpop.f32.mrb[0].mxu0
        %v670 = vadd.f32 %v606, %v669
        %v671 = vpop.f32.mrb[0].mxu0
        %672 = vmatprep.mubr.bf16.mxu0 %v343
        %673 = vmatmul.mubr.bf16.gmra.mrb[0].mxu0 %v342
        %v674 = vpop.f32.mrb[0].mxu0
        %v675 = vadd.f32 %v611, %v674
        %v676 = vpop.f32.mrb[0].mxu0
        %v677 = vpop.f32.mrb[0].mxu0
        %v678 = vpop.f32.mrb[0].mxu0
        %679 = vdwg.mxu0
        %v680 = vmul.f32 %v651, 0.2
        %v681 = vmul.f32 %v654, 0.2
        %v682 = vmul.f32 %v659, 0.2
        %v683 = vmul.f32 %v662, 0.2
        %v684 = vmul.f32 %v667, 0.2
        %v685 = vmul.f32 %v670, 0.2
        %v686 = vmul.f32 %v675, 0.2
        %v687 = vmax.f32 %v651, %v680
        %v688 = vmax.f32 %v654, %v681
        %v689 = vmax.f32 %v659, %v682
        %v690 = vmax.f32 %v662, %v683
        %v691 = vmax.f32 %v667, %v684
        %v692 = vmax.f32 %v670, %v685
        %v693 = vmax.f32 %v675, %v686
        %v694 = vpack.c.bf16 %v688, %v687
        %v695 = vpack.c.bf16 %v690, %v689
        %v696 = vpack.c.bf16 %v692, %v691
        %v697 = vpack.c.bf16 %v693, %v693
        %v702 = vunpack.c.l.b16 %v694
        %v703 = vunpack.c.h.b16 %v694
        %v704 = vunpack.c.l.b16 %v695
        %v705 = vunpack.c.h.b16 %v695
        %v706 = vunpack.c.l.b16 %v696
        %v707 = vunpack.c.h.b16 %v696
        %v708 = vunpack.c.l.b16 %v697
        %v709 = vpack.c.b16 %v702, %v702
        %v710 = vpack.c.b16 %v703, %v703
        %v711 = vpack.c.b16 %v704, %v704
        %v712 = vpack.c.b16 %v705, %v705
        %v713 = vpack.c.b16 %v706, %v706
        %v714 = vpack.c.b16 %v707, %v707
        %v715 = vpack.c.b16 %v708, %v708
        %723 = vst [vmem:[%s177] sm:$0xf] %v709
        %724 = vst [vmem:[%s177 + $0x4] sm:$0xf] %v710
        %725 = vst [vmem:[%s177 + $0x8] sm:$0xf] %v711
        %726 = vst [vmem:[%s177 + $0xc] sm:$0xf] %v712
        %727 = vst [vmem:[%s177 + $0x10] sm:$0xf] %v713
        %728 = vst [vmem:[%s177 + $0x14] sm:$0xf] %v714
        %729 = vst [vmem:[%s177 + $0x18] sm:$0xf] %v715
        %s730 = sand.u32 %s90, 1
        %s731 = sand.u32 %s90, 1
        %s732 = smul.addr %s731, 28
        %s733 = scalar_lea.vmem [#allocation2], %s732
        // Predicated region
        $region33: #{distinguish_forward.5} parent=31 // pred_check
          %p734 = pneg %p100
        $region34: #{distinguish_forward.5} parent=31 // pred_check_branch
          %736 = sbr.rel (%p734) target = $region36
        $region35: #{distinguish_forward.5} parent=31 // pred_region
          %s737 = smul.u32 7, %s14
          %s738 = ssub.s32 13, %s737
          %p739 = scmp.lt.s32.totalorder %s738, 7
          %s740 = scalar_select %p739, %s738, 7
          %s741 = smul.u32 64, %s740
          %p742 = scmp.ne.s32.totalorder 0, %s741
          %s743 = smul.addr %s737, 4
          %s744 = scalar_lea.vmem %s3, %s743
          // Predicated region
          $region37: #{distinguish_forward.5} parent=35 // pred_check
            %p745 = pneg %p742
          $region38: #{distinguish_forward.5} parent=35 // pred_check_branch
            %747 = sbr.rel (%p745) target = $region40
          $region39: #{distinguish_forward.5} parent=35 // pred_region
            // Predicated region
            $region41: #{distinguish_forward.5} parent=39 // pred_check
              _
            $region42: #{distinguish_forward.5} parent=39 // pred_check_branch
              %749 = sbr.rel target = $region44
            $region43: #{distinguish_forward.5} parent=39 // pred_region
              // Predicated region
              $region63: #{distinguish_forward.5} parent=43 // pred_check
                _
              $region64: #{distinguish_forward.5} parent=43 // pred_check_branch
                %811 = sbr.rel (0) target = $region66
              $region65: #{distinguish_forward.5} parent=43 // pred_region
                %s813 = sdiv.u32.pop %s740, 7
                %s814 = srem.u32.pop %s740, 7
                // While loop
                $region67: #{distinguish_forward.5} parent=65 // loop_pre_header
                  _
                $region68: #{distinguish_forward.5} parent=65 // loop_header
                  %s816 = sphi 0, %s818
                  %p817 = scmp.ge.s32.totalorder %s816, %s813
                  %s821 = sphi 0, %s840
                  %s822 = sphi %s733, %s843
                  %s823 = sphi %s744, %s844
                $region69: #{distinguish_forward.5} parent=65 // loop_header_branch
                  %820 = sbr.rel (%p817) target = $region73
                $region70: #{distinguish_forward.5} parent=65 // loop_body
                  %v824 = vld [vmem:[%s822] sm:$0xf]
                  %825 = vst [vmem:[%s823] sm:$0xf] %v824
                  %v826 = vld [vmem:[%s822 + $0x4] sm:$0xf]
                  %827 = vst [vmem:[%s823 + $0x4] sm:$0xf] %v826
                  %v828 = vld [vmem:[%s822 + $0x8] sm:$0xf]
                  %829 = vst [vmem:[%s823 + $0x8] sm:$0xf] %v828
                  %v830 = vld [vmem:[%s822 + $0xc] sm:$0xf]
                  %831 = vst [vmem:[%s823 + $0xc] sm:$0xf] %v830
                  %v832 = vld [vmem:[%s822 + $0x10] sm:$0xf]
                  %833 = vst [vmem:[%s823 + $0x10] sm:$0xf] %v832
                  %v834 = vld [vmem:[%s822 + $0x14] sm:$0xf]
                  %835 = vst [vmem:[%s823 + $0x14] sm:$0xf] %v834
                  %v836 = vld [vmem:[%s822 + $0x18] sm:$0xf]
                  %837 = vst [vmem:[%s823 + $0x18] sm:$0xf] %v836
                  %s838 = sadd.s32 1, %s821
                  %p839 = scmp.ge.s32.totalorder %s838, %s813
                  %s840 = scalar_select %p839, 0, %s838
                  %s841 = smul.u32 %s840, 28
                  %s842 = smul.u32 %s840, 28
                  %s843 = scalar_lea.vmem %s733, %s841 [#allocation2]
                  %s844 = scalar_lea.vmem %s744, %s842
                $region71: #{distinguish_forward.5} parent=65 // loop_footer
                  %s818 = sadd.s32 %s816, 1
                $region72: #{distinguish_forward.5} parent=65 // loop_footer_branch
                  %815 = sbr.rel target = $region68
                $region73: #{distinguish_forward.5} parent=65 // loop_exit
                  _
                %s845 = sdiv.u32.pop %s740, 7
                %s846 = srem.u32.pop %s740, 7
                %s847 = smul.u32 %s845, 7
                %s848 = smul.u32 4, %s847
                %s849 = scalar_lea.vmem %s733, %s848 [#allocation2]
                %s850 = smul.u32 4, %s847
                %s851 = scalar_lea.vmem %s744, %s850
                // While loop
                $region74: #{distinguish_forward.5} parent=65 // loop_pre_header
                  _
                $region75: #{distinguish_forward.5} parent=65 // loop_header
                  %s853 = sphi 0, %s855
                  %p854 = scmp.ge.s32.totalorder %s853, %s846
                  %s858 = sphi 0, %s865
                  %s859 = sphi %s849, %s868
                  %s860 = sphi %s851, %s869
                $region76: #{distinguish_forward.5} parent=65 // loop_header_branch
                  %857 = sbr.rel (%p854) target = $region80
                $region77: #{distinguish_forward.5} parent=65 // loop_body
                  %v861 = vld [vmem:[%s859] sm:$0xf]
                  %862 = vst [vmem:[%s860] sm:$0xf] %v861
                  %s863 = sadd.s32 1, %s858
                  %p864 = scmp.ge.s32.totalorder %s863, %s846
                  %s865 = scalar_select %p864, 0, %s863
                  %s866 = smul.u32 %s865, 4
                  %s867 = smul.u32 %s865, 4
                  %s868 = scalar_lea.vmem %s849, %s866 [#allocation2]
                  %s869 = scalar_lea.vmem %s851, %s867
                $region78: #{distinguish_forward.5} parent=65 // loop_footer
                  %s855 = sadd.s32 %s853, 1
                $region79: #{distinguish_forward.5} parent=65 // loop_footer_branch
                  %852 = sbr.rel target = $region75
                $region80: #{distinguish_forward.5} parent=65 // loop_exit
                  _
              $region66: #{distinguish_forward.5} parent=43 // pred_fallthru
                _
            $region44: #{distinguish_forward.5} parent=39 // pred_fallthru
              _
            // Predicated region
            $region45: #{distinguish_forward.5} parent=39 // pred_check
              _
            $region46: #{distinguish_forward.5} parent=39 // pred_check_branch
              %751 = sbr.rel (0) target = $region48
            $region47: #{distinguish_forward.5} parent=39 // pred_region
              %s753 = sdiv.u32.pop %s740, 7
              %s754 = srem.u32.pop %s740, 7
              // While loop
              $region49: #{distinguish_forward.5} parent=47 // loop_pre_header
                _
              $region50: #{distinguish_forward.5} parent=47 // loop_header
                %s756 = sphi 0, %s758
                %p757 = scmp.ge.s32.totalorder %s756, %s753
                %s761 = sphi 0, %s780
                %s762 = sphi %s733, %s783
                %s763 = sphi %s744, %s784
              $region51: #{distinguish_forward.5} parent=47 // loop_header_branch
                %760 = sbr.rel (%p757) target = $region55
              $region52: #{distinguish_forward.5} parent=47 // loop_body
                %v764 = vld [vmem:[%s762] sm:$0xf]
                %765 = vst [vmem:[%s763] sm:$0xf] %v764
                %v766 = vld [vmem:[%s762 + $0x4] sm:$0xf]
                %767 = vst [vmem:[%s763 + $0x4] sm:$0xf] %v766
                %v768 = vld [vmem:[%s762 + $0x8] sm:$0xf]
                %769 = vst [vmem:[%s763 + $0x8] sm:$0xf] %v768
                %v770 = vld [vmem:[%s762 + $0xc] sm:$0xf]
                %771 = vst [vmem:[%s763 + $0xc] sm:$0xf] %v770
                %v772 = vld [vmem:[%s762 + $0x10] sm:$0xf]
                %773 = vst [vmem:[%s763 + $0x10] sm:$0xf] %v772
                %v774 = vld [vmem:[%s762 + $0x14] sm:$0xf]
                %775 = vst [vmem:[%s763 + $0x14] sm:$0xf] %v774
                %v776 = vld [vmem:[%s762 + $0x18] sm:$0xf]
                %777 = vst [vmem:[%s763 + $0x18] sm:$0xf] %v776
                %s778 = sadd.s32 1, %s761
                %p779 = scmp.ge.s32.totalorder %s778, %s753
                %s780 = scalar_select %p779, 0, %s778
                %s781 = smul.u32 %s780, 28
                %s782 = smul.u32 %s780, 28
                %s783 = scalar_lea.vmem %s733, %s781 [#allocation2]
                %s784 = scalar_lea.vmem %s744, %s782
              $region53: #{distinguish_forward.5} parent=47 // loop_footer
                %s758 = sadd.s32 %s756, 1
              $region54: #{distinguish_forward.5} parent=47 // loop_footer_branch
                %755 = sbr.rel target = $region50
              $region55: #{distinguish_forward.5} parent=47 // loop_exit
                _
              %s785 = sdiv.u32.pop %s740, 7
              %s786 = srem.u32.pop %s740, 7
              %s787 = smul.u32 %s785, 7
              %s788 = smul.u32 4, %s787
              %s789 = scalar_lea.vmem %s733, %s788 [#allocation2]
              %s790 = smul.u32 4, %s787
              %s791 = scalar_lea.vmem %s744, %s790
              // While loop
              $region56: #{distinguish_forward.5} parent=47 // loop_pre_header
                _
              $region57: #{distinguish_forward.5} parent=47 // loop_header
                %s793 = sphi 0, %s795
                %p794 = scmp.ge.s32.totalorder %s793, %s786
                %s798 = sphi 0, %s805
                %s799 = sphi %s789, %s808
                %s800 = sphi %s791, %s809
              $region58: #{distinguish_forward.5} parent=47 // loop_header_branch
                %797 = sbr.rel (%p794) target = $region62
              $region59: #{distinguish_forward.5} parent=47 // loop_body
                %v801 = vld [vmem:[%s799] sm:$0xf]
                %802 = vst [vmem:[%s800] sm:$0xf] %v801
                %s803 = sadd.s32 1, %s798
                %p804 = scmp.ge.s32.totalorder %s803, %s786
                %s805 = scalar_select %p804, 0, %s803
                %s806 = smul.u32 %s805, 4
                %s807 = smul.u32 %s805, 4
                %s808 = scalar_lea.vmem %s789, %s806 [#allocation2]
                %s809 = scalar_lea.vmem %s791, %s807
              $region60: #{distinguish_forward.5} parent=47 // loop_footer
                %s795 = sadd.s32 %s793, 1
              $region61: #{distinguish_forward.5} parent=47 // loop_footer_branch
                %792 = sbr.rel target = $region57
              $region62: #{distinguish_forward.5} parent=47 // loop_exit
                _
            $region48: #{distinguish_forward.5} parent=39 // pred_fallthru
              _
          $region40: #{distinguish_forward.5} parent=35 // pred_fallthru
            _
          %870 = vnop
        $region36: #{distinguish_forward.5} parent=31 // pred_fallthru
          _
      $region32: #{distinguish_forward.5} parent=5 // pred_fallthru
        _
      %p871 = scmp.le.s32.totalorder 2, %s9
      // Predicated region
      $region81: #{distinguish_forward.5} parent=5 // pred_check
        %p872 = pneg %p871
      $region82: #{distinguish_forward.5} parent=5 // pred_check_branch
        %874 = sbr.rel (%p872) target = $region84
      $region83: #{distinguish_forward.5} parent=5 // pred_region
        %s875 = ssub.s32 %s9, 2
        // Predicated region
        $region85: #{distinguish_forward.5} parent=83 // pred_check
          %p876 = pneg %p106
        $region86: #{distinguish_forward.5} parent=83 // pred_check_branch
          %878 = sbr.rel (%p876) target = $region88
        $region87: #{distinguish_forward.5} parent=83 // pred_region
          %s879 = sand.u32 %s91, 1
          %s880 = sand.u32 %s91, 1
          %s881 = smul.addr %s880, 28
          %s882 = scalar_lea.vmem [#allocation2], %s881
        $region88: #{distinguish_forward.5} parent=83 // pred_fallthru
          _
      $region84: #{distinguish_forward.5} parent=5 // pred_fallthru
        _
    $region6: #{distinguish_forward.5} parent=1 // loop_footer
      %s13 = sadd.s32 1, %s9
    $region7: #{distinguish_forward.5} parent=1 // loop_footer_branch
      %8 = sbr.rel target = $region3
    $region8: #{distinguish_forward.5} parent=1 // loop_exit
      _

// kernel: distinguish_forward.6
$region0: #{distinguish_forward.6}
  #allocation0 [shape = 'u32[]', space=smem, size = 0x4, offset = 0x4, fixed_abs, tag = 'smem constant byte address 0x4 - core index']
  #allocation1 [shape = 'u32[144,128]{1,0:T(1,128)}', space=vmem, size = 0x12000, scoped, tag = 'internal scratch']
  %s0 = inlined_call_operand.vmem [shape: bf16[18,1024], index: 0, kind: input, shape index: {}]
  %s1 = inlined_call_operand.vmem [shape: bf16[1024,128], index: 1, kind: input, shape index: {}]
  %s2 = inlined_call_operand.vmem [shape: f32[1,128], index: 2, kind: input, shape index: {}]
  %s3 = inlined_call_operand.vmem [shape: bf16[18,128], index: 3, kind: output, shape index: {}]
  %s4 = sld [smem:[#allocation0]]
  $region89: #{distinguish_forward.6} parent=0
    _
  %s6 = ssub.s32 1, %s4
  %s7 = scalar_select 0, %s6, %s4
  $region1: #{distinguish_forward.6} parent=0
    #allocation2 [shape = 'u8[8192]{0}', space=vmem, size = 0x2000, scoped, tag = 'output window, operand 0']
    loop: start=0, step=1, limit=4
    $region2: #{distinguish_forward.6} parent=1 // loop_pre_header
      _
    $region3: #{distinguish_forward.6} parent=1 // loop_header
      %s9 = sphi 0, %s13
      %p10 = scmp.ge.s32.totalorder %s9, 4
      %s19 = sphi 0, %s21
      %s22 = sphi 0, %s19
      %s23 = sphi 0, %s22
      %s39 = sphi 0, %s23
      %s43 = sphi 0, %s43
      %s45 = sphi 0, %s43
      %s46 = sphi 0, %s45
      %s60 = sphi 0, %s46
      %s64 = sphi 0, %s64
      %s66 = sphi 0, %s64
      %s67 = sphi 0, %s66
      %s81 = sphi 0, %s67
      %s87 = sphi 0, %s89
      %s90 = sphi 0, %s87
      %s91 = sphi 0, %s90
      %s107 = sphi 0, %s91
    $region4: #{distinguish_forward.6} parent=1 // loop_header_branch
      %12 = sbr.rel (%p10) target = $region8
    $region5: #{distinguish_forward.6} parent=1 // loop_body
      %s14 = ssub.s32 %s9, 1
      %s15 = ssub.s32 %s9, 2
      %s16 = sadd.s32 %s9, 1
      %s17 = ssub.s32 %s9, %s16
      %p18 = scmp.eq.s32.totalorder %s17, 0
      %s20 = sadd.s32 %s19, 1
      %s21 = scalar_select %p18, %s19, %s20
      %p24 = pneg %p18
      %p25 = scmp.eq.s32.totalorder %s9, 1
      %p26 = por %p24, %p25
      %p27 = scmp.ne.s32.totalorder %s19, %s22
      %p28 = scmp.eq.s32.totalorder %s9, 0
      %p29 = por %p27, %p28
      %p30 = scmp.ne.s32.totalorder %s19, %s22
      %p31 = scmp.eq.s32.totalorder %s14, 1
      %p32 = por %p30, %p31
      %p33 = scmp.ne.s32.totalorder %s22, %s23
      %p34 = scmp.eq.s32.totalorder %s14, 0
      %p35 = por %p33, %p34
      %p36 = scmp.ne.s32.totalorder %s22, %s23
      %p37 = scmp.eq.s32.totalorder %s15, 1
      %p38 = por %p36, %p37
      %p40 = scmp.ne.s32.totalorder %s23, %s39
      %p41 = scmp.eq.s32.totalorder %s15, 0
      %p42 = por %p40, %p41
      %s44 = sadd.s32 %s43, 1
      %p47 = scmp.eq.s32.totalorder %s9, 1
      %p48 = scmp.ne.s32.totalorder %s43, %s45
      %p49 = scmp.eq.s32.totalorder %s9, 0
      %p50 = por %p48, %p49
      %p51 = scmp.ne.s32.totalorder %s43, %s45
      %p52 = scmp.eq.s32.totalorder %s14, 1
      %p53 = por %p51, %p52
      %p54 = scmp.ne.s32.totalorder %s45, %s46
      %p55 = scmp.eq.s32.totalorder %s14, 0
      %p56 = por %p54, %p55
      %p57 = scmp.ne.s32.totalorder %s45, %s46
      %p58 = scmp.eq.s32.totalorder %s15, 1
      %p59 = por %p57, %p58
      %p61 = scmp.ne.s32.totalorder %s46, %s60
      %p62 = scmp.eq.s32.totalorder %s15, 0
      %p63 = por %p61, %p62
      %s65 = sadd.s32 %s64, 1
      %p68 = scmp.eq.s32.totalorder %s9, 1
      %p69 = scmp.ne.s32.totalorder %s64, %s66
      %p70 = scmp.eq.s32.totalorder %s9, 0
      %p71 = por %p69, %p70
      %p72 = scmp.ne.s32.totalorder %s64, %s66
      %p73 = scmp.eq.s32.totalorder %s14, 1
      %p74 = por %p72, %p73
      %p75 = scmp.ne.s32.totalorder %s66, %s67
      %p76 = scmp.eq.s32.totalorder %s14, 0
      %p77 = por %p75, %p76
      %p78 = scmp.ne.s32.totalorder %s66, %s67
      %p79 = scmp.eq.s32.totalorder %s15, 1
      %p80 = por %p78, %p79
      %p82 = scmp.ne.s32.totalorder %s67, %s81
      %p83 = scmp.eq.s32.totalorder %s15, 0
      %p84 = por %p82, %p83
      %s85 = ssub.s32 %s9, %s16
      %p86 = scmp.eq.s32.totalorder %s85, 0
      %s88 = sadd.s32 %s87, 1
      %s89 = scalar_select %p86, %s87, %s88
      %p92 = pneg %p86
      %p93 = scmp.eq.s32.totalorder %s9, 1
      %p94 = por %p92, %p93
      %p95 = scmp.ne.s32.totalorder %s87, %s90
      %p96 = scmp.eq.s32.totalorder %s9, 0
      %p97 = por %p95, %p96
      %p98 = scmp.ne.s32.totalorder %s87, %s90
      %p99 = scmp.eq.s32.totalorder %s14, 1
      %p100 = por %p98, %p99
      %p101 = scmp.ne.s32.totalorder %s90, %s91
      %p102 = scmp.eq.s32.totalorder %s14, 0
      %p103 = por %p101, %p102
      %p104 = scmp.ne.s32.totalorder %s90, %s91
      %p105 = scmp.eq.s32.totalorder %s15, 1
      %p106 = por %p104, %p105
      %p108 = scmp.ne.s32.totalorder %s91, %s107
      %p109 = scmp.eq.s32.totalorder %s15, 0
      %p110 = por %p108, %p109
      %p111 = scmp.le.s32.totalorder 1, %s9
      %p112 = scmp.lt.s32.totalorder %s9, 3
      %p113 = pnand %p111, %p112
      %p114 = pneg %p113
      // Predicated region
      $region9: #{distinguish_forward.6} parent=5 // pred_check
        _
      $region10: #{distinguish_forward.6} parent=5 // pred_check_branch
        %116 = sbr.rel (%p113) target = $region12
      $region11: #{distinguish_forward.6} parent=5 // pred_region
        %s117 = ssub.s32 %s9, 1
        // Predicated region
        $region13: #{distinguish_forward.6} parent=11 // pred_check
          %p118 = pneg %p56
        $region14: #{distinguish_forward.6} parent=11 // pred_check_branch
          %120 = sbr.rel (%p118) target = $region16
        $region15: #{distinguish_forward.6} parent=11 // pred_region
          _
        $region16: #{distinguish_forward.6} parent=11 // pred_fallthru
          _
        // Predicated region
        $region17: #{distinguish_forward.6} parent=11 // pred_check
          %p121 = pneg %p77
        $region18: #{distinguish_forward.6} parent=11 // pred_check_branch
          %123 = sbr.rel (%p121) target = $region20
        $region19: #{distinguish_forward.6} parent=11 // pred_region
          _
        $region20: #{distinguish_forward.6} parent=11 // pred_fallthru
          _
      $region12: #{distinguish_forward.6} parent=5 // pred_fallthru
        _
      %p124 = scmp.lt.s32.totalorder %s9, 2
      // Predicated region
      $region21: #{distinguish_forward.6} parent=5 // pred_check
        %p125 = pneg %p124
      $region22: #{distinguish_forward.6} parent=5 // pred_check_branch
        %127 = sbr.rel (%p125) target = $region24
      $region23: #{distinguish_forward.6} parent=5 // pred_region
        // Predicated region
        $region25: #{distinguish_forward.6} parent=23 // pred_check
          %p128 = pneg %p29
        $region26: #{distinguish_forward.6} parent=23 // pred_check_branch
          %130 = sbr.rel (%p128) target = $region28
        $region27: #{distinguish_forward.6} parent=23 // pred_region
          %s131 = smul.u32 2, %s9
          %s132 = ssub.s32 3, %s131
          %p133 = scmp.lt.s32.totalorder %s132, 2
          %s134 = scalar_select %p133, %s132, 2
          %s135 = smul.u32 64, %s134
          %s136 = smul.u32 %s135, 8
          %p137 = scmp.lt.s32.totalorder %s131, 2
          %s138 = scalar_select %p137, %s131, 2
          %s139 = smul.addr %s138, 8
          %s140 = smul.addr %s139, 4
          %s141 = scalar_lea.vmem %s0, %s140
          %s142 = smul.u32 2, %s9
          %s143 = ssub.s32 3, %s142
          %p144 = scmp.lt.s32.totalorder %s143, 2
          %s145 = scalar_select %p144, %s143, 2
          %s146 = smul.u32 64, %s145
          %s147 = smul.u32 %s146, 8
        $region28: #{distinguish_forward.6} parent=23 // pred_fallthru
          _
      $region24: #{distinguish_forward.6} parent=5 // pred_fallthru
        _
      %p148 = scmp.le.s32.totalorder 1, %s9
      %p149 = scmp.lt.s32.totalorder %s9, 3
      %p150 = pnand %p148, %p149
      %p151 = pneg %p150
      // Predicated region
      $region29: #{distinguish_forward.6} parent=5 // pred_check
        _
      $region30: #{distinguish_forward.6} parent=5 // pred_check_branch
        %153 = sbr.rel (%p150) target = $region32
      $region31: #{distinguish_forward.6} parent=5 // pred_region
        %s154 = ssub.s32 %s9, 1
        %s155 = smul.u32 2, %s14
        %s156 = ssub.s32 3, %s155
        %p157 = scmp.lt.s32.totalorder %s156, 2
        %s158 = scalar_select %p157, %s156, 2
        %s159 = smul.u32 64, %s158
        %s160 = smul.u32 %s159, 8
        %p161 = scmp.lt.s32.totalorder %s155, 2
        %s162 = scalar_select %p161, %s155, 2
        %s163 = smul.addr %s162, 8
        %s164 = smul.addr %s163, 4
        %s165 = scalar_lea.vmem %s0, %s164
        %p166 = pneg %p35
        %p167 = pneg %p32
        %p168 = pneg %p56
        %p169 = pneg %p53
        %p170 = pneg %p77
        %p171 = pneg %p74
        %p172 = pneg %p103
        %p173 = pneg %p100
        %s174 = sand.u32 %s90, 1
        %s175 = sand.u32 %s90, 1
        %s176 = smul.addr %s175, 8
        %s177 = scalar_lea.vmem [#allocation2], %s176
        %s178 = smul.u32 2, %s14
        %s179 = ssub.s32 3, %s178
        %p180 = scmp.lt.s32.totalorder %s179, 2
        %s181 = scalar_select %p180, %s179, 2
        %s182 = smul.u32 64, %s181
        %s183 = smul.u32 %s182, 8
        %p184 = scmp.lt.s32.totalorder %s178, 2
        %s185 = scalar_select %p184, %s178, 2
        %s186 = smul.addr %s185, 8
        %s187 = smul.addr %s186, 4
        %s188 = scalar_lea.vmem %s0, %s187
        %s189 = smul.u32 2, %s14
        %s190 = ssub.s32 3, %s189
        %p191 = scmp.lt.s32.totalorder %s190, 2
        %s192 = scalar_select %p191, %s190, 2
        %s193 = smul.u32 64, %s192
        %s194 = smul.u32 %s193, 8
        %s195 = smul.u32 2, %s14
        %s196 = ssub.s32 3, %s195
        %p197 = scmp.lt.s32.totalorder %s196, 2
        %s198 = scalar_select %p197, %s196, 2
        %s199 = smul.u32 64, %s198
        %v201 = vld [vmem:[%s188] sm:$0xff]
        %v202 = vld [vmem:[%s188 + $0x8] sm:$0xff]
        %v203 = vld [vmem:[%s188 + $0x10] sm:$0xff]
        %v204 = vld [vmem:[%s188 + $0x18] sm:$0xff]
        %v205 = vld [vmem:[%s188 + $0x20] sm:$0xff]
        %v206 = vld [vmem:[%s188 + $0x28] sm:$0xff]
        %v207 = vld [vmem:[%s188 + $0x30] sm:$0xff]
        %v208 = vld [vmem:[%s188 + $0x38] sm:$0xff]
        %v209 = vld [vmem:[%s1] sm:$0xf]
        %v210 = vld [vmem:[%s1 + $0x4] sm:$0xf]
        %v211 = vld [vmem:[%s1 + $0x8] sm:$0xf]
        %v212 = vld [vmem:[%s1 + $0xc] sm:$0xf]
        %v213 = vld [vmem:[%s1 + $0x10] sm:$0xf]
        %v214 = vld [vmem:[%s1 + $0x14] sm:$0xf]
        %v215 = vld [vmem:[%s1 + $0x18] sm:$0xf]
        %v216 = vld [vmem:[%s1 + $0x1c] sm:$0xf]
        %v217 = vld [vmem:[%s1 + $0x20] sm:$0xf]
        %v218 = vld [vmem:[%s1 + $0x24] sm:$0xf]
        %v219 = vld [vmem:[%s1 + $0x28] sm:$0xf]
        %v220 = vld [vmem:[%s1 + $0x2c] sm:$0xf]
        %v221 = vld [vmem:[%s1 + $0x30] sm:$0xf]
        %v222 = vld [vmem:[%s1 + $0x34] sm:$0xf]
        %v223 = vld [vmem:[%s1 + $0x38] sm:$0xf]
        %v224 = vld [vmem:[%s1 + $0x3c] sm:$0xf]
        %v225 = vld [vmem:[%s1 + $0x40] sm:$0xf]
        %v226 = vld [vmem:[%s1 + $0x44] sm:$0xf]
        %v227 = vld [vmem:[%s1 + $0x48] sm:$0xf]
        %v228 = vld [vmem:[%s1 + $0x4c] sm:$0xf]
        %v229 = vld [vmem:[%s1 + $0x50] sm:$0xf]
        %v230 = vld [vmem:[%s1 + $0x54] sm:$0xf]
        %v231 = vld [vmem:[%s1 + $0x58] sm:$0xf]
        %v232 = vld [vmem:[%s1 + $0x5c] sm:$0xf]
        %v233 = vld [vmem:[%s1 + $0x60] sm:$0xf]
        %v234 = vld [vmem:[%s1 + $0x64] sm:$0xf]
        %v235 = vld [vmem:[%s1 + $0x68] sm:$0xf]
        %v236 = vld [vmem:[%s1 + $0x6c] sm:$0xf]
        %v237 = vld [vmem:[%s1 + $0x70] sm:$0xf]
        %v238 = vld [vmem:[%s1 + $0x74] sm:$0xf]
        %v239 = vld [vmem:[%s1 + $0x78] sm:$0xf]
        %v240 = vld [vmem:[%s1 + $0x7c] sm:$0xf]
        %v241 = vld [vmem:[%s1 + $0x80] sm:$0xf]
        %v242 = vld [vmem:[%s1 + $0x84] sm:$0xf]
        %v243 = vld [vmem:[%s1 + $0x88] sm:$0xf]
        %v244 = vld [vmem:[%s1 + $0x8c] sm:$0xf]
        %v245 = vld [vmem:[%s1 + $0x90] sm:$0xf]
        %v246 = vld [vmem:[%s1 + $0x94] sm:$0xf]
        %v247 = vld [vmem:[%s1 + $0x98] sm:$0xf]
        %v248 = vld [vmem:[%s1 + $0x9c] sm:$0xf]
        %v249 = vld [vmem:[%s1 + $0xa0] sm:$0xf]
        %v250 = vld [vmem:[%s1 + $0xa4] sm:$0xf]
        %v251 = vld [vmem:[%s1 + $0xa8] sm:$0xf]
        %v252 = vld [vmem:[%s1 + $0xac] sm:$0xf]
        %v253 = vld [vmem:[%s1 + $0xb0] sm:$0xf]
        %v254 = vld [vmem:[%s1 + $0xb4] sm:$0xf]
        %v255 = vld [vmem:[%s1 + $0xb8] sm:$0xf]
        %v256 = vld [vmem:[%s1 + $0xbc] sm:$0xf]
        %v257 = vld [vmem:[%s1 + $0xc0] sm:$0xf]
        %v258 = vld [vmem:[%s1 + $0xc4] sm:$0xf]
        %v259 = vld [vmem:[%s1 + $0xc8] sm:$0xf]
        %v260 = vld [vmem:[%s1 + $0xcc] sm:$0xf]
        %v261 = vld [vmem:[%s1 + $0xd0] sm:$0xf]
        %v262 = vld [vmem:[%s1 + $0xd4] sm:$0xf]
        %v263 = vld [vmem:[%s1 + $0xd8] sm:$0xf]
        %v264 = vld [vmem:[%s1 + $0xdc] sm:$0xf]
        %v265 = vld [vmem:[%s1 + $0xe0] sm:$0xf]
        %v266 = vld [vmem:[%s1 + $0xe4] sm:$0xf]
        %v267 = vld [vmem:[%s1 + $0xe8] sm:$0xf]
        %v268 = vld [vmem:[%s1 + $0xec] sm:$0xf]
        %v269 = vld [vmem:[%s1 + $0xf0] sm:$0xf]
        %v270 = vld [vmem:[%s1 + $0xf4] sm:$0xf]
        %v271 = vld [vmem:[%s1 + $0xf8] sm:$0xf]
        %v272 = vld [vmem:[%s1 + $0xfc] sm:$0xf]
        %v273 = vld [vmem:[%s1 + $0x100] sm:$0xf]
        %v274 = vld [vmem:[%s1 + $0x104] sm:$0xf]
        %v275 = vld [vmem:[%s1 + $0x108] sm:$0xf]
        %v276 = vld [vmem:[%s1 + $0x10c] sm:$0xf]
        %v277 = vld [vmem:[%s1 + $0x110] sm:$0xf]
        %v278 = vld [vmem:[%s1 + $0x114] sm:$0xf]
        %v279 = vld [vmem:[%s1 + $0x118] sm:$0xf]
        %v280 = vld [vmem:[%s1 + $0x11c] sm:$0xf]
        %v281 = vld [vmem:[%s1 + $0x120] sm:$0xf]
        %v282 = vld [vmem:[%s1 + $0x124] sm:$0xf]
        %v283 = vld [vmem:[%s1 + $0x128] sm:$0xf]
        %v284 = vld [vmem:[%s1 + $0x12c] sm:$0xf]
        %v285 = vld [vmem:[%s1 + $0x130] sm:$0xf]
        %v286 = vld [vmem:[%s1 + $0x134] sm:$0xf]
        %v287 = vld [vmem:[%s1 + $0x138] sm:$0xf]
        %v288 = vld [vmem:[%s1 + $0x13c] sm:$0xf]
        %v289 = vld [vmem:[%s1 + $0x140] sm:$0xf]
        %v290 = vld [vmem:[%s1 + $0x144] sm:$0xf]
        %v291 = vld [vmem:[%s1 + $0x148] sm:$0xf]
        %v292 = vld [vmem:[%s1 + $0x14c] sm:$0xf]
        %v293 = vld [vmem:[%s1 + $0x150] sm:$0xf]
        %v294 = vld [vmem:[%s1 + $0x154] sm:$0xf]
        %v295 = vld [vmem:[%s1 + $0x158] sm:$0xf]
        %v296 = vld [vmem:[%s1 + $0x15c] sm:$0xf]
        %v297 = vld [vmem:[%s1 + $0x160] sm:$0xf]
        %v298 = vld [vmem:[%s1 + $0x164] sm:$0xf]
        %v299 = vld [vmem:[%s1 + $0x168] sm:$0xf]
        %v300 = vld [vmem:[%s1 + $0x16c] sm:$0xf]
        %v301 = vld [vmem:[%s1 + $0x170] sm:$0xf]
        %v302 = vld [vmem:[%s1 + $0x174] sm:$0xf]
        %v303 = vld [vmem:[%s1 + $0x178] sm:$0xf]
        %v304 = vld [vmem:[%s1 + $0x17c] sm:$0xf]
        %v305 = vld [vmem:[%s1 + $0x180] sm:$0xf]
        %v306 = vld [vmem:[%s1 + $0x184] sm:$0xf]
        %v307 = vld [vmem:[%s1 + $0x188] sm:$0xf]
        %v308 = vld [vmem:[%s1 + $0x18c] sm:$0xf]
        %v309 = vld [vmem:[%s1 + $0x190] sm:$0xf]
        %v310 = vld [vmem:[%s1 + $0x194] sm:$0xf]
        %v311 = vld [vmem:[%s1 + $0x198] sm:$0xf]
        %v312 = vld [vmem:[%s1 + $0x19c] sm:$0xf]
        %v313 = vld [vmem:[%s1 + $0x1a0] sm:$0xf]
        %v314 = vld [vmem:[%s1 + $0x1a4] sm:$0xf]
        %v315 = vld [vmem:[%s1 + $0x1a8] sm:$0xf]
        %v316 = vld [vmem:[%s1 + $0x1ac] sm:$0xf]
        %v317 = vld [vmem:[%s1 + $0x1b0] sm:$0xf]
        %v318 = vld [vmem:[%s1 + $0x1b4] sm:$0xf]
        %v319 = vld [vmem:[%s1 + $0x1b8] sm:$0xf]
        %v320 = vld [vmem:[%s1 + $0x1bc] sm:$0xf]
        %v321 = vld [vmem:[%s1 + $0x1c0] sm:$0xf]
        %v322 = vld [vmem:[%s1 + $0x1c4] sm:$0xf]
        %v323 = vld [vmem:[%s1 + $0x1c8] sm:$0xf]
        %v324 = vld [vmem:[%s1 + $0x1cc] sm:$0xf]
        %v325 = vld [vmem:[%s1 + $0x1d0] sm:$0xf]
        %v326 = vld [vmem:[%s1 + $0x1d4] sm:$0xf]
        %v327 = vld [vmem:[%s1 + $0x1d8] sm:$0xf]
        %v328 = vld [vmem:[%s1 + $0x1dc] sm:$0xf]
        %v329 = vld [vmem:[%s1 + $0x1e0] sm:$0xf]
        %v330 = vld [vmem:[%s1 + $0x1e4] sm:$0xf]
        %v331 = vld [vmem:[%s1 + $0x1e8] sm:$0xf]
        %v332 = vld [vmem:[%s1 + $0x1ec] sm:$0xf]
        %v333 = vld [vmem:[%s1 + $0x1f0] sm:$0xf]
        %v334 = vld [vmem:[%s1 + $0x1f4] sm:$0xf]
        %v335 = vld [vmem:[%s1 + $0x1f8] sm:$0xf]
        %v336 = vld [vmem:[%s1 + $0x1fc] sm:$0xf]
        %v337 = vld [vmem:[%s2] sm:$0x1]
        %v339 = vlaneseq
        %v340 = vshrl.u32 %v339, 7
        %v341 = vsub.s32 0, %v340
        %v342 = vrot.slane %v337, %v341
        %v352 = vunpack.c.l.b16 %v201
        %v353 = vunpack.c.h.b16 %v201
        %v354 = vunpack.c.l.b16 %v202
        %v355 = vunpack.c.h.b16 %v202
        %v356 = vunpack.c.l.b16 %v203
        %v357 = vunpack.c.h.b16 %v203
        %v358 = vunpack.c.l.b16 %v204
        %v359 = vunpack.c.h.b16 %v204
        %v360 = vunpack.c.l.b16 %v205
        %v361 = vunpack.c.h.b16 %v205
        %v362 = vunpack.c.l.b16 %v206
        %v363 = vunpack.c.h.b16 %v206
        %v364 = vunpack.c.l.b16 %v207
        %v365 = vunpack.c.h.b16 %v207
        %v366 = vunpack.c.l.b16 %v208
        %v367 = vunpack.c.h.b16 %v208
        %v368 = vpack.c.b16 %v360, %v352
        %v369 = vpack.c.b16 %v361, %v353
        %v370 = vpack.c.b16 %v362, %v354
        %v371 = vpack.c.b16 %v363, %v355
        %v372 = vpack.c.b16 %v364, %v356
        %v373 = vpack.c.b16 %v365, %v357
        %v374 = vpack.c.b16 %v366, %v358
        %v375 = vpack.c.b16 %v367, %v359
        %v512 = vunpack.c.l.b16 %v209
        %v513 = vunpack.c.l.b16 %v210
        %v514 = vunpack.c.l.b16 %v211
        %v515 = vunpack.c.l.b16 %v212
        %v516 = vunpack.c.l.b16 %v213
        %v517 = vunpack.c.l.b16 %v214
        %v518 = vunpack.c.l.b16 %v215
        %v519 = vunpack.c.l.b16 %v216
        %v520 = vunpack.c.l.b16 %v217
        %v521 = vunpack.c.l.b16 %v218
        %v522 = vunpack.c.l.b16 %v219
        %v523 = vunpack.c.l.b16 %v220
        %v524 = vunpack.c.l.b16 %v221
        %v525 = vunpack.c.l.b16 %v222
        %v526 = vunpack.c.l.b16 %v223
        %v527 = vunpack.c.l.b16 %v224
        %v528 = vunpack.c.l.b16 %v225
        %v529 = vunpack.c.l.b16 %v226
        %v530 = vunpack.c.l.b16 %v227
        %v531 = vunpack.c.l.b16 %v228
        %v532 = vunpack.c.l.b16 %v229
        %v533 = vunpack.c.l.b16 %v230
        %v534 = vunpack.c.l.b16 %v231
        %v535 = vunpack.c.l.b16 %v232
        %v536 = vunpack.c.l.b16 %v233
        %v537 = vunpack.c.l.b16 %v234
        %v538 = vunpack.c.l.b16 %v235
        %v539 = vunpack.c.l.b16 %v236
        %v540 = vunpack.c.l.b16 %v237
        %v541 = vunpack.c.l.b16 %v238
        %v542 = vunpack.c.l.b16 %v239
        %v543 = vunpack.c.l.b16 %v240
        %v544 = vunpack.c.l.b16 %v241
        %v545 = vunpack.c.l.b16 %v242
        %v546 = vunpack.c.l.b16 %v243
        %v547 = vunpack.c.l.b16 %v244
        %v548 = vunpack.c.l.b16 %v245
        %v549 = vunpack.c.l.b16 %v246
        %v550 = vunpack.c.l.b16 %v247
        %v551 = vunpack.c.l.b16 %v248
        %v552 = vunpack.c.l.b16 %v249
        %v553 = vunpack.c.l.b16 %v250
        %v554 = vunpack.c.l.b16 %v251
        %v555 = vunpack.c.l.b16 %v252
        %v556 = vunpack.c.l.b16 %v253
        %v557 = vunpack.c.l.b16 %v254
        %v558 = vunpack.c.l.b16 %v255
        %v559 = vunpack.c.l.b16 %v256
        %v560 = vunpack.c.l.b16 %v257
        %v561 = vunpack.c.l.b16 %v258
        %v562 = vunpack.c.l.b16 %v259
        %v563 = vunpack.c.l.b16 %v260
        %v564 = vunpack.c.l.b16 %v261
        %v565 = vunpack.c.l.b16 %v262
        %v566 = vunpack.c.l.b16 %v263
        %v567 = vunpack.c.l.b16 %v264
        %v568 = vunpack.c.l.b16 %v265
        %v569 = vunpack.c.l.b16 %v266
        %v570 = vunpack.c.l.b16 %v267
        %v571 = vunpack.c.l.b16 %v268
        %v572 = vunpack.c.l.b16 %v269
        %v573 = vunpack.c.l.b16 %v270
        %v574 = vunpack.c.l.b16 %v271
        %v575 = vunpack.c.l.b16 %v272
        %v576 = vunpack.c.l.b16 %v273
        %v577 = vunpack.c.l.b16 %v274
        %v578 = vunpack.c.l.b16 %v275
        %v579 = vunpack.c.l.b16 %v276
        %v580 = vunpack.c.l.b16 %v277
        %v581 = vunpack.c.l.b16 %v278
        %v582 = vunpack.c.l.b16 %v279
        %v583 = vunpack.c.l.b16 %v280
        %v584 = vunpack.c.l.b16 %v281
        %v585 = vunpack.c.l.b16 %v282
        %v586 = vunpack.c.l.b16 %v283
        %v587 = vunpack.c.l.b16 %v284
        %v588 = vunpack.c.l.b16 %v285
        %v589 = vunpack.c.l.b16 %v286
        %v590 = vunpack.c.l.b16 %v287
        %v591 = vunpack.c.l.b16 %v288
        %v592 = vunpack.c.l.b16 %v289
        %v593 = vunpack.c.l.b16 %v290
        %v594 = vunpack.c.l.b16 %v291
        %v595 = vunpack.c.l.b16 %v292
        %v596 = vunpack.c.l.b16 %v293
        %v597 = vunpack.c.l.b16 %v294
        %v598 = vunpack.c.l.b16 %v295
        %v599 = vunpack.c.l.b16 %v296
        %v600 = vunpack.c.l.b16 %v297
        %v601 = vunpack.c.l.b16 %v298
        %v602 = vunpack.c.l.b16 %v299
        %v603 = vunpack.c.l.b16 %v300
        %v604 = vunpack.c.l.b16 %v301
        %v605 = vunpack.c.l.b16 %v302
        %v606 = vunpack.c.l.b16 %v303
        %v607 = vunpack.c.l.b16 %v304
        %v608 = vunpack.c.l.b16 %v305
        %v609 = vunpack.c.l.b16 %v306
        %v610 = vunpack.c.l.b16 %v307
        %v611 = vunpack.c.l.b16 %v308
        %v612 = vunpack.c.l.b16 %v309
        %v613 = vunpack.c.l.b16 %v310
        %v614 = vunpack.c.l.b16 %v311
        %v615 = vunpack.c.l.b16 %v312
        %v616 = vunpack.c.l.b16 %v313
        %v617 = vunpack.c.l.b16 %v314
        %v618 = vunpack.c.l.b16 %v315
        %v619 = vunpack.c.l.b16 %v316
        %v620 = vunpack.c.l.b16 %v317
        %v621 = vunpack.c.l.b16 %v318
        %v622 = vunpack.c.l.b16 %v319
        %v623 = vunpack.c.l.b16 %v320
        %v624 = vunpack.c.l.b16 %v321
        %v625 = vunpack.c.l.b16 %v322
        %v626 = vunpack.c.l.b16 %v323
        %v627 = vunpack.c.l.b16 %v324
        %v628 = vunpack.c.l.b16 %v325
        %v629 = vunpack.c.l.b16 %v326
        %v630 = vunpack.c.l.b16 %v327
        %v631 = vunpack.c.l.b16 %v328
        %v632 = vunpack.c.l.b16 %v329
        %v633 = vunpack.c.l.b16 %v330
        %v634 = vunpack.c.l.b16 %v331
        %v635 = vunpack.c.l.b16 %v332
        %v636 = vunpack.c.l.b16 %v333
        %v637 = vunpack.c.l.b16 %v334
        %v638 = vunpack.c.l.b16 %v335
        %v639 = vunpack.c.l.b16 %v336
        %v640 = vpack.c.b16 %v513, %v512
        %v641 = vpack.c.b16 %v515, %v514
        %v642 = vpack.c.b16 %v517, %v516
        %v643 = vpack.c.b16 %v519, %v518
        %v644 = vpack.c.b16 %v521, %v520
        %v645 = vpack.c.b16 %v523, %v522
        %v646 = vpack.c.b16 %v525, %v524
        %v647 = vpack.c.b16 %v527, %v526
        %v648 = vpack.c.b16 %v529, %v528
        %v649 = vpack.c.b16 %v531, %v530
        %v650 = vpack.c.b16 %v533, %v532
        %v651 = vpack.c.b16 %v535, %v534
        %v652 = vpack.c.b16 %v537, %v536
        %v653 = vpack.c.b16 %v539, %v538
        %v654 = vpack.c.b16 %v541, %v540
        %v655 = vpack.c.b16 %v543, %v542
        %v656 = vpack.c.b16 %v545, %v544
        %v657 = vpack.c.b16 %v547, %v546
        %v658 = vpack.c.b16 %v549, %v548
        %v659 = vpack.c.b16 %v551, %v550
        %v660 = vpack.c.b16 %v553, %v552
        %v661 = vpack.c.b16 %v555, %v554
        %v662 = vpack.c.b16 %v557, %v556
        %v663 = vpack.c.b16 %v559, %v558
        %v664 = vpack.c.b16 %v561, %v560
        %v665 = vpack.c.b16 %v563, %v562
        %v666 = vpack.c.b16 %v565, %v564
        %v667 = vpack.c.b16 %v567, %v566
        %v668 = vpack.c.b16 %v569, %v568
        %v669 = vpack.c.b16 %v571, %v570
        %v670 = vpack.c.b16 %v573, %v572
        %v671 = vpack.c.b16 %v575, %v574
        %v672 = vpack.c.b16 %v577, %v576
        %v673 = vpack.c.b16 %v579, %v578
        %v674 = vpack.c.b16 %v581, %v580
        %v675 = vpack.c.b16 %v583, %v582
        %v676 = vpack.c.b16 %v585, %v584
        %v677 = vpack.c.b16 %v587, %v586
        %v678 = vpack.c.b16 %v589, %v588
        %v679 = vpack.c.b16 %v591, %v590
        %v680 = vpack.c.b16 %v593, %v592
        %v681 = vpack.c.b16 %v595, %v594
        %v682 = vpack.c.b16 %v597, %v596
        %v683 = vpack.c.b16 %v599, %v598
        %v684 = vpack.c.b16 %v601, %v600
        %v685 = vpack.c.b16 %v603, %v602
        %v686 = vpack.c.b16 %v605, %v604
        %v687 = vpack.c.b16 %v607, %v606
        %v688 = vpack.c.b16 %v609, %v608
        %v689 = vpack.c.b16 %v611, %v610
        %v690 = vpack.c.b16 %v613, %v612
        %v691 = vpack.c.b16 %v615, %v614
        %v692 = vpack.c.b16 %v617, %v616
        %v693 = vpack.c.b16 %v619, %v618
        %v694 = vpack.c.b16 %v621, %v620
        %v695 = vpack.c.b16 %v623, %v622
        %v696 = vpack.c.b16 %v625, %v624
        %v697 = vpack.c.b16 %v627, %v626
        %v698 = vpack.c.b16 %v629, %v628
        %v699 = vpack.c.b16 %v631, %v630
        %v700 = vpack.c.b16 %v633, %v632
        %v701 = vpack.c.b16 %v635, %v634
        %v702 = vpack.c.b16 %v637, %v636
        %v703 = vpack.c.b16 %v639, %v638
        %768 = vmatprep.subr.bf16.mxu0 0
        %769 = vmatpush1.bf16.msra.mxu0 %v640
        %770 = vmatprep.subr.bf16.mxu0 0
        %771 = vmatpush1.bf16.msra.mxu0 %v641
        %772 = vmatprep.subr.bf16.mxu0 0
        %773 = vmatpush1.bf16.msra.mxu0 %v642
        %774 = vmatprep.subr.bf16.mxu0 0
        %775 = vmatpush1.bf16.msra.mxu0 %v643
        %776 = vmatprep.subr.bf16.mxu0 0
        %777 = vmatpush1.bf16.msra.mxu0 %v644
        %778 = vmatprep.subr.bf16.mxu0 0
        %779 = vmatpush1.bf16.msra.mxu0 %v645
        %780 = vmatprep.subr.bf16.mxu0 0
        %781 = vmatpush1.bf16.msra.mxu0 %v646
        %782 = vmatprep.subr.bf16.mxu0 0
        %783 = vmatpush1.bf16.msra.mxu0 %v647
        %784 = vmatprep.subr.bf16.mxu0 0
        %785 = vmatpush1.bf16.msra.mxu0 %v648
        %786 = vmatprep.subr.bf16.mxu0 0
        %787 = vmatpush1.bf16.msra.mxu0 %v649
        %788 = vmatprep.subr.bf16.mxu0 0
        %789 = vmatpush1.bf16.msra.mxu0 %v650
        %790 = vmatprep.subr.bf16.mxu0 0
        %791 = vmatpush1.bf16.msra.mxu0 %v651
        %792 = vmatprep.subr.bf16.mxu0 0
        %793 = vmatpush1.bf16.msra.mxu0 %v652
        %794 = vmatprep.subr.bf16.mxu0 0
        %795 = vmatpush1.bf16.msra.mxu0 %v653
        %796 = vmatprep.subr.bf16.mxu0 0
        %797 = vmatpush1.bf16.msra.mxu0 %v654
        %798 = vmatprep.subr.bf16.mxu0 0
        %799 = vmatpush1.bf16.msra.mxu0 %v655
        %800 = vmatprep.mubr.bf16.mxu0 %v369
        %801 = vmatmul.mubr.bf16.gmra.mrb[0].mxu0 %v368
        %v802 = vpop.f32.mrb[0].mxu0
        %v803 = vadd.f32 %v342, %v802
        %v804 = vpop.f32.mrb[0].mxu0
        %v805 = vpop.f32.mrb[0].mxu0
        %v806 = vadd.f32 %v342, %v805
        %v807 = vpop.f32.mrb[0].mxu0
        %808 = vdwg.mxu0
        %809 = vmatprep.subr.bf16.mxu0 0
        %810 = vmatpush1.bf16.msra.mxu0 %v656
        %811 = vmatprep.subr.bf16.mxu0 0
        %812 = vmatpush1.bf16.msra.mxu0 %v657
        %813 = vmatprep.subr.bf16.mxu0 0
        %814 = vmatpush1.bf16.msra.mxu0 %v658
        %815 = vmatprep.subr.bf16.mxu0 0
        %816 = vmatpush1.bf16.msra.mxu0 %v659
        %817 = vmatprep.subr.bf16.mxu0 0
        %818 = vmatpush1.bf16.msra.mxu0 %v660
        %819 = vmatprep.subr.bf16.mxu0 0
        %820 = vmatpush1.bf16.msra.mxu0 %v661
        %821 = vmatprep.subr.bf16.mxu0 0
        %822 = vmatpush1.bf16.msra.mxu0 %v662
        %823 = vmatprep.subr.bf16.mxu0 0
        %824 = vmatpush1.bf16.msra.mxu0 %v663
        %825 = vmatprep.subr.bf16.mxu0 0
        %826 = vmatpush1.bf16.msra.mxu0 %v664
        %827 = vmatprep.subr.bf16.mxu0 0
        %828 = vmatpush1.bf16.msra.mxu0 %v665
        %829 = vmatprep.subr.bf16.mxu0 0
        %830 = vmatpush1.bf16.msra.mxu0 %v666
        %831 = vmatprep.subr.bf16.mxu0 0
        %832 = vmatpush1.bf16.msra.mxu0 %v667
        %833 = vmatprep.subr.bf16.mxu0 0
        %834 = vmatpush1.bf16.msra.mxu0 %v668
        %835 = vmatprep.subr.bf16.mxu0 0
        %836 = vmatpush1.bf16.msra.mxu0 %v669
        %837 = vmatprep.subr.bf16.mxu0 0
        %838 = vmatpush1.bf16.msra.mxu0 %v670
        %839 = vmatprep.subr.bf16.mxu0 0
        %840 = vmatpush1.bf16.msra.mxu0 %v671
        %841 = vmatprep.mubr.bf16.mxu0 %v371
        %842 = vmatmul.mubr.bf16.gmra.mrb[0].mxu0 %v370
        %v843 = vpop.f32.mrb[0].mxu0
        %v844 = vadd.f32 %v803, %v843
        %v845 = vpop.f32.mrb[0].mxu0
        %v846 = vpop.f32.mrb[0].mxu0
        %v847 = vadd.f32 %v806, %v846
        %v848 = vpop.f32.mrb[0].mxu0
        %849 = vdwg.mxu0
        %850 = vmatprep.subr.bf16.mxu0 0
        %851 = vmatpush1.bf16.msra.mxu0 %v672
        %852 = vmatprep.subr.bf16.mxu0 0
        %853 = vmatpush1.bf16.msra.mxu0 %v673
        %854 = vmatprep.subr.bf16.mxu0 0
        %855 = vmatpush1.bf16.msra.mxu0 %v674
        %856 = vmatprep.subr.bf16.mxu0 0
        %857 = vmatpush1.bf16.msra.mxu0 %v675
        %858 = vmatprep.subr.bf16.mxu0 0
        %859 = vmatpush1.bf16.msra.mxu0 %v676
        %860 = vmatprep.subr.bf16.mxu0 0
        %861 = vmatpush1.bf16.msra.mxu0 %v677
        %862 = vmatprep.subr.bf16.mxu0 0
        %863 = vmatpush1.bf16.msra.mxu0 %v678
        %864 = vmatprep.subr.bf16.mxu0 0
        %865 = vmatpush1.bf16.msra.mxu0 %v679
        %866 = vmatprep.subr.bf16.mxu0 0
        %867 = vmatpush1.bf16.msra.mxu0 %v680
        %868 = vmatprep.subr.bf16.mxu0 0
        %869 = vmatpush1.bf16.msra.mxu0 %v681
        %870 = vmatprep.subr.bf16.mxu0 0
        %871 = vmatpush1.bf16.msra.mxu0 %v682
        %872 = vmatprep.subr.bf16.mxu0 0
        %873 = vmatpush1.bf16.msra.mxu0 %v683
        %874 = vmatprep.subr.bf16.mxu0 0
        %875 = vmatpush1.bf16.msra.mxu0 %v684
        %876 = vmatprep.subr.bf16.mxu0 0
        %877 = vmatpush1.bf16.msra.mxu0 %v685
        %878 = vmatprep.subr.bf16.mxu0 0
        %879 = vmatpush1.bf16.msra.mxu0 %v686
        %880 = vmatprep.subr.bf16.mxu0 0
        %881 = vmatpush1.bf16.msra.mxu0 %v687
        %882 = vmatprep.mubr.bf16.mxu0 %v373
        %883 = vmatmul.mubr.bf16.gmra.mrb[0].mxu0 %v372
        %v884 = vpop.f32.mrb[0].mxu0
        %v885 = vadd.f32 %v844, %v884
        %v886 = vpop.f32.mrb[0].mxu0
        %v887 = vpop.f32.mrb[0].mxu0
        %v888 = vadd.f32 %v847, %v887
        %v889 = vpop.f32.mrb[0].mxu0
        %890 = vdwg.mxu0
        %891 = vmatprep.subr.bf16.mxu0 0
        %892 = vmatpush1.bf16.msra.mxu0 %v688
        %893 = vmatprep.subr.bf16.mxu0 0
        %894 = vmatpush1.bf16.msra.mxu0 %v689
        %895 = vmatprep.subr.bf16.mxu0 0
        %896 = vmatpush1.bf16.msra.mxu0 %v690
        %897 = vmatprep.subr.bf16.mxu0 0
        %898 = vmatpush1.bf16.msra.mxu0 %v691
        %899 = vmatprep.subr.bf16.mxu0 0
        %900 = vmatpush1.bf16.msra.mxu0 %v692
        %901 = vmatprep.subr.bf16.mxu0 0
        %902 = vmatpush1.bf16.msra.mxu0 %v693
        %903 = vmatprep.subr.bf16.mxu0 0
        %904 = vmatpush1.bf16.msra.mxu0 %v694
        %905 = vmatprep.subr.bf16.mxu0 0
        %906 = vmatpush1.bf16.msra.mxu0 %v695
        %907 = vmatprep.subr.bf16.mxu0 0
        %908 = vmatpush1.bf16.msra.mxu0 %v696
        %909 = vmatprep.subr.bf16.mxu0 0
        %910 = vmatpush1.bf16.msra.mxu0 %v697
        %911 = vmatprep.subr.bf16.mxu0 0
        %912 = vmatpush1.bf16.msra.mxu0 %v698
        %913 = vmatprep.subr.bf16.mxu0 0
        %914 = vmatpush1.bf16.msra.mxu0 %v699
        %915 = vmatprep.subr.bf16.mxu0 0
        %916 = vmatpush1.bf16.msra.mxu0 %v700
        %917 = vmatprep.subr.bf16.mxu0 0
        %918 = vmatpush1.bf16.msra.mxu0 %v701
        %919 = vmatprep.subr.bf16.mxu0 0
        %920 = vmatpush1.bf16.msra.mxu0 %v702
        %921 = vmatprep.subr.bf16.mxu0 0
        %922 = vmatpush1.bf16.msra.mxu0 %v703
        %923 = vmatprep.mubr.bf16.mxu0 %v375
        %924 = vmatmul.mubr.bf16.gmra.mrb[0].mxu0 %v374
        %v925 = vpop.f32.mrb[0].mxu0
        %v926 = vadd.f32 %v885, %v925
        %v927 = vpop.f32.mrb[0].mxu0
        %v928 = vpop.f32.mrb[0].mxu0
        %v929 = vadd.f32 %v888, %v928
        %v930 = vpop.f32.mrb[0].mxu0
        %931 = vdwg.mxu0
        %v932 = vmul.f32 %v926, 0.2
        %v933 = vmul.f32 %v929, 0.2
        %v934 = vmax.f32 %v926, %v932
        %v935 = vmax.f32 %v929, %v933
        %v936 = vpack.c.bf16 %v935, %v934
        %v938 = vunpack.c.l.b16 %v936
        %v939 = vunpack.c.h.b16 %v936
        %v940 = vpack.c.b16 %v938, %v938
        %v941 = vpack.c.b16 %v939, %v939
        %944 = vst [vmem:[%s177] sm:$0xf] %v940
        %945 = vst [vmem:[%s177 + $0x4] sm:$0xf] %v941
        %s946 = sand.u32 %s90, 1
        %s947 = sand.u32 %s90, 1
        %s948 = smul.addr %s947, 8
        %s949 = scalar_lea.vmem [#allocation2], %s948
        // Predicated region
        $region33: #{distinguish_forward.6} parent=31 // pred_check
          %p950 = pneg %p100
        $region34: #{distinguish_forward.6} parent=31 // pred_check_branch
          %952 = sbr.rel (%p950) target = $region36
        $region35: #{distinguish_forward.6} parent=31 // pred_region
          %s953 = smul.u32 2, %s14
          %s954 = ssub.s32 3, %s953
          %p955 = scmp.lt.s32.totalorder %s954, 2
          %s956 = scalar_select %p955, %s954, 2
          %s957 = smul.u32 64, %s956
          %p958 = scmp.ne.s32.totalorder 0, %s957
          %s959 = smul.addr %s953, 4
          %s960 = scalar_lea.vmem %s3, %s959
          // Predicated region
          $region37: #{distinguish_forward.6} parent=35 // pred_check
            %p961 = pneg %p958
          $region38: #{distinguish_forward.6} parent=35 // pred_check_branch
            %963 = sbr.rel (%p961) target = $region40
          $region39: #{distinguish_forward.6} parent=35 // pred_region
            // Predicated region
            $region41: #{distinguish_forward.6} parent=39 // pred_check
              _
            $region42: #{distinguish_forward.6} parent=39 // pred_check_branch
              %965 = sbr.rel target = $region44
            $region43: #{distinguish_forward.6} parent=39 // pred_region
              // Predicated region
              $region63: #{distinguish_forward.6} parent=43 // pred_check
                _
              $region64: #{distinguish_forward.6} parent=43 // pred_check_branch
                %1016 = sbr.rel (0) target = $region66
              $region65: #{distinguish_forward.6} parent=43 // pred_region
                %s1018 = sshrl.u32 %s956, 1
                // While loop
                $region67: #{distinguish_forward.6} parent=65 // loop_pre_header
                  _
                $region68: #{distinguish_forward.6} parent=65 // loop_header
                  %s1020 = sphi 0, %s1022
                  %p1021 = scmp.ge.s32.totalorder %s1020, %s1018
                  %s1025 = sphi 0, %s1034
                  %s1026 = sphi %s949, %s1037
                  %s1027 = sphi %s960, %s1038
                $region69: #{distinguish_forward.6} parent=65 // loop_header_branch
                  %1024 = sbr.rel (%p1021) target = $region73
                $region70: #{distinguish_forward.6} parent=65 // loop_body
                  %v1028 = vld [vmem:[%s1026] sm:$0xf]
                  %1029 = vst [vmem:[%s1027] sm:$0xf] %v1028
                  %v1030 = vld [vmem:[%s1026 + $0x4] sm:$0xf]
                  %1031 = vst [vmem:[%s1027 + $0x4] sm:$0xf] %v1030
                  %s1032 = sadd.s32 1, %s1025
                  %p1033 = scmp.ge.s32.totalorder %s1032, %s1018
                  %s1034 = scalar_select %p1033, 0, %s1032
                  %s1035 = smul.u32 %s1034, 8
                  %s1036 = smul.u32 %s1034, 8
                  %s1037 = scalar_lea.vmem %s949, %s1035 [#allocation2]
                  %s1038 = scalar_lea.vmem %s960, %s1036
                $region71: #{distinguish_forward.6} parent=65 // loop_footer
                  %s1022 = sadd.s32 %s1020, 1
                $region72: #{distinguish_forward.6} parent=65 // loop_footer_branch
                  %1019 = sbr.rel target = $region68
                $region73: #{distinguish_forward.6} parent=65 // loop_exit
                  _
                %s1039 = sshrl.u32 %s956, 1
                %s1040 = sand.u32 %s956, 1
                %s1041 = smul.u32 %s1039, 2
                %s1042 = smul.u32 4, %s1041
                %s1043 = scalar_lea.vmem %s949, %s1042 [#allocation2]
                %s1044 = smul.u32 4, %s1041
                %s1045 = scalar_lea.vmem %s960, %s1044
                // While loop
                $region74: #{distinguish_forward.6} parent=65 // loop_pre_header
                  _
                $region75: #{distinguish_forward.6} parent=65 // loop_header
                  %s1047 = sphi 0, %s1049
                  %p1048 = scmp.ge.s32.totalorder %s1047, %s1040
                  %s1052 = sphi 0, %s1059
                  %s1053 = sphi %s1043, %s1062
                  %s1054 = sphi %s1045, %s1063
                $region76: #{distinguish_forward.6} parent=65 // loop_header_branch
                  %1051 = sbr.rel (%p1048) target = $region80
                $region77: #{distinguish_forward.6} parent=65 // loop_body
                  %v1055 = vld [vmem:[%s1053] sm:$0xf]
                  %1056 = vst [vmem:[%s1054] sm:$0xf] %v1055
                  %s1057 = sadd.s32 1, %s1052
                  %p1058 = scmp.ge.s32.totalorder %s1057, %s1040
                  %s1059 = scalar_select %p1058, 0, %s1057
                  %s1060 = smul.u32 %s1059, 4
                  %s1061 = smul.u32 %s1059, 4
                  %s1062 = scalar_lea.vmem %s1043, %s1060 [#allocation2]
                  %s1063 = scalar_lea.vmem %s1045, %s1061
                $region78: #{distinguish_forward.6} parent=65 // loop_footer
                  %s1049 = sadd.s32 %s1047, 1
                $region79: #{distinguish_forward.6} parent=65 // loop_footer_branch
                  %1046 = sbr.rel target = $region75
                $region80: #{distinguish_forward.6} parent=65 // loop_exit
                  _
              $region66: #{distinguish_forward.6} parent=43 // pred_fallthru
                _
            $region44: #{distinguish_forward.6} parent=39 // pred_fallthru
              _
            // Predicated region
            $region45: #{distinguish_forward.6} parent=39 // pred_check
              _
            $region46: #{distinguish_forward.6} parent=39 // pred_check_branch
              %967 = sbr.rel (0) target = $region48
            $region47: #{distinguish_forward.6} parent=39 // pred_region
              %s969 = sshrl.u32 %s956, 1
              // While loop
              $region49: #{distinguish_forward.6} parent=47 // loop_pre_header
                _
              $region50: #{distinguish_forward.6} parent=47 // loop_header
                %s971 = sphi 0, %s973
                %p972 = scmp.ge.s32.totalorder %s971, %s969
                %s976 = sphi 0, %s985
                %s977 = sphi %s949, %s988
                %s978 = sphi %s960, %s989
              $region51: #{distinguish_forward.6} parent=47 // loop_header_branch
                %975 = sbr.rel (%p972) target = $region55
              $region52: #{distinguish_forward.6} parent=47 // loop_body
                %v979 = vld [vmem:[%s977] sm:$0xf]
                %980 = vst [vmem:[%s978] sm:$0xf] %v979
                %v981 = vld [vmem:[%s977 + $0x4] sm:$0xf]
                %982 = vst [vmem:[%s978 + $0x4] sm:$0xf] %v981
                %s983 = sadd.s32 1, %s976
                %p984 = scmp.ge.s32.totalorder %s983, %s969
                %s985 = scalar_select %p984, 0, %s983
                %s986 = smul.u32 %s985, 8
                %s987 = smul.u32 %s985, 8
                %s988 = scalar_lea.vmem %s949, %s986 [#allocation2]
                %s989 = scalar_lea.vmem %s960, %s987
              $region53: #{distinguish_forward.6} parent=47 // loop_footer
                %s973 = sadd.s32 %s971, 1
              $region54: #{distinguish_forward.6} parent=47 // loop_footer_branch
                %970 = sbr.rel target = $region50
              $region55: #{distinguish_forward.6} parent=47 // loop_exit
                _
              %s990 = sshrl.u32 %s956, 1
              %s991 = sand.u32 %s956, 1
              %s992 = smul.u32 %s990, 2
              %s993 = smul.u32 4, %s992
              %s994 = scalar_lea.vmem %s949, %s993 [#allocation2]
              %s995 = smul.u32 4, %s992
              %s996 = scalar_lea.vmem %s960, %s995
              // While loop
              $region56: #{distinguish_forward.6} parent=47 // loop_pre_header
                _
              $region57: #{distinguish_forward.6} parent=47 // loop_header
                %s998 = sphi 0, %s1000
                %p999 = scmp.ge.s32.totalorder %s998, %s991
                %s1003 = sphi 0, %s1010
                %s1004 = sphi %s994, %s1013
                %s1005 = sphi %s996, %s1014
              $region58: #{distinguish_forward.6} parent=47 // loop_header_branch
                %1002 = sbr.rel (%p999) target = $region62
              $region59: #{distinguish_forward.6} parent=47 // loop_body
                %v1006 = vld [vmem:[%s1004] sm:$0xf]
                %1007 = vst [vmem:[%s1005] sm:$0xf] %v1006
                %s1008 = sadd.s32 1, %s1003
                %p1009 = scmp.ge.s32.totalorder %s1008, %s991
                %s1010 = scalar_select %p1009, 0, %s1008
                %s1011 = smul.u32 %s1010, 4
                %s1012 = smul.u32 %s1010, 4
                %s1013 = scalar_lea.vmem %s994, %s1011 [#allocation2]
                %s1014 = scalar_lea.vmem %s996, %s1012
              $region60: #{distinguish_forward.6} parent=47 // loop_footer
                %s1000 = sadd.s32 %s998, 1
              $region61: #{distinguish_forward.6} parent=47 // loop_footer_branch
                %997 = sbr.rel target = $region57
              $region62: #{distinguish_forward.6} parent=47 // loop_exit
                _
            $region48: #{distinguish_forward.6} parent=39 // pred_fallthru
              _
          $region40: #{distinguish_forward.6} parent=35 // pred_fallthru
            _
          %1064 = vnop
        $region36: #{distinguish_forward.6} parent=31 // pred_fallthru
          _
      $region32: #{distinguish_forward.6} parent=5 // pred_fallthru
        _
      %p1065 = scmp.le.s32.totalorder 2, %s9
      // Predicated region
      $region81: #{distinguish_forward.6} parent=5 // pred_check
        %p1066 = pneg %p1065
      $region82: #{distinguish_forward.6} parent=5 // pred_check_branch
        %1068 = sbr.rel (%p1066) target = $region84
      $region83: #{distinguish_forward.6} parent=5 // pred_region
        %s1069 = ssub.s32 %s9, 2
        // Predicated region
        $region85: #{distinguish_forward.6} parent=83 // pred_check
          %p1070 = pneg %p106
        $region86: #{distinguish_forward.6} parent=83 // pred_check_branch
          %1072 = sbr.rel (%p1070) target = $region88
        $region87: #{distinguish_forward.6} parent=83 // pred_region
          %s1073 = sand.u32 %s91, 1
          %s1074 = sand.u32 %s91, 1
          %s1075 = smul.addr %s1074, 8
          %s1076 = scalar_lea.vmem [#allocation2], %s1075
        $region88: #{distinguish_forward.6} parent=83 // pred_fallthru
          _
      $region84: #{distinguish_forward.6} parent=5 // pred_fallthru
        _
    $region6: #{distinguish_forward.6} parent=1 // loop_footer
      %s13 = sadd.s32 1, %s9
    $region7: #{distinguish_forward.6} parent=1 // loop_footer_branch
      %8 = sbr.rel target = $region3
    $region8: #{distinguish_forward.6} parent=1 // loop_exit
      _

// kernel: distinguish_forward.7
$region0: #{distinguish_forward.7}
  #allocation0 [shape = 'u32[]', space=smem, size = 0x4, offset = 0x4, fixed_abs, tag = 'smem constant byte address 0x4 - core index']
  #allocation1 [shape = 'u32[144,128]{1,0:T(1,128)}', space=vmem, size = 0x12000, scoped, tag = 'internal scratch']
  #allocation2 [shape = 'f32[1,1]{1,0:T(1,128)S(1)}', space=vmem, size = 0x200, scoped, tag = 'scoped memory for distinguish_forward.7']
  %s0 = inlined_call_operand.vmem [shape: bf16[2,1152], index: 0, kind: input, shape index: {}]
  %s1 = inlined_call_operand.vmem [shape: bf16[1152,256], index: 1, kind: input, shape index: {}]
  %s2 = inlined_call_operand.vmem [shape: f32[1,256], index: 2, kind: input, shape index: {}]
  %s3 = inlined_call_operand.vmem [shape: f32[1,256], index: 3, kind: input, shape index: {}]
  %s4 = inlined_call_operand.<no memory space> [shape: f32[1,1], index: 4, kind: input, shape index: {}]
  %s5 = inlined_call_operand.vmem [shape: f32[2,1], index: 5, kind: output, shape index: {}]
  %s6 = sld [smem:[#allocation0]]
  $region30: #{distinguish_forward.7} parent=0
    _
  %s8 = ssub.s32 1, %s6
  %s9 = scalar_select 0, %s8, %s6
  %v10 = vstv %s4
  %11 = vst [vmem:[#allocation2] sm:$0x1] %v10
  // Predicated region
  $region2: #{distinguish_forward.7} parent=0 // pred_check
    _
  $region3: #{distinguish_forward.7} parent=0 // pred_check_branch
    %13 = sbr.rel (0) target = $region5
  $region4: #{distinguish_forward.7} parent=0 // pred_region
    _
  $region5: #{distinguish_forward.7} parent=0 // pred_fallthru
    _
  // Predicated region
  $region6: #{distinguish_forward.7} parent=0 // pred_check
    _
  $region7: #{distinguish_forward.7} parent=0 // pred_check_branch
    %15 = sbr.rel (0) target = $region9
  $region8: #{distinguish_forward.7} parent=0 // pred_region
    _
  $region9: #{distinguish_forward.7} parent=0 // pred_fallthru
    _
  // Predicated region
  $region10: #{distinguish_forward.7} parent=0 // pred_check
    _
  $region11: #{distinguish_forward.7} parent=0 // pred_check_branch
    %17 = sbr.rel (0) target = $region13
  $region12: #{distinguish_forward.7} parent=0 // pred_region
    _
  $region13: #{distinguish_forward.7} parent=0 // pred_fallthru
    _
  // Predicated region
  $region14: #{distinguish_forward.7} parent=0 // pred_check
    _
  $region15: #{distinguish_forward.7} parent=0 // pred_check_branch
    %19 = sbr.rel (0) target = $region17
  $region16: #{distinguish_forward.7} parent=0 // pred_region
    _
  $region17: #{distinguish_forward.7} parent=0 // pred_fallthru
    _
  // Predicated region
  $region18: #{distinguish_forward.7} parent=0 // pred_check
    _
  $region19: #{distinguish_forward.7} parent=0 // pred_check_branch
    %21 = sbr.rel (0) target = $region21
  $region20: #{distinguish_forward.7} parent=0 // pred_region
    _
  $region21: #{distinguish_forward.7} parent=0 // pred_fallthru
    _
  %v23 = vld [vmem:[%s0] sm:$0xff]
  %v24 = vld [vmem:[%s0 + $0x8] sm:$0x1]
  %v25 = vld [vmem:[%s1] sm:$0xff]
  %v26 = vld [vmem:[%s1 + $0x8] sm:$0xff]
  %v27 = vld [vmem:[%s1 + $0x10] sm:$0xff]
  %v28 = vld [vmem:[%s1 + $0x18] sm:$0xff]
  %v29 = vld [vmem:[%s1 + $0x20] sm:$0xff]
  %v30 = vld [vmem:[%s1 + $0x28] sm:$0xff]
  %v31 = vld [vmem:[%s1 + $0x30] sm:$0xff]
  %v32 = vld [vmem:[%s1 + $0x38] sm:$0xff]
  %v33 = vld [vmem:[%s1 + $0x40] sm:$0xff]
  %v34 = vld [vmem:[%s1 + $0x48] sm:$0xff]
  %v35 = vld [vmem:[%s1 + $0x50] sm:$0xff]
  %v36 = vld [vmem:[%s1 + $0x58] sm:$0xff]
  %v37 = vld [vmem:[%s1 + $0x60] sm:$0xff]
  %v38 = vld [vmem:[%s1 + $0x68] sm:$0xff]
  %v39 = vld [vmem:[%s1 + $0x70] sm:$0xff]
  %v40 = vld [vmem:[%s1 + $0x78] sm:$0xff]
  %v41 = vld [vmem:[%s1 + $0x80] sm:$0xff]
  %v42 = vld [vmem:[%s1 + $0x88] sm:$0xff]
  %v43 = vld [vmem:[%s1 + $0x90] sm:$0xff]
  %v44 = vld [vmem:[%s1 + $0x98] sm:$0xff]
  %v45 = vld [vmem:[%s1 + $0xa0] sm:$0xff]
  %v46 = vld [vmem:[%s1 + $0xa8] sm:$0xff]
  %v47 = vld [vmem:[%s1 + $0xb0] sm:$0xff]
  %v48 = vld [vmem:[%s1 + $0xb8] sm:$0xff]
  %v49 = vld [vmem:[%s1 + $0xc0] sm:$0xff]
  %v50 = vld [vmem:[%s1 + $0xc8] sm:$0xff]
  %v51 = vld [vmem:[%s1 + $0xd0] sm:$0xff]
  %v52 = vld [vmem:[%s1 + $0xd8] sm:$0xff]
  %v53 = vld [vmem:[%s1 + $0xe0] sm:$0xff]
  %v54 = vld [vmem:[%s1 + $0xe8] sm:$0xff]
  %v55 = vld [vmem:[%s1 + $0xf0] sm:$0xff]
  %v56 = vld [vmem:[%s1 + $0xf8] sm:$0xff]
  %v57 = vld [vmem:[%s1 + $0x100] sm:$0xff]
  %v58 = vld [vmem:[%s1 + $0x108] sm:$0xff]
  %v59 = vld [vmem:[%s1 + $0x110] sm:$0xff]
  %v60 = vld [vmem:[%s1 + $0x118] sm:$0xff]
  %v61 = vld [vmem:[%s1 + $0x120] sm:$0xff]
  %v62 = vld [vmem:[%s1 + $0x128] sm:$0xff]
  %v63 = vld [vmem:[%s1 + $0x130] sm:$0xff]
  %v64 = vld [vmem:[%s1 + $0x138] sm:$0xff]
  %v65 = vld [vmem:[%s1 + $0x140] sm:$0xff]
  %v66 = vld [vmem:[%s1 + $0x148] sm:$0xff]
  %v67 = vld [vmem:[%s1 + $0x150] sm:$0xff]
  %v68 = vld [vmem:[%s1 + $0x158] sm:$0xff]
  %v69 = vld [vmem:[%s1 + $0x160] sm:$0xff]
  %v70 = vld [vmem:[%s1 + $0x168] sm:$0xff]
  %v71 = vld [vmem:[%s1 + $0x170] sm:$0xff]
  %v72 = vld [vmem:[%s1 + $0x178] sm:$0xff]
  %v73 = vld [vmem:[%s1 + $0x180] sm:$0xff]
  %v74 = vld [vmem:[%s1 + $0x188] sm:$0xff]
  %v75 = vld [vmem:[%s1 + $0x190] sm:$0xff]
  %v76 = vld [vmem:[%s1 + $0x198] sm:$0xff]
  %v77 = vld [vmem:[%s1 + $0x1a0] sm:$0xff]
  %v78 = vld [vmem:[%s1 + $0x1a8] sm:$0xff]
  %v79 = vld [vmem:[%s1 + $0x1b0] sm:$0xff]
  %v80 = vld [vmem:[%s1 + $0x1b8] sm:$0xff]
  %v81 = vld [vmem:[%s1 + $0x1c0] sm:$0xff]
  %v82 = vld [vmem:[%s1 + $0x1c8] sm:$0xff]
  %v83 = vld [vmem:[%s1 + $0x1d0] sm:$0xff]
  %v84 = vld [vmem:[%s1 + $0x1d8] sm:$0xff]
  %v85 = vld [vmem:[%s1 + $0x1e0] sm:$0xff]
  %v86 = vld [vmem:[%s1 + $0x1e8] sm:$0xff]
  %v87 = vld [vmem:[%s1 + $0x1f0] sm:$0xff]
  %v88 = vld [vmem:[%s1 + $0x1f8] sm:$0xff]
  %v89 = vld [vmem:[%s1 + $0x200] sm:$0xff]
  %v90 = vld [vmem:[%s1 + $0x208] sm:$0xff]
  %v91 = vld [vmem:[%s1 + $0x210] sm:$0xff]
  %v92 = vld [vmem:[%s1 + $0x218] sm:$0xff]
  %v93 = vld [vmem:[%s1 + $0x220] sm:$0xff]
  %v94 = vld [vmem:[%s1 + $0x228] sm:$0xff]
  %v95 = vld [vmem:[%s1 + $0x230] sm:$0xff]
  %v96 = vld [vmem:[%s1 + $0x238] sm:$0xff]
  %v97 = vld [vmem:[%s1 + $0x240] sm:$0xff]
  %v98 = vld [vmem:[%s1 + $0x248] sm:$0xff]
  %v99 = vld [vmem:[%s1 + $0x250] sm:$0xff]
  %v100 = vld [vmem:[%s1 + $0x258] sm:$0xff]
  %v101 = vld [vmem:[%s1 + $0x260] sm:$0xff]
  %v102 = vld [vmem:[%s1 + $0x268] sm:$0xff]
  %v103 = vld [vmem:[%s1 + $0x270] sm:$0xff]
  %v104 = vld [vmem:[%s1 + $0x278] sm:$0xff]
  %v105 = vld [vmem:[%s1 + $0x280] sm:$0xff]
  %v106 = vld [vmem:[%s1 + $0x288] sm:$0xff]
  %v107 = vld [vmem:[%s1 + $0x290] sm:$0xff]
  %v108 = vld [vmem:[%s1 + $0x298] sm:$0xff]
  %v109 = vld [vmem:[%s1 + $0x2a0] sm:$0xff]
  %v110 = vld [vmem:[%s1 + $0x2a8] sm:$0xff]
  %v111 = vld [vmem:[%s1 + $0x2b0] sm:$0xff]
  %v112 = vld [vmem:[%s1 + $0x2b8] sm:$0xff]
  %v113 = vld [vmem:[%s1 + $0x2c0] sm:$0xff]
  %v114 = vld [vmem:[%s1 + $0x2c8] sm:$0xff]
  %v115 = vld [vmem:[%s1 + $0x2d0] sm:$0xff]
  %v116 = vld [vmem:[%s1 + $0x2d8] sm:$0xff]
  %v117 = vld [vmem:[%s1 + $0x2e0] sm:$0xff]
  %v118 = vld [vmem:[%s1 + $0x2e8] sm:$0xff]
  %v119 = vld [vmem:[%s1 + $0x2f0] sm:$0xff]
  %v120 = vld [vmem:[%s1 + $0x2f8] sm:$0xff]
  %v121 = vld [vmem:[%s1 + $0x300] sm:$0xff]
  %v122 = vld [vmem:[%s1 + $0x308] sm:$0xff]
  %v123 = vld [vmem:[%s1 + $0x310] sm:$0xff]
  %v124 = vld [vmem:[%s1 + $0x318] sm:$0xff]
  %v125 = vld [vmem:[%s1 + $0x320] sm:$0xff]
  %v126 = vld [vmem:[%s1 + $0x328] sm:$0xff]
  %v127 = vld [vmem:[%s1 + $0x330] sm:$0xff]
  %v128 = vld [vmem:[%s1 + $0x338] sm:$0xff]
  %v129 = vld [vmem:[%s1 + $0x340] sm:$0xff]
  %v130 = vld [vmem:[%s1 + $0x348] sm:$0xff]
  %v131 = vld [vmem:[%s1 + $0x350] sm:$0xff]
  %v132 = vld [vmem:[%s1 + $0x358] sm:$0xff]
  %v133 = vld [vmem:[%s1 + $0x360] sm:$0xff]
  %v134 = vld [vmem:[%s1 + $0x368] sm:$0xff]
  %v135 = vld [vmem:[%s1 + $0x370] sm:$0xff]
  %v136 = vld [vmem:[%s1 + $0x378] sm:$0xff]
  %v137 = vld [vmem:[%s1 + $0x380] sm:$0xff]
  %v138 = vld [vmem:[%s1 + $0x388] sm:$0xff]
  %v139 = vld [vmem:[%s1 + $0x390] sm:$0xff]
  %v140 = vld [vmem:[%s1 + $0x398] sm:$0xff]
  %v141 = vld [vmem:[%s1 + $0x3a0] sm:$0xff]
  %v142 = vld [vmem:[%s1 + $0x3a8] sm:$0xff]
  %v143 = vld [vmem:[%s1 + $0x3b0] sm:$0xff]
  %v144 = vld [vmem:[%s1 + $0x3b8] sm:$0xff]
  %v145 = vld [vmem:[%s1 + $0x3c0] sm:$0xff]
  %v146 = vld [vmem:[%s1 + $0x3c8] sm:$0xff]
  %v147 = vld [vmem:[%s1 + $0x3d0] sm:$0xff]
  %v148 = vld [vmem:[%s1 + $0x3d8] sm:$0xff]
  %v149 = vld [vmem:[%s1 + $0x3e0] sm:$0xff]
  %v150 = vld [vmem:[%s1 + $0x3e8] sm:$0xff]
  %v151 = vld [vmem:[%s1 + $0x3f0] sm:$0xff]
  %v152 = vld [vmem:[%s1 + $0x3f8] sm:$0xff]
  %v153 = vld [vmem:[%s1 + $0x400] sm:$0xff]
  %v154 = vld [vmem:[%s1 + $0x408] sm:$0xff]
  %v155 = vld [vmem:[%s1 + $0x410] sm:$0xff]
  %v156 = vld [vmem:[%s1 + $0x418] sm:$0xff]
  %v157 = vld [vmem:[%s1 + $0x420] sm:$0xff]
  %v158 = vld [vmem:[%s1 + $0x428] sm:$0xff]
  %v159 = vld [vmem:[%s1 + $0x430] sm:$0xff]
  %v160 = vld [vmem:[%s1 + $0x438] sm:$0xff]
  %v161 = vld [vmem:[%s1 + $0x440] sm:$0xff]
  %v162 = vld [vmem:[%s1 + $0x448] sm:$0xff]
  %v163 = vld [vmem:[%s1 + $0x450] sm:$0xff]
  %v164 = vld [vmem:[%s1 + $0x458] sm:$0xff]
  %v165 = vld [vmem:[%s1 + $0x460] sm:$0xff]
  %v166 = vld [vmem:[%s1 + $0x468] sm:$0xff]
  %v167 = vld [vmem:[%s1 + $0x470] sm:$0xff]
  %v168 = vld [vmem:[%s1 + $0x478] sm:$0xff]
  %v169 = vld [vmem:[%s2] sm:$0x3]
  %v171 = vlaneseq
  %v172 = vshrl.u32 %v171, 7
  %v173 = vsub.s32 0, %v172
  %v174 = vrot.slane %v169, %v173
  %v175 = vlaneseq
  %v176 = vshrl.u32 %v175, 7
  %v177 = vsub.s32 1, %v176
  %v178 = vrot.slane %v169, %v177
  %v183 = vcombine.high %v23, %v23
  %v185 = vunpack.c.l.s4 1966171168
  %v186 = vunpack.c.0.s8 %v185
  %v187 = vlaneseq
  %v188 = vshrl.u32 %v187, 7
  %v189 = vsub.s32 %v186, %v188
  %v190 = vrot.slane %v23, %v189
  %v192 = vunpack.c.l.s4 1966171168
  %v193 = vunpack.c.0.s8 %v192
  %v194 = vlaneseq
  %v195 = vshrl.u32 %v194, 7
  %v196 = vsub.s32 %v193, %v195
  %v197 = vrot.slane %v183, %v196
  %v198 = vcombine.high %v190, %v190
  %v199 = vcombine.high %v197, %v197
  %v201 = vunpack.c.l.s4 1966171168
  %v202 = vunpack.c.0.s8 %v201
  %v203 = vlaneseq
  %v204 = vshrl.u32 %v203, 7
  %v205 = vsub.s32 %v202, %v204
  %v206 = vrot.slane %v190, %v205
  %v208 = vunpack.c.l.s4 1966171168
  %v209 = vunpack.c.0.s8 %v208
  %v210 = vlaneseq
  %v211 = vshrl.u32 %v210, 7
  %v212 = vsub.s32 %v209, %v211
  %v213 = vrot.slane %v197, %v212
  %v215 = vunpack.c.l.s4 1966171168
  %v216 = vunpack.c.0.s8 %v215
  %v217 = vlaneseq
  %v218 = vshrl.u32 %v217, 7
  %v219 = vsub.s32 %v216, %v218
  %v220 = vrot.slane %v198, %v219
  %v222 = vunpack.c.l.s4 1966171168
  %v223 = vunpack.c.0.s8 %v222
  %v224 = vlaneseq
  %v225 = vshrl.u32 %v224, 7
  %v226 = vsub.s32 %v223, %v225
  %v227 = vrot.slane %v199, %v226
  %v228 = vcombine.high %v206, %v206
  %v229 = vcombine.high %v213, %v213
  %v230 = vcombine.high %v220, %v220
  %v231 = vcombine.high %v227, %v227
  %v233 = vunpack.c.l.s4 1966171168
  %v234 = vunpack.c.0.s8 %v233
  %v235 = vlaneseq
  %v236 = vshrl.u32 %v235, 7
  %v237 = vsub.s32 %v234, %v236
  %v238 = vrot.slane %v24, %v237
  %v240 = vunpack.c.l.s4 1966171168
  %v241 = vunpack.c.0.s8 %v240
  %v242 = vlaneseq
  %v243 = vshrl.u32 %v242, 7
  %v244 = vsub.s32 %v241, %v243
  %v245 = vrot.slane %v238, %v244
  %v399 = vunpack.c.l.b16 %v25
  %v400 = vunpack.c.h.b16 %v25
  %v401 = vunpack.c.l.b16 %v26
  %v402 = vunpack.c.h.b16 %v26
  %v403 = vunpack.c.l.b16 %v27
  %v404 = vunpack.c.h.b16 %v27
  %v405 = vunpack.c.l.b16 %v28
  %v406 = vunpack.c.h.b16 %v28
  %v407 = vunpack.c.l.b16 %v29
  %v408 = vunpack.c.h.b16 %v29
  %v409 = vunpack.c.l.b16 %v30
  %v410 = vunpack.c.h.b16 %v30
  %v411 = vunpack.c.l.b16 %v31
  %v412 = vunpack.c.h.b16 %v31
  %v413 = vunpack.c.l.b16 %v32
  %v414 = vunpack.c.h.b16 %v32
  %v415 = vunpack.c.l.b16 %v33
  %v416 = vunpack.c.h.b16 %v33
  %v417 = vunpack.c.l.b16 %v34
  %v418 = vunpack.c.h.b16 %v34
  %v419 = vunpack.c.l.b16 %v35
  %v420 = vunpack.c.h.b16 %v35
  %v421 = vunpack.c.l.b16 %v36
  %v422 = vunpack.c.h.b16 %v36
  %v423 = vunpack.c.l.b16 %v37
  %v424 = vunpack.c.h.b16 %v37
  %v425 = vunpack.c.l.b16 %v38
  %v426 = vunpack.c.h.b16 %v38
  %v427 = vunpack.c.l.b16 %v39
  %v428 = vunpack.c.h.b16 %v39
  %v429 = vunpack.c.l.b16 %v40
  %v430 = vunpack.c.h.b16 %v40
  %v431 = vunpack.c.l.b16 %v41
  %v432 = vunpack.c.h.b16 %v41
  %v433 = vunpack.c.l.b16 %v42
  %v434 = vunpack.c.h.b16 %v42
  %v435 = vunpack.c.l.b16 %v43
  %v436 = vunpack.c.h.b16 %v43
  %v437 = vunpack.c.l.b16 %v44
  %v438 = vunpack.c.h.b16 %v44
  %v439 = vunpack.c.l.b16 %v45
  %v440 = vunpack.c.h.b16 %v45
  %v441 = vunpack.c.l.b16 %v46
  %v442 = vunpack.c.h.b16 %v46
  %v443 = vunpack.c.l.b16 %v47
  %v444 = vunpack.c.h.b16 %v47
  %v445 = vunpack.c.l.b16 %v48
  %v446 = vunpack.c.h.b16 %v48
  %v447 = vunpack.c.l.b16 %v49
  %v448 = vunpack.c.h.b16 %v49
  %v449 = vunpack.c.l.b16 %v50
  %v450 = vunpack.c.h.b16 %v50
  %v451 = vunpack.c.l.b16 %v51
  %v452 = vunpack.c.h.b16 %v51
  %v453 = vunpack.c.l.b16 %v52
  %v454 = vunpack.c.h.b16 %v52
  %v455 = vunpack.c.l.b16 %v53
  %v456 = vunpack.c.h.b16 %v53
  %v457 = vunpack.c.l.b16 %v54
  %v458 = vunpack.c.h.b16 %v54
  %v459 = vunpack.c.l.b16 %v55
  %v460 = vunpack.c.h.b16 %v55
  %v461 = vunpack.c.l.b16 %v56
  %v462 = vunpack.c.h.b16 %v56
  %v463 = vunpack.c.l.b16 %v57
  %v464 = vunpack.c.h.b16 %v57
  %v465 = vunpack.c.l.b16 %v58
  %v466 = vunpack.c.h.b16 %v58
  %v467 = vunpack.c.l.b16 %v59
  %v468 = vunpack.c.h.b16 %v59
  %v469 = vunpack.c.l.b16 %v60
  %v470 = vunpack.c.h.b16 %v60
  %v471 = vunpack.c.l.b16 %v61
  %v472 = vunpack.c.h.b16 %v61
  %v473 = vunpack.c.l.b16 %v62
  %v474 = vunpack.c.h.b16 %v62
  %v475 = vunpack.c.l.b16 %v63
  %v476 = vunpack.c.h.b16 %v63
  %v477 = vunpack.c.l.b16 %v64
  %v478 = vunpack.c.h.b16 %v64
  %v479 = vunpack.c.l.b16 %v65
  %v480 = vunpack.c.h.b16 %v65
  %v481 = vunpack.c.l.b16 %v66
  %v482 = vunpack.c.h.b16 %v66
  %v483 = vunpack.c.l.b16 %v67
  %v484 = vunpack.c.h.b16 %v67
  %v485 = vunpack.c.l.b16 %v68
  %v486 = vunpack.c.h.b16 %v68
  %v487 = vunpack.c.l.b16 %v69
  %v488 = vunpack.c.h.b16 %v69
  %v489 = vunpack.c.l.b16 %v70
  %v490 = vunpack.c.h.b16 %v70
  %v491 = vunpack.c.l.b16 %v71
  %v492 = vunpack.c.h.b16 %v71
  %v493 = vunpack.c.l.b16 %v72
  %v494 = vunpack.c.h.b16 %v72
  %v495 = vunpack.c.l.b16 %v73
  %v496 = vunpack.c.h.b16 %v73
  %v497 = vunpack.c.l.b16 %v74
  %v498 = vunpack.c.h.b16 %v74
  %v499 = vunpack.c.l.b16 %v75
  %v500 = vunpack.c.h.b16 %v75
  %v501 = vunpack.c.l.b16 %v76
  %v502 = vunpack.c.h.b16 %v76
  %v503 = vunpack.c.l.b16 %v77
  %v504 = vunpack.c.h.b16 %v77
  %v505 = vunpack.c.l.b16 %v78
  %v506 = vunpack.c.h.b16 %v78
  %v507 = vunpack.c.l.b16 %v79
  %v508 = vunpack.c.h.b16 %v79
  %v509 = vunpack.c.l.b16 %v80
  %v510 = vunpack.c.h.b16 %v80
  %v511 = vunpack.c.l.b16 %v81
  %v512 = vunpack.c.h.b16 %v81
  %v513 = vunpack.c.l.b16 %v82
  %v514 = vunpack.c.h.b16 %v82
  %v515 = vunpack.c.l.b16 %v83
  %v516 = vunpack.c.h.b16 %v83
  %v517 = vunpack.c.l.b16 %v84
  %v518 = vunpack.c.h.b16 %v84
  %v519 = vunpack.c.l.b16 %v85
  %v520 = vunpack.c.h.b16 %v85
  %v521 = vunpack.c.l.b16 %v86
  %v522 = vunpack.c.h.b16 %v86
  %v523 = vunpack.c.l.b16 %v87
  %v524 = vunpack.c.h.b16 %v87
  %v525 = vunpack.c.l.b16 %v88
  %v526 = vunpack.c.h.b16 %v88
  %v527 = vunpack.c.l.b16 %v89
  %v528 = vunpack.c.h.b16 %v89
  %v529 = vunpack.c.l.b16 %v90
  %v530 = vunpack.c.h.b16 %v90
  %v531 = vunpack.c.l.b16 %v91
  %v532 = vunpack.c.h.b16 %v91
  %v533 = vunpack.c.l.b16 %v92
  %v534 = vunpack.c.h.b16 %v92
  %v535 = vunpack.c.l.b16 %v93
  %v536 = vunpack.c.h.b16 %v93
  %v537 = vunpack.c.l.b16 %v94
  %v538 = vunpack.c.h.b16 %v94
  %v539 = vunpack.c.l.b16 %v95
  %v540 = vunpack.c.h.b16 %v95
  %v541 = vunpack.c.l.b16 %v96
  %v542 = vunpack.c.h.b16 %v96
  %v543 = vunpack.c.l.b16 %v97
  %v544 = vunpack.c.h.b16 %v97
  %v545 = vunpack.c.l.b16 %v98
  %v546 = vunpack.c.h.b16 %v98
  %v547 = vunpack.c.l.b16 %v99
  %v548 = vunpack.c.h.b16 %v99
  %v549 = vunpack.c.l.b16 %v100
  %v550 = vunpack.c.h.b16 %v100
  %v551 = vunpack.c.l.b16 %v101
  %v552 = vunpack.c.h.b16 %v101
  %v553 = vunpack.c.l.b16 %v102
  %v554 = vunpack.c.h.b16 %v102
  %v555 = vunpack.c.l.b16 %v103
  %v556 = vunpack.c.h.b16 %v103
  %v557 = vunpack.c.l.b16 %v104
  %v558 = vunpack.c.h.b16 %v104
  %v559 = vunpack.c.l.b16 %v105
  %v560 = vunpack.c.h.b16 %v105
  %v561 = vunpack.c.l.b16 %v106
  %v562 = vunpack.c.h.b16 %v106
  %v563 = vunpack.c.l.b16 %v107
  %v564 = vunpack.c.h.b16 %v107
  %v565 = vunpack.c.l.b16 %v108
  %v566 = vunpack.c.h.b16 %v108
  %v567 = vunpack.c.l.b16 %v109
  %v568 = vunpack.c.h.b16 %v109
  %v569 = vunpack.c.l.b16 %v110
  %v570 = vunpack.c.h.b16 %v110
  %v571 = vunpack.c.l.b16 %v111
  %v572 = vunpack.c.h.b16 %v111
  %v573 = vunpack.c.l.b16 %v112
  %v574 = vunpack.c.h.b16 %v112
  %v575 = vunpack.c.l.b16 %v113
  %v576 = vunpack.c.h.b16 %v113
  %v577 = vunpack.c.l.b16 %v114
  %v578 = vunpack.c.h.b16 %v114
  %v579 = vunpack.c.l.b16 %v115
  %v580 = vunpack.c.h.b16 %v115
  %v581 = vunpack.c.l.b16 %v116
  %v582 = vunpack.c.h.b16 %v116
  %v583 = vunpack.c.l.b16 %v117
  %v584 = vunpack.c.h.b16 %v117
  %v585 = vunpack.c.l.b16 %v118
  %v586 = vunpack.c.h.b16 %v118
  %v587 = vunpack.c.l.b16 %v119
  %v588 = vunpack.c.h.b16 %v119
  %v589 = vunpack.c.l.b16 %v120
  %v590 = vunpack.c.h.b16 %v120
  %v591 = vunpack.c.l.b16 %v121
  %v592 = vunpack.c.h.b16 %v121
  %v593 = vunpack.c.l.b16 %v122
  %v594 = vunpack.c.h.b16 %v122
  %v595 = vunpack.c.l.b16 %v123
  %v596 = vunpack.c.h.b16 %v123
  %v597 = vunpack.c.l.b16 %v124
  %v598 = vunpack.c.h.b16 %v124
  %v599 = vunpack.c.l.b16 %v125
  %v600 = vunpack.c.h.b16 %v125
  %v601 = vunpack.c.l.b16 %v126
  %v602 = vunpack.c.h.b16 %v126
  %v603 = vunpack.c.l.b16 %v127
  %v604 = vunpack.c.h.b16 %v127
  %v605 = vunpack.c.l.b16 %v128
  %v606 = vunpack.c.h.b16 %v128
  %v607 = vunpack.c.l.b16 %v129
  %v608 = vunpack.c.h.b16 %v129
  %v609 = vunpack.c.l.b16 %v130
  %v610 = vunpack.c.h.b16 %v130
  %v611 = vunpack.c.l.b16 %v131
  %v612 = vunpack.c.h.b16 %v131
  %v613 = vunpack.c.l.b16 %v132
  %v614 = vunpack.c.h.b16 %v132
  %v615 = vunpack.c.l.b16 %v133
  %v616 = vunpack.c.h.b16 %v133
  %v617 = vunpack.c.l.b16 %v134
  %v618 = vunpack.c.h.b16 %v134
  %v619 = vunpack.c.l.b16 %v135
  %v620 = vunpack.c.h.b16 %v135
  %v621 = vunpack.c.l.b16 %v136
  %v622 = vunpack.c.h.b16 %v136
  %v623 = vunpack.c.l.b16 %v137
  %v624 = vunpack.c.h.b16 %v137
  %v625 = vunpack.c.l.b16 %v138
  %v626 = vunpack.c.h.b16 %v138
  %v627 = vunpack.c.l.b16 %v139
  %v628 = vunpack.c.h.b16 %v139
  %v629 = vunpack.c.l.b16 %v140
  %v630 = vunpack.c.h.b16 %v140
  %v631 = vunpack.c.l.b16 %v141
  %v632 = vunpack.c.h.b16 %v141
  %v633 = vunpack.c.l.b16 %v142
  %v634 = vunpack.c.h.b16 %v142
  %v635 = vunpack.c.l.b16 %v143
  %v636 = vunpack.c.h.b16 %v143
  %v637 = vunpack.c.l.b16 %v144
  %v638 = vunpack.c.h.b16 %v144
  %v639 = vunpack.c.l.b16 %v145
  %v640 = vunpack.c.h.b16 %v145
  %v641 = vunpack.c.l.b16 %v146
  %v642 = vunpack.c.h.b16 %v146
  %v643 = vunpack.c.l.b16 %v147
  %v644 = vunpack.c.h.b16 %v147
  %v645 = vunpack.c.l.b16 %v148
  %v646 = vunpack.c.h.b16 %v148
  %v647 = vunpack.c.l.b16 %v149
  %v648 = vunpack.c.h.b16 %v149
  %v649 = vunpack.c.l.b16 %v150
  %v650 = vunpack.c.h.b16 %v150
  %v651 = vunpack.c.l.b16 %v151
  %v652 = vunpack.c.h.b16 %v151
  %v653 = vunpack.c.l.b16 %v152
  %v654 = vunpack.c.h.b16 %v152
  %v655 = vunpack.c.l.b16 %v153
  %v656 = vunpack.c.h.b16 %v153
  %v657 = vunpack.c.l.b16 %v154
  %v658 = vunpack.c.h.b16 %v154
  %v659 = vunpack.c.l.b16 %v155
  %v660 = vunpack.c.h.b16 %v155
  %v661 = vunpack.c.l.b16 %v156
  %v662 = vunpack.c.h.b16 %v156
  %v663 = vunpack.c.l.b16 %v157
  %v664 = vunpack.c.h.b16 %v157
  %v665 = vunpack.c.l.b16 %v158
  %v666 = vunpack.c.h.b16 %v158
  %v667 = vunpack.c.l.b16 %v159
  %v668 = vunpack.c.h.b16 %v159
  %v669 = vunpack.c.l.b16 %v160
  %v670 = vunpack.c.h.b16 %v160
  %v671 = vunpack.c.l.b16 %v161
  %v672 = vunpack.c.h.b16 %v161
  %v673 = vunpack.c.l.b16 %v162
  %v674 = vunpack.c.h.b16 %v162
  %v675 = vunpack.c.l.b16 %v163
  %v676 = vunpack.c.h.b16 %v163
  %v677 = vunpack.c.l.b16 %v164
  %v678 = vunpack.c.h.b16 %v164
  %v679 = vunpack.c.l.b16 %v165
  %v680 = vunpack.c.h.b16 %v165
  %v681 = vunpack.c.l.b16 %v166
  %v682 = vunpack.c.h.b16 %v166
  %v683 = vunpack.c.l.b16 %v167
  %v684 = vunpack.c.h.b16 %v167
  %v685 = vunpack.c.l.b16 %v168
  %v686 = vunpack.c.h.b16 %v168
  %v687 = vpack.c.b16 %v401, %v399
  %v688 = vpack.c.b16 %v402, %v400
  %v689 = vpack.c.b16 %v405, %v403
  %v690 = vpack.c.b16 %v406, %v404
  %v691 = vpack.c.b16 %v409, %v407
  %v692 = vpack.c.b16 %v410, %v408
  %v693 = vpack.c.b16 %v413, %v411
  %v694 = vpack.c.b16 %v414, %v412
  %v695 = vpack.c.b16 %v417, %v415
  %v696 = vpack.c.b16 %v418, %v416
  %v697 = vpack.c.b16 %v421, %v419
  %v698 = vpack.c.b16 %v422, %v420
  %v699 = vpack.c.b16 %v425, %v423
  %v700 = vpack.c.b16 %v426, %v424
  %v701 = vpack.c.b16 %v429, %v427
  %v702 = vpack.c.b16 %v430, %v428
  %v703 = vpack.c.b16 %v433, %v431
  %v704 = vpack.c.b16 %v434, %v432
  %v705 = vpack.c.b16 %v437, %v435
  %v706 = vpack.c.b16 %v438, %v436
  %v707 = vpack.c.b16 %v441, %v439
  %v708 = vpack.c.b16 %v442, %v440
  %v709 = vpack.c.b16 %v445, %v443
  %v710 = vpack.c.b16 %v446, %v444
  %v711 = vpack.c.b16 %v449, %v447
  %v712 = vpack.c.b16 %v450, %v448
  %v713 = vpack.c.b16 %v453, %v451
  %v714 = vpack.c.b16 %v454, %v452
  %v715 = vpack.c.b16 %v457, %v455
  %v716 = vpack.c.b16 %v458, %v456
  %v717 = vpack.c.b16 %v461, %v459
  %v718 = vpack.c.b16 %v462, %v460
  %v719 = vpack.c.b16 %v465, %v463
  %v720 = vpack.c.b16 %v466, %v464
  %v721 = vpack.c.b16 %v469, %v467
  %v722 = vpack.c.b16 %v470, %v468
  %v723 = vpack.c.b16 %v473, %v471
  %v724 = vpack.c.b16 %v474, %v472
  %v725 = vpack.c.b16 %v477, %v475
  %v726 = vpack.c.b16 %v478, %v476
  %v727 = vpack.c.b16 %v481, %v479
  %v728 = vpack.c.b16 %v482, %v480
  %v729 = vpack.c.b16 %v485, %v483
  %v730 = vpack.c.b16 %v486, %v484
  %v731 = vpack.c.b16 %v489, %v487
  %v732 = vpack.c.b16 %v490, %v488
  %v733 = vpack.c.b16 %v493, %v491
  %v734 = vpack.c.b16 %v494, %v492
  %v735 = vpack.c.b16 %v497, %v495
  %v736 = vpack.c.b16 %v498, %v496
  %v737 = vpack.c.b16 %v501, %v499
  %v738 = vpack.c.b16 %v502, %v500
  %v739 = vpack.c.b16 %v505, %v503
  %v740 = vpack.c.b16 %v506, %v504
  %v741 = vpack.c.b16 %v509, %v507
  %v742 = vpack.c.b16 %v510, %v508
  %v743 = vpack.c.b16 %v513, %v511
  %v744 = vpack.c.b16 %v514, %v512
  %v745 = vpack.c.b16 %v517, %v515
  %v746 = vpack.c.b16 %v518, %v516
  %v747 = vpack.c.b16 %v521, %v519
  %v748 = vpack.c.b16 %v522, %v520
  %v749 = vpack.c.b16 %v525, %v523
  %v750 = vpack.c.b16 %v526, %v524
  %v751 = vpack.c.b16 %v529, %v527
  %v752 = vpack.c.b16 %v530, %v528
  %v753 = vpack.c.b16 %v533, %v531
  %v754 = vpack.c.b16 %v534, %v532
  %v755 = vpack.c.b16 %v537, %v535
  %v756 = vpack.c.b16 %v538, %v536
  %v757 = vpack.c.b16 %v541, %v539
  %v758 = vpack.c.b16 %v542, %v540
  %v759 = vpack.c.b16 %v545, %v543
  %v760 = vpack.c.b16 %v546, %v544
  %v761 = vpack.c.b16 %v549, %v547
  %v762 = vpack.c.b16 %v550, %v548
  %v763 = vpack.c.b16 %v553, %v551
  %v764 = vpack.c.b16 %v554, %v552
  %v765 = vpack.c.b16 %v557, %v555
  %v766 = vpack.c.b16 %v558, %v556
  %v767 = vpack.c.b16 %v561, %v559
  %v768 = vpack.c.b16 %v562, %v560
  %v769 = vpack.c.b16 %v565, %v563
  %v770 = vpack.c.b16 %v566, %v564
  %v771 = vpack.c.b16 %v569, %v567
  %v772 = vpack.c.b16 %v570, %v568
  %v773 = vpack.c.b16 %v573, %v571
  %v774 = vpack.c.b16 %v574, %v572
  %v775 = vpack.c.b16 %v577, %v575
  %v776 = vpack.c.b16 %v578, %v576
  %v777 = vpack.c.b16 %v581, %v579
  %v778 = vpack.c.b16 %v582, %v580
  %v779 = vpack.c.b16 %v585, %v583
  %v780 = vpack.c.b16 %v586, %v584
  %v781 = vpack.c.b16 %v589, %v587
  %v782 = vpack.c.b16 %v590, %v588
  %v783 = vpack.c.b16 %v593, %v591
  %v784 = vpack.c.b16 %v594, %v592
  %v785 = vpack.c.b16 %v597, %v595
  %v786 = vpack.c.b16 %v598, %v596
  %v787 = vpack.c.b16 %v601, %v599
  %v788 = vpack.c.b16 %v602, %v600
  %v789 = vpack.c.b16 %v605, %v603
  %v790 = vpack.c.b16 %v606, %v604
  %v791 = vpack.c.b16 %v609, %v607
  %v792 = vpack.c.b16 %v610, %v608
  %v793 = vpack.c.b16 %v613, %v611
  %v794 = vpack.c.b16 %v614, %v612
  %v795 = vpack.c.b16 %v617, %v615
  %v796 = vpack.c.b16 %v618, %v616
  %v797 = vpack.c.b16 %v621, %v619
  %v798 = vpack.c.b16 %v622, %v620
  %v799 = vpack.c.b16 %v625, %v623
  %v800 = vpack.c.b16 %v626, %v624
  %v801 = vpack.c.b16 %v629, %v627
  %v802 = vpack.c.b16 %v630, %v628
  %v803 = vpack.c.b16 %v633, %v631
  %v804 = vpack.c.b16 %v634, %v632
  %v805 = vpack.c.b16 %v637, %v635
  %v806 = vpack.c.b16 %v638, %v636
  %v807 = vpack.c.b16 %v641, %v639
  %v808 = vpack.c.b16 %v642, %v640
  %v809 = vpack.c.b16 %v645, %v643
  %v810 = vpack.c.b16 %v646, %v644
  %v811 = vpack.c.b16 %v649, %v647
  %v812 = vpack.c.b16 %v650, %v648
  %v813 = vpack.c.b16 %v653, %v651
  %v814 = vpack.c.b16 %v654, %v652
  %v815 = vpack.c.b16 %v657, %v655
  %v816 = vpack.c.b16 %v658, %v656
  %v817 = vpack.c.b16 %v661, %v659
  %v818 = vpack.c.b16 %v662, %v660
  %v819 = vpack.c.b16 %v665, %v663
  %v820 = vpack.c.b16 %v666, %v664
  %v821 = vpack.c.b16 %v669, %v667
  %v822 = vpack.c.b16 %v670, %v668
  %v823 = vpack.c.b16 %v673, %v671
  %v824 = vpack.c.b16 %v674, %v672
  %v825 = vpack.c.b16 %v677, %v675
  %v826 = vpack.c.b16 %v678, %v676
  %v827 = vpack.c.b16 %v681, %v679
  %v828 = vpack.c.b16 %v682, %v680
  %v829 = vpack.c.b16 %v685, %v683
  %v830 = vpack.c.b16 %v686, %v684
  %975 = vmatprep.subr.bf16.mxu0 %v688
  %976 = vmatpush1.bf16.msra.mxu0 %v687
  %977 = vmatprep.subr.bf16.mxu0 %v690
  %978 = vmatpush1.bf16.msra.mxu0 %v689
  %979 = vmatprep.subr.bf16.mxu0 %v692
  %980 = vmatpush1.bf16.msra.mxu0 %v691
  %981 = vmatprep.subr.bf16.mxu0 %v694
  %982 = vmatpush1.bf16.msra.mxu0 %v693
  %983 = vmatprep.subr.bf16.mxu0 %v696
  %984 = vmatpush1.bf16.msra.mxu0 %v695
  %985 = vmatprep.subr.bf16.mxu0 %v698
  %986 = vmatpush1.bf16.msra.mxu0 %v697
  %987 = vmatprep.subr.bf16.mxu0 %v700
  %988 = vmatpush1.bf16.msra.mxu0 %v699
  %989 = vmatprep.subr.bf16.mxu0 %v702
  %990 = vmatpush1.bf16.msra.mxu0 %v701
  %991 = vmatprep.subr.bf16.mxu0 %v704
  %992 = vmatpush1.bf16.msra.mxu0 %v703
  %993 = vmatprep.subr.bf16.mxu0 %v706
  %994 = vmatpush1.bf16.msra.mxu0 %v705
  %995 = vmatprep.subr.bf16.mxu0 %v708
  %996 = vmatpush1.bf16.msra.mxu0 %v707
  %997 = vmatprep.subr.bf16.mxu0 %v710
  %998 = vmatpush1.bf16.msra.mxu0 %v709
  %999 = vmatprep.subr.bf16.mxu0 %v712
  %1000 = vmatpush1.bf16.msra.mxu0 %v711
  %1001 = vmatprep.subr.bf16.mxu0 %v714
  %1002 = vmatpush1.bf16.msra.mxu0 %v713
  %1003 = vmatprep.subr.bf16.mxu0 %v716
  %1004 = vmatpush1.bf16.msra.mxu0 %v715
  %1005 = vmatprep.subr.bf16.mxu0 %v718
  %1006 = vmatpush1.bf16.msra.mxu0 %v717
  %1007 = vmatprep.mubr.bf16.mxu0 %v220
  %1008 = vmatmul.mubr.bf16.gmra.mrb[0].mxu0 %v206
  %v1009 = vpop.f32.mrb[0].mxu0
  %v1010 = vadd.f32 %v174, %v1009
  %v1011 = vpop.f32.mrb[0].mxu0
  %v1012 = vadd.f32 %v178, %v1011
  %v1013 = vpop.f32.mrb[0].mxu0
  %v1014 = vpop.f32.mrb[0].mxu0
  %1015 = vdwg.mxu0
  %1016 = vmatprep.subr.bf16.mxu0 %v720
  %1017 = vmatpush1.bf16.msra.mxu0 %v719
  %1018 = vmatprep.subr.bf16.mxu0 %v722
  %1019 = vmatpush1.bf16.msra.mxu0 %v721
  %1020 = vmatprep.subr.bf16.mxu0 %v724
  %1021 = vmatpush1.bf16.msra.mxu0 %v723
  %1022 = vmatprep.subr.bf16.mxu0 %v726
  %1023 = vmatpush1.bf16.msra.mxu0 %v725
  %1024 = vmatprep.subr.bf16.mxu0 %v728
  %1025 = vmatpush1.bf16.msra.mxu0 %v727
  %1026 = vmatprep.subr.bf16.mxu0 %v730
  %1027 = vmatpush1.bf16.msra.mxu0 %v729
  %1028 = vmatprep.subr.bf16.mxu0 %v732
  %1029 = vmatpush1.bf16.msra.mxu0 %v731
  %1030 = vmatprep.subr.bf16.mxu0 %v734
  %1031 = vmatpush1.bf16.msra.mxu0 %v733
  %1032 = vmatprep.subr.bf16.mxu0 %v736
  %1033 = vmatpush1.bf16.msra.mxu0 %v735
  %1034 = vmatprep.subr.bf16.mxu0 %v738
  %1035 = vmatpush1.bf16.msra.mxu0 %v737
  %1036 = vmatprep.subr.bf16.mxu0 %v740
  %1037 = vmatpush1.bf16.msra.mxu0 %v739
  %1038 = vmatprep.subr.bf16.mxu0 %v742
  %1039 = vmatpush1.bf16.msra.mxu0 %v741
  %1040 = vmatprep.subr.bf16.mxu0 %v744
  %1041 = vmatpush1.bf16.msra.mxu0 %v743
  %1042 = vmatprep.subr.bf16.mxu0 %v746
  %1043 = vmatpush1.bf16.msra.mxu0 %v745
  %1044 = vmatprep.subr.bf16.mxu0 %v748
  %1045 = vmatpush1.bf16.msra.mxu0 %v747
  %1046 = vmatprep.subr.bf16.mxu0 %v750
  %1047 = vmatpush1.bf16.msra.mxu0 %v749
  %1048 = vmatprep.mubr.bf16.mxu0 %v230
  %1049 = vmatmul.mubr.bf16.gmra.mrb[0].mxu0 %v228
  %v1050 = vpop.f32.mrb[0].mxu0
  %v1051 = vadd.f32 %v1010, %v1050
  %v1052 = vpop.f32.mrb[0].mxu0
  %v1053 = vadd.f32 %v1012, %v1052
  %v1054 = vpop.f32.mrb[0].mxu0
  %v1055 = vpop.f32.mrb[0].mxu0
  %1056 = vdwg.mxu0
  %1057 = vmatprep.subr.bf16.mxu0 %v752
  %1058 = vmatpush1.bf16.msra.mxu0 %v751
  %1059 = vmatprep.subr.bf16.mxu0 %v754
  %1060 = vmatpush1.bf16.msra.mxu0 %v753
  %1061 = vmatprep.subr.bf16.mxu0 %v756
  %1062 = vmatpush1.bf16.msra.mxu0 %v755
  %1063 = vmatprep.subr.bf16.mxu0 %v758
  %1064 = vmatpush1.bf16.msra.mxu0 %v757
  %1065 = vmatprep.subr.bf16.mxu0 %v760
  %1066 = vmatpush1.bf16.msra.mxu0 %v759
  %1067 = vmatprep.subr.bf16.mxu0 %v762
  %1068 = vmatpush1.bf16.msra.mxu0 %v761
  %1069 = vmatprep.subr.bf16.mxu0 %v764
  %1070 = vmatpush1.bf16.msra.mxu0 %v763
  %1071 = vmatprep.subr.bf16.mxu0 %v766
  %1072 = vmatpush1.bf16.msra.mxu0 %v765
  %1073 = vmatprep.subr.bf16.mxu0 %v768
  %1074 = vmatpush1.bf16.msra.mxu0 %v767
  %1075 = vmatprep.subr.bf16.mxu0 %v770
  %1076 = vmatpush1.bf16.msra.mxu0 %v769
  %1077 = vmatprep.subr.bf16.mxu0 %v772
  %1078 = vmatpush1.bf16.msra.mxu0 %v771
  %1079 = vmatprep.subr.bf16.mxu0 %v774
  %1080 = vmatpush1.bf16.msra.mxu0 %v773
  %1081 = vmatprep.subr.bf16.mxu0 %v776
  %1082 = vmatpush1.bf16.msra.mxu0 %v775
  %1083 = vmatprep.subr.bf16.mxu0 %v778
  %1084 = vmatpush1.bf16.msra.mxu0 %v777
  %1085 = vmatprep.subr.bf16.mxu0 %v780
  %1086 = vmatpush1.bf16.msra.mxu0 %v779
  %1087 = vmatprep.subr.bf16.mxu0 %v782
  %1088 = vmatpush1.bf16.msra.mxu0 %v781
  %1089 = vmatprep.mubr.bf16.mxu0 %v227
  %1090 = vmatmul.mubr.bf16.gmra.mrb[0].mxu0 %v213
  %v1091 = vpop.f32.mrb[0].mxu0
  %v1092 = vadd.f32 %v1051, %v1091
  %v1093 = vpop.f32.mrb[0].mxu0
  %v1094 = vadd.f32 %v1053, %v1093
  %v1095 = vpop.f32.mrb[0].mxu0
  %v1096 = vpop.f32.mrb[0].mxu0
  %1097 = vdwg.mxu0
  %1098 = vmatprep.subr.bf16.mxu0 %v784
  %1099 = vmatpush1.bf16.msra.mxu0 %v783
  %1100 = vmatprep.subr.bf16.mxu0 %v786
  %1101 = vmatpush1.bf16.msra.mxu0 %v785
  %1102 = vmatprep.subr.bf16.mxu0 %v788
  %1103 = vmatpush1.bf16.msra.mxu0 %v787
  %1104 = vmatprep.subr.bf16.mxu0 %v790
  %1105 = vmatpush1.bf16.msra.mxu0 %v789
  %1106 = vmatprep.subr.bf16.mxu0 %v792
  %1107 = vmatpush1.bf16.msra.mxu0 %v791
  %1108 = vmatprep.subr.bf16.mxu0 %v794
  %1109 = vmatpush1.bf16.msra.mxu0 %v793
  %1110 = vmatprep.subr.bf16.mxu0 %v796
  %1111 = vmatpush1.bf16.msra.mxu0 %v795
  %1112 = vmatprep.subr.bf16.mxu0 %v798
  %1113 = vmatpush1.bf16.msra.mxu0 %v797
  %1114 = vmatprep.subr.bf16.mxu0 %v800
  %1115 = vmatpush1.bf16.msra.mxu0 %v799
  %1116 = vmatprep.subr.bf16.mxu0 %v802
  %1117 = vmatpush1.bf16.msra.mxu0 %v801
  %1118 = vmatprep.subr.bf16.mxu0 %v804
  %1119 = vmatpush1.bf16.msra.mxu0 %v803
  %1120 = vmatprep.subr.bf16.mxu0 %v806
  %1121 = vmatpush1.bf16.msra.mxu0 %v805
  %1122 = vmatprep.subr.bf16.mxu0 %v808
  %1123 = vmatpush1.bf16.msra.mxu0 %v807
  %1124 = vmatprep.subr.bf16.mxu0 %v810
  %1125 = vmatpush1.bf16.msra.mxu0 %v809
  %1126 = vmatprep.subr.bf16.mxu0 %v812
  %1127 = vmatpush1.bf16.msra.mxu0 %v811
  %1128 = vmatprep.subr.bf16.mxu0 %v814
  %1129 = vmatpush1.bf16.msra.mxu0 %v813
  %1130 = vmatprep.mubr.bf16.mxu0 %v231
  %1131 = vmatmul.mubr.bf16.gmra.mrb[0].mxu0 %v229
  %v1132 = vpop.f32.mrb[0].mxu0
  %v1133 = vadd.f32 %v1092, %v1132
  %v1134 = vpop.f32.mrb[0].mxu0
  %v1135 = vadd.f32 %v1094, %v1134
  %v1136 = vpop.f32.mrb[0].mxu0
  %v1137 = vpop.f32.mrb[0].mxu0
  %1138 = vdwg.mxu0
  %1139 = vmatprep.subr.bf16.mxu0 %v816
  %1140 = vmatpush1.bf16.msra.mxu0 %v815
  %1141 = vmatprep.subr.bf16.mxu0 %v818
  %1142 = vmatpush1.bf16.msra.mxu0 %v817
  %1143 = vmatprep.subr.bf16.mxu0 %v820
  %1144 = vmatpush1.bf16.msra.mxu0 %v819
  %1145 = vmatprep.subr.bf16.mxu0 %v822
  %1146 = vmatpush1.bf16.msra.mxu0 %v821
  %1147 = vmatprep.subr.bf16.mxu0 %v824
  %1148 = vmatpush1.bf16.msra.mxu0 %v823
  %1149 = vmatprep.subr.bf16.mxu0 %v826
  %1150 = vmatpush1.bf16.msra.mxu0 %v825
  %1151 = vmatprep.subr.bf16.mxu0 %v828
  %1152 = vmatpush1.bf16.msra.mxu0 %v827
  %1153 = vmatprep.subr.bf16.mxu0 %v830
  %1154 = vmatpush1.bf16.msra.mxu0 %v829
  %1155 = vmatprep.subr.bf16.mxu0 0
  %1156 = vmatpush1.bf16.msra.mxu0 0
  %1157 = vmatprep.subr.bf16.mxu0 0
  %1158 = vmatpush1.bf16.msra.mxu0 0
  %1159 = vmatprep.subr.bf16.mxu0 0
  %1160 = vmatpush1.bf16.msra.mxu0 0
  %1161 = vmatprep.subr.bf16.mxu0 0
  %1162 = vmatpush1.bf16.msra.mxu0 0
  %1163 = vmatprep.subr.bf16.mxu0 0
  %1164 = vmatpush1.bf16.msra.mxu0 0
  %1165 = vmatprep.subr.bf16.mxu0 0
  %1166 = vmatpush1.bf16.msra.mxu0 0
  %1167 = vmatprep.subr.bf16.mxu0 0
  %1168 = vmatpush1.bf16.msra.mxu0 0
  %1169 = vmatprep.subr.bf16.mxu0 0
  %1170 = vmatpush1.bf16.msra.mxu0 0
  %1171 = vmatprep.mubr.bf16.mxu0 0
  %1172 = vmatmul.mubr.bf16.gmra.mrb[0].mxu0 %v245
  %v1173 = vpop.f32.mrb[0].mxu0
  %v1174 = vadd.f32 %v1133, %v1173
  %v1175 = vpop.f32.mrb[0].mxu0
  %v1176 = vadd.f32 %v1135, %v1175
  %v1177 = vpop.f32.mrb[0].mxu0
  %v1178 = vpop.f32.mrb[0].mxu0
  %1179 = vdwg.mxu0
  %v1180 = vmul.f32 %v1174, 0.2
  %v1181 = vmul.f32 %v1176, 0.2
  %v1182 = vmax.f32 %v1174, %v1180
  %v1183 = vmax.f32 %v1176, %v1181
  %v1184 = vld [vmem:[%s3] sm:$0x3]
  %v1186 = vlaneseq
  %v1187 = vshrl.u32 %v1186, 7
  %v1188 = vsub.s32 0, %v1187
  %v1189 = vrot.slane %v1184, %v1188
  %v1190 = vlaneseq
  %v1191 = vshrl.u32 %v1190, 7
  %v1192 = vsub.s32 1, %v1191
  %v1193 = vrot.slane %v1184, %v1192
  %v1196 = vmul.f32 %v1182, %v1189
  %v1197 = vmul.f32 %v1183, %v1193
  %vm1198 = vcmask 1041408
  %v1199 = vsel %vm1198, %v1196, 0.0
  %v1200 = vsel %vm1198, %v1197, 0.0
  %v1201 = vadd.f32 %v1199, %v1200
  %1202 = vadd.xlane.f32.xlu0 %v1201
  %v1203 = vpop.xlane.xlu0 %1202
  %v1204 = vld [vmem:[#allocation2] sm:$0x1]
  %v1206 = vlaneseq
  %v1207 = vshrl.u32 %v1206, 7
  %v1208 = vsub.s32 0, %v1207
  %v1209 = vrot.slane %v1204, %v1208
  %v1211 = vadd.f32 %v1203, %v1209
  %v1212 = vxor.u32 %v1211, 2147483648
  %v1213 = vmul.f32 %v1212, 1.442695
  %v1214 = vpow.pop %v1213
  %v1215 = vadd.f32 %v1214, 1.0
  %v1216 = vrcp.pop %v1215
  %v1217 = vmul.f32 1.0, %v1216
  %vm1218 = vcmask 1024
  %1219 = vst.msk [vmem:[%s5] sm:$0x3] %vm1218, %v1217
  // Predicated region
  $region22: #{distinguish_forward.7} parent=0 // pred_check
    _
  $region23: #{distinguish_forward.7} parent=0 // pred_check_branch
    %1221 = sbr.rel (0) target = $region25
  $region24: #{distinguish_forward.7} parent=0 // pred_region
    _
  $region25: #{distinguish_forward.7} parent=0 // pred_fallthru
    _
  // Predicated region
  $region26: #{distinguish_forward.7} parent=0 // pred_check
    _
  $region27: #{distinguish_forward.7} parent=0 // pred_check_branch
    %1223 = sbr.rel (0) target = $region29
  $region28: #{distinguish_forward.7} parent=0 // pred_region
    _
  $region29: #{distinguish_forward.7} parent=0 // pred_fallthru
    _

</llo_original>
